<compile_context>
chip_gen: v7x
topology: tpu7x:2x2x1
jax: 0.10.0
libtpu: 0.0.40
codegen_flags: <defaults>
</compile_context>

<pallas_src>
import jax
import jax.numpy as jnp
import numpy as np
from jax import lax
from jax.experimental import pallas as pl
from jax.experimental.pallas import tpu as pltpu


def _lovasz_kernel(present_ref, probas_row_ref, probas_col_ref,
                   labels_row_ref, labels_col_ref, loss_ref):
    # present_ref:     (C,)      i32 in SMEM (scalar prefetch)
    # probas_row_ref:  (1, 1, P) f32   probabilities of class c, pixels on lanes
    # probas_col_ref:  (1, P, 1) f32   same data, pixels on sublanes
    # labels_row_ref:  (1, P)    i32
    # labels_col_ref:  (P, 1)    i32
    # loss_ref:        (1, 1, 1) f32   per-class partial loss
    c = pl.program_id(0)
    P = labels_row_ref.shape[-1]

    # Absent classes contribute nothing (classes='present'): write the default
    # and skip the whole O(P^2) body.
    loss_ref[...] = jnp.zeros_like(loss_ref)

    @pl.when(present_ref[c] > 0)
    def _class_present():
        # Row layout (pixels on lanes).
        prob_row = probas_row_ref[...].reshape(1, P)               # (1, P)
        lab_row = labels_row_ref[...]                              # (1, P)
        fg_row = (lab_row == c).astype(jnp.float32)                # (1, P)
        err_row = jnp.abs(fg_row - prob_row)                       # (1, P)
        gts = jnp.sum(fg_row)                                      # > 0 here

        # Column layout (pixels on sublanes) — exact copies of the row data,
        # so equality-based tie-breaking below is consistent.
        prob_col = probas_col_ref[...].reshape(P, 1)               # (P, 1)
        lab_col = labels_col_ref[...]                              # (P, 1)
        fg_col = (lab_col == c).astype(jnp.float32)
        err_col = jnp.abs(fg_col - prob_col)                       # (P, 1)

        # Strictly-before matrix of the stable descending sort
        # (matches np.argsort(-errors, kind='stable')):
        #   B[j, i] = (e[j] > e[i]) | (e[j] == e[i] & j < i)
        # j on sublanes, i on lanes.
        sub = lax.broadcasted_iota(jnp.int32, (P, P), 0)           # j
        lane = lax.broadcasted_iota(jnp.int32, (P, P), 1)          # i
        before = (err_col > err_row) | ((err_col == err_row) & (sub < lane))
        before_bf = before.astype(jnp.bfloat16)                    # 0/1 exact

        # One small bf16 MXU matmul yields, per pixel i (lane-dense (·, P)):
        #   row 0: rank[i] = #{j strictly before i}          (sorted position)
        #   row 1: w[i]    = #{fg j strictly before i}       (exclusive cumsum)
        # 0/1 bf16 operands with f32 accumulation are exact for counts <= P.
        sub8 = lax.broadcasted_iota(jnp.int32, (8, P), 0)
        lhs = jnp.where(sub8 == 0, 1.0, jnp.where(sub8 == 1, fg_row, 0.0))
        res = jnp.dot(lhs.astype(jnp.bfloat16), before_bf,
                      preferred_element_type=jnp.float32)          # (8, P)
        rank = jnp.sum(jnp.where(sub8 == 0, res, 0.0), axis=0, keepdims=True)
        w = jnp.sum(jnp.where(sub8 == 1, res, 0.0), axis=0, keepdims=True)

        cum_le = w + fg_row   # inclusive fg cumsum at sorted position rank[i]
        cum_lt = w            # exclusive fg cumsum (= cumsum at rank[i] - 1)

        # lovasz_grad evaluated per pixel: grad_i = jac(rank_i) - jac(rank_i-1)
        #   jac[r] = 1 - (gts - cum_le) / (gts + (r+1) - cum_le)
        #   jac[-1] := 0 (prev formula evaluates to exactly 0 at rank 0).
        jac = 1.0 - (gts - cum_le) / (gts + (rank + 1.0) - cum_le)
        prev = 1.0 - (gts - cum_lt) / (gts + rank - cum_lt)
        grad = jac - prev

        # dot(errors_sorted, grad_sorted) == sum_i errors[i] * grad[rank[i]]
        loss_ref[...] = loss_ref[...] + jnp.sum(err_row * grad)


@jax.jit
def lovasz_softmax_pallas(probas, labels):
    """Forward of Lovasz_softmax() with default args (present/False/None)."""
    # TODO(synk): per_image=True, ignore-label filtering and explicit class
    # lists are not implemented (module defaults are used).
    # TODO(synk): for production P (= B*H*W in the 1e5..1e6 range) the
    # strictly-before matrix must be row-tiled over (TR, P) chunks so the
    # working set stays inside v7x's 64 MiB VMEM; this version materializes
    # full (P, P) intermediates and targets moderate P.
    B, C, H, W = probas.shape
    P = B * H * W
    assert P % 128 == 0  # TODO(synk): pad + mask ragged pixel counts

    probas_row = jnp.transpose(probas, (1, 0, 2, 3)).reshape(C, 1, P).astype(jnp.float32)
    probas_col = probas_row.reshape(C, P, 1)
    labels_row = labels.reshape(1, P).astype(jnp.int32)
    labels_col = labels_row.reshape(P, 1)

    # classes='present': per-class presence flags, computed once on the XLA
    # side and prefetched into SMEM so absent classes skip the O(P^2) body.
    present = jnp.any(labels_row == jnp.arange(C, dtype=jnp.int32)[:, None],
                      axis=1).astype(jnp.int32)                       # (C,)

    loss_parts = pl.pallas_call(
        _lovasz_kernel,
        grid_spec=pltpu.PrefetchScalarGridSpec(
            num_scalar_prefetch=1,
            grid=(C,),
            in_specs=[
                pl.BlockSpec((1, 1, P), lambda c, p: (c, 0, 0)),
                pl.BlockSpec((1, P, 1), lambda c, p: (c, 0, 0)),
                pl.BlockSpec((1, P), lambda c, p: (0, 0)),
                pl.BlockSpec((P, 1), lambda c, p: (0, 0)),
            ],
            out_specs=pl.BlockSpec((1, 1, 1), lambda c, p: (c, 0, 0)),
        ),
        out_shape=jax.ShapeDtypeStruct((C, 1, 1), jnp.float32),
        compiler_params=pltpu.CompilerParams(
            # Independent per-class outputs -> class grid can be split across
            # TensorCores (megacore); limit stays below v7x's 64 MiB VMEM.
            dimension_semantics=("parallel",),
            vmem_limit_bytes=48 * 1024 * 1024,
        ),
    )(present, probas_row, probas_col, labels_row, labels_col)

    cnt = jnp.sum(present).astype(jnp.float32)
    # mean([]) == 0 in the reference (empty=0).
    return jnp.sum(loss_parts) / jnp.maximum(cnt, 1.0)


def _reference_lovasz(probas, labels):
    """Pure-numpy mirror of the PyTorch forward (classes='present')."""
    B, C, H, W = probas.shape
    pf = probas.transpose(0, 2, 3, 1).reshape(-1, C).astype(np.float64)
    lf = labels.reshape(-1)
    losses = []
    for c in range(C):
        fg = (lf == c).astype(np.float64)
        if fg.sum() == 0:
            continue
        errors = np.abs(fg - pf[:, c])
        order = np.argsort(-errors, kind="stable")
        es, fs = errors[order], fg[order]
        gts = fs.sum()
        inter = gts - np.cumsum(fs)
        union = gts + np.cumsum(1.0 - fs)
        jac = 1.0 - inter / union
        jac[1:] = jac[1:] - jac[:-1]
        losses.append(np.dot(es, jac))
    return float(np.mean(losses)) if losses else 0.0


if __name__ == "__main__":
    key = jax.random.PRNGKey(0)
    B, C, H, W = 2, 4, 16, 16
    k1, k2 = jax.random.split(key)
    logits = jax.random.normal(k1, (B, C, H, W), dtype=jnp.float32)
    probas = jax.nn.softmax(logits, axis=1)          # [B, C, H, W] probabilities
    labels = jax.random.randint(k2, (B, H, W), 0, C, dtype=jnp.int32)

    loss = jax.block_until_ready(lovasz_softmax_pallas(probas, labels))

    ref = _reference_lovasz(np.asarray(probas), np.asarray(labels))
    assert np.allclose(float(loss), ref, rtol=1e-4, atol=1e-4), (float(loss), ref)
    print("KERNEL_OK")
</pallas_src>

<mosaic_0001>
module attributes {stable_mosaic.version = 11 : i64} {
  func.func @_lovasz_kernel(%arg0: i32, %arg1: memref<4xi32, #tpu.memory_space<smem>>, %arg2: memref<1x1x512xf32, #tpu.memory_space<vmem>>, %arg3: memref<1x512x1xf32, #tpu.memory_space<vmem>>, %arg4: memref<1x512xi32, #tpu.memory_space<vmem>>, %arg5: memref<512x1xi32, #tpu.memory_space<vmem>>, %arg6: memref<1x1x1xf32, #tpu.memory_space<vmem>>) attributes {dimension_semantics = [#tpu.dimension_semantics<parallel>], iteration_bounds = array<i64: 4>, scalar_prefetch = 1 : i64, scratch_operands = 0 : i64, tpu.core_type = #tpu.core_type<tc>, window_params = [{transform_indices = @transform_0, window_bounds = array<i64: 1, 1, 512>}, {transform_indices = @transform_1, window_bounds = array<i64: 1, 512, 1>}, {pipeline_mode = #tpu.pipeline_mode<synchronous>, transform_indices = @transform_2, window_bounds = array<i64: 1, 512>}, {pipeline_mode = #tpu.pipeline_mode<synchronous>, transform_indices = @transform_3, window_bounds = array<i64: 512, 1>}, {transform_indices = @transform_4, window_bounds = array<i64: 1, 1, 1>}]} {
    %cst = arith.constant 0.000000e+00 : f32
    %0 = vector.broadcast %cst : f32 to vector<1x1x1xf32>
    %c0 = arith.constant 0 : index
    %c0_0 = arith.constant 0 : index
    %c0_1 = arith.constant 0 : index
    %1 = vector.load %arg6[%c0, %c0_0, %c0_1] : memref<1x1x1xf32, #tpu.memory_space<vmem>>, vector<1x1x1xf32>
    tpu.vector_store %arg6[%c0, %c0_0, %c0_1], %0 {strides = array<i32>} : memref<1x1x1xf32, #tpu.memory_space<vmem>>, vector<1x1x1xf32>,
    %2 = arith.index_cast %arg0 : i32 to index
    %3 = memref.load %arg1[%2] : memref<4xi32, #tpu.memory_space<smem>>
    %c0_i32 = arith.constant 0 : i32
    %4 = arith.cmpi sgt, %3, %c0_i32 : i32
    %5 = arith.extui %4 : i1 to i32
    %c0_i32_2 = arith.constant 0 : i32
    %6 = arith.cmpi ne, %5, %c0_i32_2 : i32
    scf.if %6 {
      %c0_3 = arith.constant 0 : index
      %c0_4 = arith.constant 0 : index
      %c0_5 = arith.constant 0 : index
      %7 = vector.load %arg2[%c0_3, %c0_4, %c0_5] : memref<1x1x512xf32, #tpu.memory_space<vmem>>, vector<1x1x512xf32>
      %8 = vector.shape_cast %7 : vector<1x1x512xf32> to vector<1x512xf32>
      %c0_6 = arith.constant 0 : index
      %c0_7 = arith.constant 0 : index
      %9 = vector.load %arg4[%c0_6, %c0_7] : memref<1x512xi32, #tpu.memory_space<vmem>>, vector<1x512xi32>
      %10 = vector.broadcast %arg0 : i32 to vector<1x512xi32>
      %11 = arith.cmpi eq, %9, %10 : vector<1x512xi32>
      %12 = arith.extui %11 : vector<1x512xi1> to vector<1x512xi32>
      %13 = arith.sitofp %12 : vector<1x512xi32> to vector<1x512xf32>
      %14 = arith.subf %13, %8 : vector<1x512xf32>
      %15 = math.absf %14 : vector<1x512xf32>
      %16 = vector.shape_cast %13 : vector<1x512xf32> to vector<1x1x512xf32>
      %cst_8 = arith.constant dense<0.000000e+00> : vector<1xf32>
      %17 = vector.multi_reduction <add>, %16, %cst_8 [1, 2] : vector<1x1x512xf32> to vector<1xf32>
      %18 = vector.shape_cast %17 : vector<1xf32> to vector<1x1x1xf32>
      %19 = vector.extract %18[0, 0, 0] : f32 from vector<1x1x1xf32>
      %c0_9 = arith.constant 0 : index
      %c0_10 = arith.constant 0 : index
      %c0_11 = arith.constant 0 : index
      %20 = vector.load %arg3[%c0_9, %c0_10, %c0_11] : memref<1x512x1xf32, #tpu.memory_space<vmem>>, vector<1x512x1xf32>
      %21 = vector.shape_cast %20 : vector<1x512x1xf32> to vector<512x1xf32>
      %c0_12 = arith.constant 0 : index
      %c0_13 = arith.constant 0 : index
      %22 = vector.load %arg5[%c0_12, %c0_13] : memref<512x1xi32, #tpu.memory_space<vmem>>, vector<512x1xi32>
      %23 = vector.broadcast %arg0 : i32 to vector<512x1xi32>
      %24 = arith.cmpi eq, %22, %23 : vector<512x1xi32>
      %25 = arith.extui %24 : vector<512x1xi1> to vector<512x1xi32>
      %26 = arith.sitofp %25 : vector<512x1xi32> to vector<512x1xf32>
      %27 = arith.subf %26, %21 : vector<512x1xf32>
      %28 = math.absf %27 : vector<512x1xf32>
      %29 = tpu.iota {dimensions = array<i32: 0>} : vector<512x512xi32>
      %30 = tpu.iota {dimensions = array<i32: 1>} : vector<512x512xi32>
      %31 = vector.broadcast %28 : vector<512x1xf32> to vector<512x512xf32>
      %32 = vector.broadcast %15 : vector<1x512xf32> to vector<512x512xf32>
      %33 = arith.cmpf ogt, %31, %32 : vector<512x512xf32>
      %34 = vector.broadcast %28 : vector<512x1xf32> to vector<512x512xf32>
      %35 = vector.broadcast %15 : vector<1x512xf32> to vector<512x512xf32>
      %36 = arith.cmpf oeq, %34, %35 : vector<512x512xf32>
      %37 = arith.cmpi slt, %29, %30 : vector<512x512xi32>
      %38 = arith.andi %36, %37 : vector<512x512xi1>
      %39 = arith.ori %33, %38 : vector<512x512xi1>
      %40 = arith.extui %39 : vector<512x512xi1> to vector<512x512xi32>
      %41 = arith.sitofp %40 : vector<512x512xi32> to vector<512x512xf32>
      %42 = arith.truncf %41 : vector<512x512xf32> to vector<512x512xbf16>
      %43 = tpu.iota {dimensions = array<i32: 0>} : vector<8x512xi32>
      %c0_i32_14 = arith.constant 0 : i32
      %44 = vector.broadcast %c0_i32_14 : i32 to vector<8x512xi32>
      %45 = arith.cmpi eq, %43, %44 : vector<8x512xi32>
      %c1_i32 = arith.constant 1 : i32
      %46 = vector.broadcast %c1_i32 : i32 to vector<8x512xi32>
      %47 = arith.cmpi eq, %43, %46 : vector<8x512xi32>
      %cst_15 = arith.constant 0.000000e+00 : f32
      %48 = vector.shape_cast %13 : vector<1x512xf32> to vector<1x512xf32>
      %49 = vector.broadcast %48 : vector<1x512xf32> to vector<8x512xf32>
      %50 = vector.broadcast %cst_15 : f32 to vector<8x512xf32>
      %51 = arith.select %47, %49, %50 : vector<8x512xi1>, vector<8x512xf32>
      %cst_16 = arith.constant 1.000000e+00 : f32
      %52 = vector.broadcast %cst_16 : f32 to vector<8x512xf32>
      %53 = arith.select %45, %52, %51 : vector<8x512xi1>, vector<8x512xf32>
      %54 = arith.truncf %53 : vector<8x512xf32> to vector<8x512xbf16>
      %cst_17 = arith.constant dense<0.000000e+00> : vector<8x512xf32>
      %55 = tpu.matmul %54, %42, %cst_17 {dimension_numbers = #tpu.dot_dimension_numbers<[1], [0], [0], [1], [0, 0, 1, 1], [], []>} : vector<8x512xbf16>, vector<512x512xbf16>, vector<8x512xf32> -> vector<8x512xf32>
      %c0_i32_18 = arith.constant 0 : i32
      %56 = vector.broadcast %c0_i32_18 : i32 to vector<8x512xi32>
      %57 = arith.cmpi eq, %43, %56 : vector<8x512xi32>
      %cst_19 = arith.constant 0.000000e+00 : f32
      %58 = vector.broadcast %cst_19 : f32 to vector<8x512xf32>
      %59 = arith.select %57, %55, %58 : vector<8x512xi1>, vector<8x512xf32>
      %cst_20 = arith.constant dense<0.000000e+00> : vector<512xf32>
      %60 = vector.multi_reduction <add>, %59, %cst_20 [0] : vector<8x512xf32> to vector<512xf32>
      %61 = vector.shape_cast %60 : vector<512xf32> to vector<1x512xf32>
      %c1_i32_21 = arith.constant 1 : i32
      %62 = vector.broadcast %c1_i32_21 : i32 to vector<8x512xi32>
      %63 = arith.cmpi eq, %43, %62 : vector<8x512xi32>
      %cst_22 = arith.constant 0.000000e+00 : f32
      %64 = vector.broadcast %cst_22 : f32 to vector<8x512xf32>
      %65 = arith.select %63, %55, %64 : vector<8x512xi1>, vector<8x512xf32>
      %cst_23 = arith.constant dense<0.000000e+00> : vector<512xf32>
      %66 = vector.multi_reduction <add>, %65, %cst_23 [0] : vector<8x512xf32> to vector<512xf32>
      %67 = vector.shape_cast %66 : vector<512xf32> to vector<1x512xf32>
      %68 = arith.addf %67, %13 : vector<1x512xf32>
      %69 = vector.broadcast %19 : f32 to vector<1x512xf32>
      %70 = arith.subf %69, %68 : vector<1x512xf32>
      %cst_24 = arith.constant 1.000000e+00 : f32
      %71 = vector.broadcast %cst_24 : f32 to vector<1x512xf32>
      %72 = arith.addf %61, %71 : vector<1x512xf32>
      %73 = vector.broadcast %19 : f32 to vector<1x512xf32>
      %74 = arith.addf %73, %72 : vector<1x512xf32>
      %75 = arith.subf %74, %68 : vector<1x512xf32>
      %76 = arith.divf %70, %75 : vector<1x512xf32>
      %cst_25 = arith.constant 1.000000e+00 : f32
      %77 = vector.broadcast %cst_25 : f32 to vector<1x512xf32>
      %78 = arith.subf %77, %76 : vector<1x512xf32>
      %79 = vector.broadcast %19 : f32 to vector<1x512xf32>
      %80 = arith.subf %79, %67 : vector<1x512xf32>
      %81 = vector.broadcast %19 : f32 to vector<1x512xf32>
      %82 = arith.addf %81, %61 : vector<1x512xf32>
      %83 = arith.subf %82, %67 : vector<1x512xf32>
      %84 = arith.divf %80, %83 : vector<1x512xf32>
      %cst_26 = arith.constant 1.000000e+00 : f32
      %85 = vector.broadcast %cst_26 : f32 to vector<1x512xf32>
      %86 = arith.subf %85, %84 : vector<1x512xf32>
      %87 = arith.subf %78, %86 : vector<1x512xf32>
      %c0_27 = arith.constant 0 : index
      %c0_28 = arith.constant 0 : index
      %c0_29 = arith.constant 0 : index
      %88 = vector.load %arg6[%c0_27, %c0_28, %c0_29] : memref<1x1x1xf32, #tpu.memory_space<vmem>>, vector<1x1x1xf32>
      %89 = arith.mulf %15, %87 : vector<1x512xf32>
      %90 = vector.shape_cast %89 : vector<1x512xf32> to vector<1x1x512xf32>
      %cst_30 = arith.constant dense<0.000000e+00> : vector<1xf32>
      %91 = vector.multi_reduction <add>, %90, %cst_30 [1, 2] : vector<1x1x512xf32> to vector<1xf32>
      %92 = vector.shape_cast %91 : vector<1xf32> to vector<1x1x1xf32>
      %93 = vector.extract %92[0, 0, 0] : f32 from vector<1x1x1xf32>
      %94 = vector.broadcast %93 : f32 to vector<1x1x1xf32>
      %95 = arith.addf %88, %94 : vector<1x1x1xf32>
      %c0_31 = arith.constant 0 : index
      %c0_32 = arith.constant 0 : index
      %c0_33 = arith.constant 0 : index
      %96 = vector.load %arg6[%c0_31, %c0_32, %c0_33] : memref<1x1x1xf32, #tpu.memory_space<vmem>>, vector<1x1x1xf32>
      tpu.vector_store %arg6[%c0_31, %c0_32, %c0_33], %95 {strides = array<i32>} : memref<1x1x1xf32, #tpu.memory_space<vmem>>, vector<1x1x1xf32>,
    } else {
    }
    return
  }
  func.func @transform_0(%arg0: i32, %arg1: memref<4xi32, #tpu.memory_space<smem>>) -> (i32, i32, i32) {
    %c0_i32 = arith.constant 0 : i32
    %c0_i32_0 = arith.constant 0 : i32
    %c0_i32_1 = arith.constant 0 : i32
    return %arg0, %c0_i32, %c0_i32_0 : i32, i32, i32
  }
  func.func @transform_1(%arg0: i32, %arg1: memref<4xi32, #tpu.memory_space<smem>>) -> (i32, i32, i32) {
    %c0_i32 = arith.constant 0 : i32
    %c0_i32_0 = arith.constant 0 : i32
    %c0_i32_1 = arith.constant 0 : i32
    return %arg0, %c0_i32, %c0_i32_0 : i32, i32, i32
  }
  func.func @transform_2(%arg0: i32, %arg1: memref<4xi32, #tpu.memory_space<smem>>) -> (i32, i32) {
    %c0_i32 = arith.constant 0 : i32
    %c0_i32_0 = arith.constant 0 : i32
    %c0_i32_1 = arith.constant 0 : i32
    return %c0_i32, %c0_i32_0 : i32, i32
  }
  func.func @transform_3(%arg0: i32, %arg1: memref<4xi32, #tpu.memory_space<smem>>) -> (i32, i32) {
    %c0_i32 = arith.constant 0 : i32
    %c0_i32_0 = arith.constant 0 : i32
    %c0_i32_1 = arith.constant 0 : i32
    return %c0_i32, %c0_i32_0 : i32, i32
  }
  func.func @transform_4(%arg0: i32, %arg1: memref<4xi32, #tpu.memory_space<smem>>) -> (i32, i32, i32) {
    %c0_i32 = arith.constant 0 : i32
    %c0_i32_0 = arith.constant 0 : i32
    %c0_i32_1 = arith.constant 0 : i32
    return %arg0, %c0_i32, %c0_i32_0 : i32, i32, i32
  }
}

</mosaic_0001>

<llo_original>
// kernel: eq.8
$region0: #{eq.8}
  %s0 = inlined_call_operand.vmem [shape: s32[2,16,16], index: 0, kind: input, shape index: {}]
  %s1 = inlined_call_operand.vmem [shape: s32[512], index: 1, kind: output, shape index: {}]
  $region1: #{eq.8} parent=0
    #allocation0 [shape = 'u8[4096]{0}', space=vmem, size = 0x1000, scoped, tag = 'scoped mem for output reshape']
    %v2 = vld [vmem:[%s0] ss:$8 sm:$0xf]
    %vm3 = vcmask 130048
    %4 = vst.msk [vmem:[#allocation0] sm:$0xf] %vm3, %v2
    %s5 = scalar_lea.vmem %s0, 7
    %v6 = vld [vmem:[%s5] ss:$8 sm:$0xf]
    %7 = vrot.lane.b32.xlu0 %v6, 112
    %v8 = vpop.permute.xlu0 %7
    %vm9 = vcmask 1048448
    %10 = vst.msk [vmem:[#allocation0] sm:$0xf] %vm9, %v8
    %s11 = scalar_lea.vmem %s0, 6
    %v12 = vld [vmem:[%s11] ss:$8 sm:$0xf]
    %13 = vrot.lane.b32.xlu0 %v12, 96
    %v14 = vpop.permute.xlu0 %13
    %vm15 = vcmask 917248
    %16 = vst.msk [vmem:[#allocation0] sm:$0xf] %vm15, %v14
    %s17 = scalar_lea.vmem %s0, 5
    %v18 = vld [vmem:[%s17] ss:$8 sm:$0xf]
    %19 = vrot.lane.b32.xlu0 %v18, 80
    %v20 = vpop.permute.xlu0 %19
    %vm21 = vcmask 786048
    %22 = vst.msk [vmem:[#allocation0] sm:$0xf] %vm21, %v20
    %s23 = scalar_lea.vmem %s0, 4
    %v24 = vld [vmem:[%s23] ss:$8 sm:$0xf]
    %25 = vrot.lane.b32.xlu0 %v24, 64
    %v26 = vpop.permute.xlu0 %25
    %vm27 = vcmask 654848
    %28 = vst.msk [vmem:[#allocation0] sm:$0xf] %vm27, %v26
    %s29 = scalar_lea.vmem %s0, 3
    %v30 = vld [vmem:[%s29] ss:$8 sm:$0xf]
    %31 = vrot.lane.b32.xlu0 %v30, 48
    %v32 = vpop.permute.xlu0 %31
    %vm33 = vcmask 523648
    %34 = vst.msk [vmem:[#allocation0] sm:$0xf] %vm33, %v32
    %s35 = scalar_lea.vmem %s0, 2
    %v36 = vld [vmem:[%s35] ss:$8 sm:$0xf]
    %37 = vrot.lane.b32.xlu0 %v36, 32
    %v38 = vpop.permute.xlu0 %37
    %vm39 = vcmask 392448
    %40 = vst.msk [vmem:[#allocation0] sm:$0xf] %vm39, %v38
    %s41 = scalar_lea.vmem %s0, 1
    %v42 = vld [vmem:[%s41] ss:$8 sm:$0xf]
    %43 = vrot.lane.b32.xlu0 %v42, 16
    %v44 = vpop.permute.xlu0 %43
    %vm45 = vcmask 261248
    %46 = vst.msk [vmem:[#allocation0] sm:$0xf] %vm45, %v44
    %s48 = sshllo.u32 0, 4
    %v50 = vld [vmem:[#allocation0] sm:%s48]
    %s51 = sshllo.u32 0, 4
    %52 = vst [vmem:[%s1] sm:%s51] %v50

// kernel: lovasz_softmax_pallas.1
$region0: #{lovasz_softmax_pallas.1}
  #allocation0 [shape = 'u32[]', space=smem, size = 0x4, offset = 0x4, fixed_abs, tag = 'smem constant byte address 0x4 - core index']
  #allocation1 [shape = 'u32[144,128]{1,0:T(1,128)}', space=vmem, size = 0x12000, scoped, tag = 'internal scratch']
  #allocation2 [shape = 's32[1]{0}', space=sflag, size = 0x4, scoped, tag = 'scoped memory for lovasz_softmax_pallas.1']
  #allocation3 [shape = 'u8[512]{0}', space=smem, size = 0x200, scoped, tag = 'prefetched SMEM operand 0']
  %s0 = inlined_call_operand.vmem [shape: s32[4], index: 0, kind: input, shape index: {}]
  %s1 = inlined_call_operand.vmem [shape: f32[4,1,512], index: 1, kind: input, shape index: {}]
  %s2 = inlined_call_operand.vmem [shape: f32[4,512,1], index: 2, kind: input, shape index: {}]
  %s3 = inlined_call_operand.vmem [shape: s32[1,512], index: 3, kind: input, shape index: {}]
  %s4 = inlined_call_operand.vmem [shape: s32[512,1], index: 4, kind: input, shape index: {}]
  %s5 = inlined_call_operand.vmem [shape: f32[4,1,1], index: 5, kind: output, shape index: {}]
  %s6 = sld [smem:[#allocation0]]
  $region53: #{lovasz_softmax_pallas.1} parent=0
    _
  %s8 = ssub.s32 1, %s6
  %s9 = scalar_select 0, %s8, %s6
  %s10 = sshll.u32 %s0, 4
  %s11 = int_to_ptr.vmem [resolvable:$true] %s10
  %13 = dma.vmem_to_smem %s11, 16, [#allocation3], [#allocation2]
  %14 = dma.done [#allocation2], 16
  %15 = sfence
  loop: start=0, step=1, limit=6
  $region2: #{lovasz_softmax_pallas.1} parent=0 // loop_pre_header
    _
  $region3: #{lovasz_softmax_pallas.1} parent=0 // loop_header
    %s17 = sphi 0, %s21
    %p18 = scmp.ge.s32.totalorder %s17, 6
    %s27 = sphi 0, %s29
    %s30 = sphi 0, %s27
    %s31 = sphi 0, %s30
    %s47 = sphi 0, %s31
    %s53 = sphi 0, %s55
    %s56 = sphi 0, %s53
    %s57 = sphi 0, %s56
    %s73 = sphi 0, %s57
    %s77 = sphi 0, %s77
    %s79 = sphi 0, %s77
    %s80 = sphi 0, %s79
    %s94 = sphi 0, %s80
    %s98 = sphi 0, %s98
    %s100 = sphi 0, %s98
    %s101 = sphi 0, %s100
    %s115 = sphi 0, %s101
    %s121 = sphi 0, %s123
    %s124 = sphi 0, %s121
    %s125 = sphi 0, %s124
    %s141 = sphi 0, %s125
  $region4: #{lovasz_softmax_pallas.1} parent=0 // loop_header_branch
    %20 = sbr.rel (%p18) target = $region8
  $region5: #{lovasz_softmax_pallas.1} parent=0 // loop_body
    %s22 = ssub.s32 %s17, 1
    %s23 = ssub.s32 %s17, 2
    %s24 = sadd.s32 %s17, 1
    %s25 = ssub.s32 %s17, %s24
    %p26 = scmp.eq.s32.totalorder %s25, 0
    %s28 = sadd.s32 %s27, 1
    %s29 = scalar_select %p26, %s27, %s28
    %p32 = pneg %p26
    %p33 = scmp.eq.s32.totalorder %s17, 3
    %p34 = por %p32, %p33
    %p35 = scmp.ne.s32.totalorder %s27, %s30
    %p36 = scmp.eq.s32.totalorder %s17, 0
    %p37 = por %p35, %p36
    %p38 = scmp.ne.s32.totalorder %s27, %s30
    %p39 = scmp.eq.s32.totalorder %s22, 3
    %p40 = por %p38, %p39
    %p41 = scmp.ne.s32.totalorder %s30, %s31
    %p42 = scmp.eq.s32.totalorder %s22, 0
    %p43 = por %p41, %p42
    %p44 = scmp.ne.s32.totalorder %s30, %s31
    %p45 = scmp.eq.s32.totalorder %s23, 3
    %p46 = por %p44, %p45
    %p48 = scmp.ne.s32.totalorder %s31, %s47
    %p49 = scmp.eq.s32.totalorder %s23, 0
    %p50 = por %p48, %p49
    %s51 = ssub.s32 %s17, %s24
    %p52 = scmp.eq.s32.totalorder %s51, 0
    %s54 = sadd.s32 %s53, 1
    %s55 = scalar_select %p52, %s53, %s54
    %p58 = pneg %p52
    %p59 = scmp.eq.s32.totalorder %s17, 3
    %p60 = por %p58, %p59
    %p61 = scmp.ne.s32.totalorder %s53, %s56
    %p62 = scmp.eq.s32.totalorder %s17, 0
    %p63 = por %p61, %p62
    %p64 = scmp.ne.s32.totalorder %s53, %s56
    %p65 = scmp.eq.s32.totalorder %s22, 3
    %p66 = por %p64, %p65
    %p67 = scmp.ne.s32.totalorder %s56, %s57
    %p68 = scmp.eq.s32.totalorder %s22, 0
    %p69 = por %p67, %p68
    %p70 = scmp.ne.s32.totalorder %s56, %s57
    %p71 = scmp.eq.s32.totalorder %s23, 3
    %p72 = por %p70, %p71
    %p74 = scmp.ne.s32.totalorder %s57, %s73
    %p75 = scmp.eq.s32.totalorder %s23, 0
    %p76 = por %p74, %p75
    %s78 = sadd.s32 %s77, 1
    %p81 = scmp.eq.s32.totalorder %s17, 3
    %p82 = scmp.ne.s32.totalorder %s77, %s79
    %p83 = scmp.eq.s32.totalorder %s17, 0
    %p84 = por %p82, %p83
    %p85 = scmp.ne.s32.totalorder %s77, %s79
    %p86 = scmp.eq.s32.totalorder %s22, 3
    %p87 = por %p85, %p86
    %p88 = scmp.ne.s32.totalorder %s79, %s80
    %p89 = scmp.eq.s32.totalorder %s22, 0
    %p90 = por %p88, %p89
    %p91 = scmp.ne.s32.totalorder %s79, %s80
    %p92 = scmp.eq.s32.totalorder %s23, 3
    %p93 = por %p91, %p92
    %p95 = scmp.ne.s32.totalorder %s80, %s94
    %p96 = scmp.eq.s32.totalorder %s23, 0
    %p97 = por %p95, %p96
    %s99 = sadd.s32 %s98, 1
    %p102 = scmp.eq.s32.totalorder %s17, 3
    %p103 = scmp.ne.s32.totalorder %s98, %s100
    %p104 = scmp.eq.s32.totalorder %s17, 0
    %p105 = por %p103, %p104
    %p106 = scmp.ne.s32.totalorder %s98, %s100
    %p107 = scmp.eq.s32.totalorder %s22, 3
    %p108 = por %p106, %p107
    %p109 = scmp.ne.s32.totalorder %s100, %s101
    %p110 = scmp.eq.s32.totalorder %s22, 0
    %p111 = por %p109, %p110
    %p112 = scmp.ne.s32.totalorder %s100, %s101
    %p113 = scmp.eq.s32.totalorder %s23, 3
    %p114 = por %p112, %p113
    %p116 = scmp.ne.s32.totalorder %s101, %s115
    %p117 = scmp.eq.s32.totalorder %s23, 0
    %p118 = por %p116, %p117
    %s119 = ssub.s32 %s17, %s24
    %p120 = scmp.eq.s32.totalorder %s119, 0
    %s122 = sadd.s32 %s121, 1
    %s123 = scalar_select %p120, %s121, %s122
    %p126 = pneg %p120
    %p127 = scmp.eq.s32.totalorder %s17, 3
    %p128 = por %p126, %p127
    %p129 = scmp.ne.s32.totalorder %s121, %s124
    %p130 = scmp.eq.s32.totalorder %s17, 0
    %p131 = por %p129, %p130
    %p132 = scmp.ne.s32.totalorder %s121, %s124
    %p133 = scmp.eq.s32.totalorder %s22, 3
    %p134 = por %p132, %p133
    %p135 = scmp.ne.s32.totalorder %s124, %s125
    %p136 = scmp.eq.s32.totalorder %s22, 0
    %p137 = por %p135, %p136
    %p138 = scmp.ne.s32.totalorder %s124, %s125
    %p139 = scmp.eq.s32.totalorder %s23, 3
    %p140 = por %p138, %p139
    %p142 = scmp.ne.s32.totalorder %s125, %s141
    %p143 = scmp.eq.s32.totalorder %s23, 0
    %p144 = por %p142, %p143
    %p145 = scmp.le.s32.totalorder 1, %s17
    %p146 = scmp.lt.s32.totalorder %s17, 5
    %p147 = pnand %p145, %p146
    %p148 = pneg %p147
    // Predicated region
    $region9: #{lovasz_softmax_pallas.1} parent=5 // pred_check
      _
    $region10: #{lovasz_softmax_pallas.1} parent=5 // pred_check_branch
      %150 = sbr.rel (%p147) target = $region12
    $region11: #{lovasz_softmax_pallas.1} parent=5 // pred_region
      %s151 = ssub.s32 %s17, 1
      // Predicated region
      $region13: #{lovasz_softmax_pallas.1} parent=11 // pred_check
        %p152 = pneg %p90
      $region14: #{lovasz_softmax_pallas.1} parent=11 // pred_check_branch
        %154 = sbr.rel (%p152) target = $region16
      $region15: #{lovasz_softmax_pallas.1} parent=11 // pred_region
        _
      $region16: #{lovasz_softmax_pallas.1} parent=11 // pred_fallthru
        _
      // Predicated region
      $region17: #{lovasz_softmax_pallas.1} parent=11 // pred_check
        %p155 = pneg %p111
      $region18: #{lovasz_softmax_pallas.1} parent=11 // pred_check_branch
        %157 = sbr.rel (%p155) target = $region20
      $region19: #{lovasz_softmax_pallas.1} parent=11 // pred_region
        _
      $region20: #{lovasz_softmax_pallas.1} parent=11 // pred_fallthru
        _
    $region12: #{lovasz_softmax_pallas.1} parent=5 // pred_fallthru
      _
    %p158 = scmp.lt.s32.totalorder %s17, 4
    // Predicated region
    $region21: #{lovasz_softmax_pallas.1} parent=5 // pred_check
      %p159 = pneg %p158
    $region22: #{lovasz_softmax_pallas.1} parent=5 // pred_check_branch
      %161 = sbr.rel (%p159) target = $region24
    $region23: #{lovasz_softmax_pallas.1} parent=5 // pred_region
      // Predicated region
      $region25: #{lovasz_softmax_pallas.1} parent=23 // pred_check
        %p162 = pneg %p37
      $region26: #{lovasz_softmax_pallas.1} parent=23 // pred_check_branch
        %164 = sbr.rel (%p162) target = $region28
      $region27: #{lovasz_softmax_pallas.1} parent=23 // pred_region
        %p165 = scmp.lt.s32.totalorder %s17, 3
        %s166 = scalar_select %p165, %s17, 3
        %s167 = smul.addr %s166, 4
        %s168 = scalar_lea.vmem %s1, %s167
      $region28: #{lovasz_softmax_pallas.1} parent=23 // pred_fallthru
        _
      // Predicated region
      $region29: #{lovasz_softmax_pallas.1} parent=23 // pred_check
        %p169 = pneg %p63
      $region30: #{lovasz_softmax_pallas.1} parent=23 // pred_check_branch
        %171 = sbr.rel (%p169) target = $region32
      $region31: #{lovasz_softmax_pallas.1} parent=23 // pred_region
        %p172 = scmp.lt.s32.totalorder %s17, 3
        %s173 = scalar_select %p172, %s17, 3
        %s174 = smul.addr %s173, 64
        %s175 = smul.addr %s174, 8
        %s176 = scalar_lea.vmem %s2, %s175
      $region32: #{lovasz_softmax_pallas.1} parent=23 // pred_fallthru
        _
    $region24: #{lovasz_softmax_pallas.1} parent=5 // pred_fallthru
      _
    %p177 = scmp.le.s32.totalorder 1, %s17
    %p178 = scmp.lt.s32.totalorder %s17, 5
    %p179 = pnand %p177, %p178
    %p180 = pneg %p179
    // Predicated region
    $region33: #{lovasz_softmax_pallas.1} parent=5 // pred_check
      _
    $region34: #{lovasz_softmax_pallas.1} parent=5 // pred_check_branch
      %182 = sbr.rel (%p179) target = $region36
    $region35: #{lovasz_softmax_pallas.1} parent=5 // pred_region
      %s183 = ssub.s32 %s17, 1
      %p184 = scmp.lt.s32.totalorder %s22, 3
      %s185 = scalar_select %p184, %s22, 3
      %s186 = smul.addr %s185, 4
      %s187 = scalar_lea.vmem %s1, %s186
      %p188 = pneg %p43
      %p189 = pneg %p40
      %p190 = scmp.lt.s32.totalorder %s22, 3
      %s191 = scalar_select %p190, %s22, 3
      %s192 = smul.addr %s191, 64
      %s193 = smul.addr %s192, 8
      %s194 = scalar_lea.vmem %s2, %s193
      %p195 = pneg %p69
      %p196 = pneg %p66
      %p197 = pneg %p90
      %p198 = pneg %p87
      %p199 = pneg %p111
      %p200 = pneg %p108
      %p201 = pneg %p137
      %p202 = pneg %p134
      %p203 = scmp.lt.s32.totalorder %s22, 3
      %s204 = scalar_select %p203, %s22, 3
      %s205 = scalar_lea.vmem %s5, %s204
      %p206 = scmp.lt.s32.totalorder %s22, 3
      %s207 = scalar_select %p206, %s22, 3
      %s208 = smul.addr %s207, 4
      %s209 = scalar_lea.vmem %s1, %s208
      %p210 = scmp.lt.s32.totalorder %s22, 3
      %s211 = scalar_select %p210, %s22, 3
      %s212 = smul.addr %s211, 64
      %s213 = smul.addr %s212, 8
      %s214 = scalar_lea.vmem %s2, %s213
      %p215 = scmp.lt.s32.totalorder %s22, 3
      %s216 = scalar_select %p215, %s22, 3
      %s217 = scalar_lea.vmem %s5, %s216
      %vm218 = vcmask 0
      %219 = vst.msk [vmem:[%s217] sm:$0x1] %vm218, 0.0
      %s220 = sld [smem:[#allocation3 + %s22]]
      %p221 = scmp.gt.s32.totalorder %s220, 0
      // Predicated region
      $region37: #{lovasz_softmax_pallas.1} parent=35 // pred_check
        %p222 = pneg %p221
      $region38: #{lovasz_softmax_pallas.1} parent=35 // pred_check_branch
        %224 = sbr.rel (%p222) target = $region40
      $region39: #{lovasz_softmax_pallas.1} parent=35 // pred_region
        %v225 = vld [vmem:[%s209] sm:$0xf]
        %v226 = vld [vmem:[%s3] sm:$0xf]
        %v227 = vstv %s22
        %vm228 = vcmp.eq.s32.totalorder %v226, %v227
        %v229 = vsel %vm228, 1, 0
        %v230 = vcvt.s32.f32 %v229
        %v231 = vsub.f32 %v230, %v225
        %v232 = vand.u32 2147483647, %v231
        %v234 = vlaneseq
        %v235 = vshrl.u32 %v234, 7
        %v236 = vsub.s32 0, %v235
        %v237 = vrot.slane %v230, %v236
        %v238 = vlaneseq
        %v239 = vshrl.u32 %v238, 7
        %v240 = vsub.s32 1, %v239
        %v241 = vrot.slane %v230, %v240
        %v242 = vlaneseq
        %v243 = vshrl.u32 %v242, 7
        %v244 = vsub.s32 2, %v243
        %v245 = vrot.slane %v230, %v244
        %v246 = vlaneseq
        %v247 = vshrl.u32 %v246, 7
        %v248 = vsub.s32 3, %v247
        %v249 = vrot.slane %v230, %v248
        %vm254 = vcmask 1040384
        %v255 = vsel %vm254, %v237, 0.0
        %v256 = vsel %vm254, %v241, 0.0
        %v257 = vadd.f32 %v255, %v256
        %v258 = vsel %vm254, %v245, 0.0
        %v259 = vadd.f32 %v257, %v258
        %v260 = vsel %vm254, %v249, 0.0
        %v261 = vadd.f32 %v259, %v260
        %262 = vadd.xlane.f32.xlu0 %v261
        %v263 = vpop.xlane.xlu0 %262
        %v264 = vrot.slane %v263, 4
        %v265 = vadd.f32 %v263, %v264
        %v266 = vrot.slane %v265, 2
        %v267 = vadd.f32 %v265, %v266
        %v268 = vrot.slane %v267, 1
        %v269 = vadd.f32 %v267, %v268
        %s270 = vtos %v269
        %v271 = vld [vmem:[%s214] sm:$0xff]
        %v272 = vld [vmem:[%s214 + $0x8] sm:$0xff]
        %v273 = vld [vmem:[%s214 + $0x10] sm:$0xff]
        %v274 = vld [vmem:[%s214 + $0x18] sm:$0xff]
        %v275 = vld [vmem:[%s214 + $0x20] sm:$0xff]
        %v276 = vld [vmem:[%s214 + $0x28] sm:$0xff]
        %v277 = vld [vmem:[%s214 + $0x30] sm:$0xff]
        %v278 = vld [vmem:[%s214 + $0x38] sm:$0xff]
        %v279 = vld [vmem:[%s214 + $0x40] sm:$0xff]
        %v280 = vld [vmem:[%s214 + $0x48] sm:$0xff]
        %v281 = vld [vmem:[%s214 + $0x50] sm:$0xff]
        %v282 = vld [vmem:[%s214 + $0x58] sm:$0xff]
        %v283 = vld [vmem:[%s214 + $0x60] sm:$0xff]
        %v284 = vld [vmem:[%s214 + $0x68] sm:$0xff]
        %v285 = vld [vmem:[%s214 + $0x70] sm:$0xff]
        %v286 = vld [vmem:[%s214 + $0x78] sm:$0xff]
        %v287 = vld [vmem:[%s214 + $0x80] sm:$0xff]
        %v288 = vld [vmem:[%s214 + $0x88] sm:$0xff]
        %v289 = vld [vmem:[%s214 + $0x90] sm:$0xff]
        %v290 = vld [vmem:[%s214 + $0x98] sm:$0xff]
        %v291 = vld [vmem:[%s214 + $0xa0] sm:$0xff]
        %v292 = vld [vmem:[%s214 + $0xa8] sm:$0xff]
        %v293 = vld [vmem:[%s214 + $0xb0] sm:$0xff]
        %v294 = vld [vmem:[%s214 + $0xb8] sm:$0xff]
        %v295 = vld [vmem:[%s214 + $0xc0] sm:$0xff]
        %v296 = vld [vmem:[%s214 + $0xc8] sm:$0xff]
        %v297 = vld [vmem:[%s214 + $0xd0] sm:$0xff]
        %v298 = vld [vmem:[%s214 + $0xd8] sm:$0xff]
        %v299 = vld [vmem:[%s214 + $0xe0] sm:$0xff]
        %v300 = vld [vmem:[%s214 + $0xe8] sm:$0xff]
        %v301 = vld [vmem:[%s214 + $0xf0] sm:$0xff]
        %v302 = vld [vmem:[%s214 + $0xf8] sm:$0xff]
        %v303 = vld [vmem:[%s214 + $0x100] sm:$0xff]
        %v304 = vld [vmem:[%s214 + $0x108] sm:$0xff]
        %v305 = vld [vmem:[%s214 + $0x110] sm:$0xff]
        %v306 = vld [vmem:[%s214 + $0x118] sm:$0xff]
        %v307 = vld [vmem:[%s214 + $0x120] sm:$0xff]
        %v308 = vld [vmem:[%s214 + $0x128] sm:$0xff]
        %v309 = vld [vmem:[%s214 + $0x130] sm:$0xff]
        %v310 = vld [vmem:[%s214 + $0x138] sm:$0xff]
        %v311 = vld [vmem:[%s214 + $0x140] sm:$0xff]
        %v312 = vld [vmem:[%s214 + $0x148] sm:$0xff]
        %v313 = vld [vmem:[%s214 + $0x150] sm:$0xff]
        %v314 = vld [vmem:[%s214 + $0x158] sm:$0xff]
        %v315 = vld [vmem:[%s214 + $0x160] sm:$0xff]
        %v316 = vld [vmem:[%s214 + $0x168] sm:$0xff]
        %v317 = vld [vmem:[%s214 + $0x170] sm:$0xff]
        %v318 = vld [vmem:[%s214 + $0x178] sm:$0xff]
        %v319 = vld [vmem:[%s214 + $0x180] sm:$0xff]
        %v320 = vld [vmem:[%s214 + $0x188] sm:$0xff]
        %v321 = vld [vmem:[%s214 + $0x190] sm:$0xff]
        %v322 = vld [vmem:[%s214 + $0x198] sm:$0xff]
        %v323 = vld [vmem:[%s214 + $0x1a0] sm:$0xff]
        %v324 = vld [vmem:[%s214 + $0x1a8] sm:$0xff]
        %v325 = vld [vmem:[%s214 + $0x1b0] sm:$0xff]
        %v326 = vld [vmem:[%s214 + $0x1b8] sm:$0xff]
        %v327 = vld [vmem:[%s214 + $0x1c0] sm:$0xff]
        %v328 = vld [vmem:[%s214 + $0x1c8] sm:$0xff]
        %v329 = vld [vmem:[%s214 + $0x1d0] sm:$0xff]
        %v330 = vld [vmem:[%s214 + $0x1d8] sm:$0xff]
        %v331 = vld [vmem:[%s214 + $0x1e0] sm:$0xff]
        %v332 = vld [vmem:[%s214 + $0x1e8] sm:$0xff]
        %v333 = vld [vmem:[%s214 + $0x1f0] sm:$0xff]
        %v334 = vld [vmem:[%s214 + $0x1f8] sm:$0xff]
        %v335 = vld [vmem:[%s4] sm:$0xff]
        %v336 = vld [vmem:[%s4 + $0x8] sm:$0xff]
        %v337 = vld [vmem:[%s4 + $0x10] sm:$0xff]
        %v338 = vld [vmem:[%s4 + $0x18] sm:$0xff]
        %v339 = vld [vmem:[%s4 + $0x20] sm:$0xff]
        %v340 = vld [vmem:[%s4 + $0x28] sm:$0xff]
        %v341 = vld [vmem:[%s4 + $0x30] sm:$0xff]
        %v342 = vld [vmem:[%s4 + $0x38] sm:$0xff]
        %v343 = vld [vmem:[%s4 + $0x40] sm:$0xff]
        %v344 = vld [vmem:[%s4 + $0x48] sm:$0xff]
        %v345 = vld [vmem:[%s4 + $0x50] sm:$0xff]
        %v346 = vld [vmem:[%s4 + $0x58] sm:$0xff]
        %v347 = vld [vmem:[%s4 + $0x60] sm:$0xff]
        %v348 = vld [vmem:[%s4 + $0x68] sm:$0xff]
        %v349 = vld [vmem:[%s4 + $0x70] sm:$0xff]
        %v350 = vld [vmem:[%s4 + $0x78] sm:$0xff]
        %v351 = vld [vmem:[%s4 + $0x80] sm:$0xff]
        %v352 = vld [vmem:[%s4 + $0x88] sm:$0xff]
        %v353 = vld [vmem:[%s4 + $0x90] sm:$0xff]
        %v354 = vld [vmem:[%s4 + $0x98] sm:$0xff]
        %v355 = vld [vmem:[%s4 + $0xa0] sm:$0xff]
        %v356 = vld [vmem:[%s4 + $0xa8] sm:$0xff]
        %v357 = vld [vmem:[%s4 + $0xb0] sm:$0xff]
        %v358 = vld [vmem:[%s4 + $0xb8] sm:$0xff]
        %v359 = vld [vmem:[%s4 + $0xc0] sm:$0xff]
        %v360 = vld [vmem:[%s4 + $0xc8] sm:$0xff]
        %v361 = vld [vmem:[%s4 + $0xd0] sm:$0xff]
        %v362 = vld [vmem:[%s4 + $0xd8] sm:$0xff]
        %v363 = vld [vmem:[%s4 + $0xe0] sm:$0xff]
        %v364 = vld [vmem:[%s4 + $0xe8] sm:$0xff]
        %v365 = vld [vmem:[%s4 + $0xf0] sm:$0xff]
        %v366 = vld [vmem:[%s4 + $0xf8] sm:$0xff]
        %v367 = vld [vmem:[%s4 + $0x100] sm:$0xff]
        %v368 = vld [vmem:[%s4 + $0x108] sm:$0xff]
        %v369 = vld [vmem:[%s4 + $0x110] sm:$0xff]
        %v370 = vld [vmem:[%s4 + $0x118] sm:$0xff]
        %v371 = vld [vmem:[%s4 + $0x120] sm:$0xff]
        %v372 = vld [vmem:[%s4 + $0x128] sm:$0xff]
        %v373 = vld [vmem:[%s4 + $0x130] sm:$0xff]
        %v374 = vld [vmem:[%s4 + $0x138] sm:$0xff]
        %v375 = vld [vmem:[%s4 + $0x140] sm:$0xff]
        %v376 = vld [vmem:[%s4 + $0x148] sm:$0xff]
        %v377 = vld [vmem:[%s4 + $0x150] sm:$0xff]
        %v378 = vld [vmem:[%s4 + $0x158] sm:$0xff]
        %v379 = vld [vmem:[%s4 + $0x160] sm:$0xff]
        %v380 = vld [vmem:[%s4 + $0x168] sm:$0xff]
        %v381 = vld [vmem:[%s4 + $0x170] sm:$0xff]
        %v382 = vld [vmem:[%s4 + $0x178] sm:$0xff]
        %v383 = vld [vmem:[%s4 + $0x180] sm:$0xff]
        %v384 = vld [vmem:[%s4 + $0x188] sm:$0xff]
        %v385 = vld [vmem:[%s4 + $0x190] sm:$0xff]
        %v386 = vld [vmem:[%s4 + $0x198] sm:$0xff]
        %v387 = vld [vmem:[%s4 + $0x1a0] sm:$0xff]
        %v388 = vld [vmem:[%s4 + $0x1a8] sm:$0xff]
        %v389 = vld [vmem:[%s4 + $0x1b0] sm:$0xff]
        %v390 = vld [vmem:[%s4 + $0x1b8] sm:$0xff]
        %v391 = vld [vmem:[%s4 + $0x1c0] sm:$0xff]
        %v392 = vld [vmem:[%s4 + $0x1c8] sm:$0xff]
        %v393 = vld [vmem:[%s4 + $0x1d0] sm:$0xff]
        %v394 = vld [vmem:[%s4 + $0x1d8] sm:$0xff]
        %v395 = vld [vmem:[%s4 + $0x1e0] sm:$0xff]
        %v396 = vld [vmem:[%s4 + $0x1e8] sm:$0xff]
        %v397 = vld [vmem:[%s4 + $0x1f0] sm:$0xff]
        %v398 = vld [vmem:[%s4 + $0x1f8] sm:$0xff]
        %vm399 = vcmp.eq.s32.totalorder %v335, %v227
        %vm400 = vcmp.eq.s32.totalorder %v336, %v227
        %vm401 = vcmp.eq.s32.totalorder %v337, %v227
        %vm402 = vcmp.eq.s32.totalorder %v338, %v227
        %vm403 = vcmp.eq.s32.totalorder %v339, %v227
        %vm404 = vcmp.eq.s32.totalorder %v340, %v227
        %vm405 = vcmp.eq.s32.totalorder %v341, %v227
        %vm406 = vcmp.eq.s32.totalorder %v342, %v227
        %vm407 = vcmp.eq.s32.totalorder %v343, %v227
        %vm408 = vcmp.eq.s32.totalorder %v344, %v227
        %vm409 = vcmp.eq.s32.totalorder %v345, %v227
        %vm410 = vcmp.eq.s32.totalorder %v346, %v227
        %vm411 = vcmp.eq.s32.totalorder %v347, %v227
        %vm412 = vcmp.eq.s32.totalorder %v348, %v227
        %vm413 = vcmp.eq.s32.totalorder %v349, %v227
        %vm414 = vcmp.eq.s32.totalorder %v350, %v227
        %vm415 = vcmp.eq.s32.totalorder %v351, %v227
        %vm416 = vcmp.eq.s32.totalorder %v352, %v227
        %vm417 = vcmp.eq.s32.totalorder %v353, %v227
        %vm418 = vcmp.eq.s32.totalorder %v354, %v227
        %vm419 = vcmp.eq.s32.totalorder %v355, %v227
        %vm420 = vcmp.eq.s32.totalorder %v356, %v227
        %vm421 = vcmp.eq.s32.totalorder %v357, %v227
        %vm422 = vcmp.eq.s32.totalorder %v358, %v227
        %vm423 = vcmp.eq.s32.totalorder %v359, %v227
        %vm424 = vcmp.eq.s32.totalorder %v360, %v227
        %vm425 = vcmp.eq.s32.totalorder %v361, %v227
        %vm426 = vcmp.eq.s32.totalorder %v362, %v227
        %vm427 = vcmp.eq.s32.totalorder %v363, %v227
        %vm428 = vcmp.eq.s32.totalorder %v364, %v227
        %vm429 = vcmp.eq.s32.totalorder %v365, %v227
        %vm430 = vcmp.eq.s32.totalorder %v366, %v227
        %vm431 = vcmp.eq.s32.totalorder %v367, %v227
        %vm432 = vcmp.eq.s32.totalorder %v368, %v227
        %vm433 = vcmp.eq.s32.totalorder %v369, %v227
        %vm434 = vcmp.eq.s32.totalorder %v370, %v227
        %vm435 = vcmp.eq.s32.totalorder %v371, %v227
        %vm436 = vcmp.eq.s32.totalorder %v372, %v227
        %vm437 = vcmp.eq.s32.totalorder %v373, %v227
        %vm438 = vcmp.eq.s32.totalorder %v374, %v227
        %vm439 = vcmp.eq.s32.totalorder %v375, %v227
        %vm440 = vcmp.eq.s32.totalorder %v376, %v227
        %vm441 = vcmp.eq.s32.totalorder %v377, %v227
        %vm442 = vcmp.eq.s32.totalorder %v378, %v227
        %vm443 = vcmp.eq.s32.totalorder %v379, %v227
        %vm444 = vcmp.eq.s32.totalorder %v380, %v227
        %vm445 = vcmp.eq.s32.totalorder %v381, %v227
        %vm446 = vcmp.eq.s32.totalorder %v382, %v227
        %vm447 = vcmp.eq.s32.totalorder %v383, %v227
        %vm448 = vcmp.eq.s32.totalorder %v384, %v227
        %vm449 = vcmp.eq.s32.totalorder %v385, %v227
        %vm450 = vcmp.eq.s32.totalorder %v386, %v227
        %vm451 = vcmp.eq.s32.totalorder %v387, %v227
        %vm452 = vcmp.eq.s32.totalorder %v388, %v227
        %vm453 = vcmp.eq.s32.totalorder %v389, %v227
        %vm454 = vcmp.eq.s32.totalorder %v390, %v227
        %vm455 = vcmp.eq.s32.totalorder %v391, %v227
        %vm456 = vcmp.eq.s32.totalorder %v392, %v227
        %vm457 = vcmp.eq.s32.totalorder %v393, %v227
        %vm458 = vcmp.eq.s32.totalorder %v394, %v227
        %vm459 = vcmp.eq.s32.totalorder %v395, %v227
        %vm460 = vcmp.eq.s32.totalorder %v396, %v227
        %vm461 = vcmp.eq.s32.totalorder %v397, %v227
        %vm462 = vcmp.eq.s32.totalorder %v398, %v227
        %v463 = vsel %vm399, 1, 0
        %v464 = vsel %vm400, 1, 0
        %v465 = vsel %vm401, 1, 0
        %v466 = vsel %vm402, 1, 0
        %v467 = vsel %vm403, 1, 0
        %v468 = vsel %vm404, 1, 0
        %v469 = vsel %vm405, 1, 0
        %v470 = vsel %vm406, 1, 0
        %v471 = vsel %vm407, 1, 0
        %v472 = vsel %vm408, 1, 0
        %v473 = vsel %vm409, 1, 0
        %v474 = vsel %vm410, 1, 0
        %v475 = vsel %vm411, 1, 0
        %v476 = vsel %vm412, 1, 0
        %v477 = vsel %vm413, 1, 0
        %v478 = vsel %vm414, 1, 0
        %v479 = vsel %vm415, 1, 0
        %v480 = vsel %vm416, 1, 0
        %v481 = vsel %vm417, 1, 0
        %v482 = vsel %vm418, 1, 0
        %v483 = vsel %vm419, 1, 0
        %v484 = vsel %vm420, 1, 0
        %v485 = vsel %vm421, 1, 0
        %v486 = vsel %vm422, 1, 0
        %v487 = vsel %vm423, 1, 0
        %v488 = vsel %vm424, 1, 0
        %v489 = vsel %vm425, 1, 0
        %v490 = vsel %vm426, 1, 0
        %v491 = vsel %vm427, 1, 0
        %v492 = vsel %vm428, 1, 0
        %v493 = vsel %vm429, 1, 0
        %v494 = vsel %vm430, 1, 0
        %v495 = vsel %vm431, 1, 0
        %v496 = vsel %vm432, 1, 0
        %v497 = vsel %vm433, 1, 0
        %v498 = vsel %vm434, 1, 0
        %v499 = vsel %vm435, 1, 0
        %v500 = vsel %vm436, 1, 0
        %v501 = vsel %vm437, 1, 0
        %v502 = vsel %vm438, 1, 0
        %v503 = vsel %vm439, 1, 0
        %v504 = vsel %vm440, 1, 0
        %v505 = vsel %vm441, 1, 0
        %v506 = vsel %vm442, 1, 0
        %v507 = vsel %vm443, 1, 0
        %v508 = vsel %vm444, 1, 0
        %v509 = vsel %vm445, 1, 0
        %v510 = vsel %vm446, 1, 0
        %v511 = vsel %vm447, 1, 0
        %v512 = vsel %vm448, 1, 0
        %v513 = vsel %vm449, 1, 0
        %v514 = vsel %vm450, 1, 0
        %v515 = vsel %vm451, 1, 0
        %v516 = vsel %vm452, 1, 0
        %v517 = vsel %vm453, 1, 0
        %v518 = vsel %vm454, 1, 0
        %v519 = vsel %vm455, 1, 0
        %v520 = vsel %vm456, 1, 0
        %v521 = vsel %vm457, 1, 0
        %v522 = vsel %vm458, 1, 0
        %v523 = vsel %vm459, 1, 0
        %v524 = vsel %vm460, 1, 0
        %v525 = vsel %vm461, 1, 0
        %v526 = vsel %vm462, 1, 0
        %v527 = vcvt.s32.f32 %v463
        %v528 = vcvt.s32.f32 %v464
        %v529 = vcvt.s32.f32 %v465
        %v530 = vcvt.s32.f32 %v466
        %v531 = vcvt.s32.f32 %v467
        %v532 = vcvt.s32.f32 %v468
        %v533 = vcvt.s32.f32 %v469
        %v534 = vcvt.s32.f32 %v470
        %v535 = vcvt.s32.f32 %v471
        %v536 = vcvt.s32.f32 %v472
        %v537 = vcvt.s32.f32 %v473
        %v538 = vcvt.s32.f32 %v474
        %v539 = vcvt.s32.f32 %v475
        %v540 = vcvt.s32.f32 %v476
        %v541 = vcvt.s32.f32 %v477
        %v542 = vcvt.s32.f32 %v478
        %v543 = vcvt.s32.f32 %v479
        %v544 = vcvt.s32.f32 %v480
        %v545 = vcvt.s32.f32 %v481
        %v546 = vcvt.s32.f32 %v482
        %v547 = vcvt.s32.f32 %v483
        %v548 = vcvt.s32.f32 %v484
        %v549 = vcvt.s32.f32 %v485
        %v550 = vcvt.s32.f32 %v486
        %v551 = vcvt.s32.f32 %v487
        %v552 = vcvt.s32.f32 %v488
        %v553 = vcvt.s32.f32 %v489
        %v554 = vcvt.s32.f32 %v490
        %v555 = vcvt.s32.f32 %v491
        %v556 = vcvt.s32.f32 %v492
        %v557 = vcvt.s32.f32 %v493
        %v558 = vcvt.s32.f32 %v494
        %v559 = vcvt.s32.f32 %v495
        %v560 = vcvt.s32.f32 %v496
        %v561 = vcvt.s32.f32 %v497
        %v562 = vcvt.s32.f32 %v498
        %v563 = vcvt.s32.f32 %v499
        %v564 = vcvt.s32.f32 %v500
        %v565 = vcvt.s32.f32 %v501
        %v566 = vcvt.s32.f32 %v502
        %v567 = vcvt.s32.f32 %v503
        %v568 = vcvt.s32.f32 %v504
        %v569 = vcvt.s32.f32 %v505
        %v570 = vcvt.s32.f32 %v506
        %v571 = vcvt.s32.f32 %v507
        %v572 = vcvt.s32.f32 %v508
        %v573 = vcvt.s32.f32 %v509
        %v574 = vcvt.s32.f32 %v510
        %v575 = vcvt.s32.f32 %v511
        %v576 = vcvt.s32.f32 %v512
        %v577 = vcvt.s32.f32 %v513
        %v578 = vcvt.s32.f32 %v514
        %v579 = vcvt.s32.f32 %v515
        %v580 = vcvt.s32.f32 %v516
        %v581 = vcvt.s32.f32 %v517
        %v582 = vcvt.s32.f32 %v518
        %v583 = vcvt.s32.f32 %v519
        %v584 = vcvt.s32.f32 %v520
        %v585 = vcvt.s32.f32 %v521
        %v586 = vcvt.s32.f32 %v522
        %v587 = vcvt.s32.f32 %v523
        %v588 = vcvt.s32.f32 %v524
        %v589 = vcvt.s32.f32 %v525
        %v590 = vcvt.s32.f32 %v526
        %v591 = vsub.f32 %v527, %v271
        %v592 = vsub.f32 %v528, %v272
        %v593 = vsub.f32 %v529, %v273
        %v594 = vsub.f32 %v530, %v274
        %v595 = vsub.f32 %v531, %v275
        %v596 = vsub.f32 %v532, %v276
        %v597 = vsub.f32 %v533, %v277
        %v598 = vsub.f32 %v534, %v278
        %v599 = vsub.f32 %v535, %v279
        %v600 = vsub.f32 %v536, %v280
        %v601 = vsub.f32 %v537, %v281
        %v602 = vsub.f32 %v538, %v282
        %v603 = vsub.f32 %v539, %v283
        %v604 = vsub.f32 %v540, %v284
        %v605 = vsub.f32 %v541, %v285
        %v606 = vsub.f32 %v542, %v286
        %v607 = vsub.f32 %v543, %v287
        %v608 = vsub.f32 %v544, %v288
        %v609 = vsub.f32 %v545, %v289
        %v610 = vsub.f32 %v546, %v290
        %v611 = vsub.f32 %v547, %v291
        %v612 = vsub.f32 %v548, %v292
        %v613 = vsub.f32 %v549, %v293
        %v614 = vsub.f32 %v550, %v294
        %v615 = vsub.f32 %v551, %v295
        %v616 = vsub.f32 %v552, %v296
        %v617 = vsub.f32 %v553, %v297
        %v618 = vsub.f32 %v554, %v298
        %v619 = vsub.f32 %v555, %v299
        %v620 = vsub.f32 %v556, %v300
        %v621 = vsub.f32 %v557, %v301
        %v622 = vsub.f32 %v558, %v302
        %v623 = vsub.f32 %v559, %v303
        %v624 = vsub.f32 %v560, %v304
        %v625 = vsub.f32 %v561, %v305
        %v626 = vsub.f32 %v562, %v306
        %v627 = vsub.f32 %v563, %v307
        %v628 = vsub.f32 %v564, %v308
        %v629 = vsub.f32 %v565, %v309
        %v630 = vsub.f32 %v566, %v310
        %v631 = vsub.f32 %v567, %v311
        %v632 = vsub.f32 %v568, %v312
        %v633 = vsub.f32 %v569, %v313
        %v634 = vsub.f32 %v570, %v314
        %v635 = vsub.f32 %v571, %v315
        %v636 = vsub.f32 %v572, %v316
        %v637 = vsub.f32 %v573, %v317
        %v638 = vsub.f32 %v574, %v318
        %v639 = vsub.f32 %v575, %v319
        %v640 = vsub.f32 %v576, %v320
        %v641 = vsub.f32 %v577, %v321
        %v642 = vsub.f32 %v578, %v322
        %v643 = vsub.f32 %v579, %v323
        %v644 = vsub.f32 %v580, %v324
        %v645 = vsub.f32 %v581, %v325
        %v646 = vsub.f32 %v582, %v326
        %v647 = vsub.f32 %v583, %v327
        %v648 = vsub.f32 %v584, %v328
        %v649 = vsub.f32 %v585, %v329
        %v650 = vsub.f32 %v586, %v330
        %v651 = vsub.f32 %v587, %v331
        %v652 = vsub.f32 %v588, %v332
        %v653 = vsub.f32 %v589, %v333
        %v654 = vsub.f32 %v590, %v334
        %v655 = vand.u32 2147483647, %v591
        %v656 = vand.u32 2147483647, %v592
        %v657 = vand.u32 2147483647, %v593
        %v658 = vand.u32 2147483647, %v594
        %v659 = vand.u32 2147483647, %v595
        %v660 = vand.u32 2147483647, %v596
        %v661 = vand.u32 2147483647, %v597
        %v662 = vand.u32 2147483647, %v598
        %v663 = vand.u32 2147483647, %v599
        %v664 = vand.u32 2147483647, %v600
        %v665 = vand.u32 2147483647, %v601
        %v666 = vand.u32 2147483647, %v602
        %v667 = vand.u32 2147483647, %v603
        %v668 = vand.u32 2147483647, %v604
        %v669 = vand.u32 2147483647, %v605
        %v670 = vand.u32 2147483647, %v606
        %v671 = vand.u32 2147483647, %v607
        %v672 = vand.u32 2147483647, %v608
        %v673 = vand.u32 2147483647, %v609
        %v674 = vand.u32 2147483647, %v610
        %v675 = vand.u32 2147483647, %v611
        %v676 = vand.u32 2147483647, %v612
        %v677 = vand.u32 2147483647, %v613
        %v678 = vand.u32 2147483647, %v614
        %v679 = vand.u32 2147483647, %v615
        %v680 = vand.u32 2147483647, %v616
        %v681 = vand.u32 2147483647, %v617
        %v682 = vand.u32 2147483647, %v618
        %v683 = vand.u32 2147483647, %v619
        %v684 = vand.u32 2147483647, %v620
        %v685 = vand.u32 2147483647, %v621
        %v686 = vand.u32 2147483647, %v622
        %v687 = vand.u32 2147483647, %v623
        %v688 = vand.u32 2147483647, %v624
        %v689 = vand.u32 2147483647, %v625
        %v690 = vand.u32 2147483647, %v626
        %v691 = vand.u32 2147483647, %v627
        %v692 = vand.u32 2147483647, %v628
        %v693 = vand.u32 2147483647, %v629
        %v694 = vand.u32 2147483647, %v630
        %v695 = vand.u32 2147483647, %v631
        %v696 = vand.u32 2147483647, %v632
        %v697 = vand.u32 2147483647, %v633
        %v698 = vand.u32 2147483647, %v634
        %v699 = vand.u32 2147483647, %v635
        %v700 = vand.u32 2147483647, %v636
        %v701 = vand.u32 2147483647, %v637
        %v702 = vand.u32 2147483647, %v638
        %v703 = vand.u32 2147483647, %v639
        %v704 = vand.u32 2147483647, %v640
        %v705 = vand.u32 2147483647, %v641
        %v706 = vand.u32 2147483647, %v642
        %v707 = vand.u32 2147483647, %v643
        %v708 = vand.u32 2147483647, %v644
        %v709 = vand.u32 2147483647, %v645
        %v710 = vand.u32 2147483647, %v646
        %v711 = vand.u32 2147483647, %v647
        %v712 = vand.u32 2147483647, %v648
        %v713 = vand.u32 2147483647, %v649
        %v714 = vand.u32 2147483647, %v650
        %v715 = vand.u32 2147483647, %v651
        %v716 = vand.u32 2147483647, %v652
        %v717 = vand.u32 2147483647, %v653
        %v718 = vand.u32 2147483647, %v654
        %v719 = vlaneseq
        %v720 = vshrl.u32 %v719, 7
        %v721 = vadd.s32 %v720, 8
        %v722 = vadd.s32 %v720, 16
        %v723 = vadd.s32 %v720, 24
        %v724 = vadd.s32 %v720, 32
        %v725 = vadd.s32 %v720, 40
        %v726 = vadd.s32 %v720, 48
        %v727 = vadd.s32 %v720, 56
        %v728 = vadd.s32 %v720, 64
        %v729 = vadd.s32 %v720, 72
        %v730 = vadd.s32 %v720, 80
        %v731 = vadd.s32 %v720, 88
        %v732 = vadd.s32 %v720, 96
        %v733 = vadd.s32 %v720, 104
        %v734 = vadd.s32 %v720, 112
        %v735 = vadd.s32 %v720, 120
        %v736 = vadd.s32 %v720, 128
        %v737 = vadd.s32 %v720, 136
        %v738 = vadd.s32 %v720, 144
        %v739 = vadd.s32 %v720, 152
        %v740 = vadd.s32 %v720, 160
        %v741 = vadd.s32 %v720, 168
        %v742 = vadd.s32 %v720, 176
        %v743 = vadd.s32 %v720, 184
        %v744 = vadd.s32 %v720, 192
        %v745 = vadd.s32 %v720, 200
        %v746 = vadd.s32 %v720, 208
        %v747 = vadd.s32 %v720, 216
        %v748 = vadd.s32 %v720, 224
        %v749 = vadd.s32 %v720, 232
        %v750 = vadd.s32 %v720, 240
        %v751 = vadd.s32 %v720, 248
        %v752 = vadd.s32 %v720, 256
        %v753 = vadd.s32 %v720, 264
        %v754 = vadd.s32 %v720, 272
        %v755 = vadd.s32 %v720, 280
        %v756 = vadd.s32 %v720, 288
        %v757 = vadd.s32 %v720, 296
        %v758 = vadd.s32 %v720, 304
        %v759 = vadd.s32 %v720, 312
        %v760 = vadd.s32 %v720, 320
        %v761 = vadd.s32 %v720, 328
        %v762 = vadd.s32 %v720, 336
        %v763 = vadd.s32 %v720, 344
        %v764 = vadd.s32 %v720, 352
        %v765 = vadd.s32 %v720, 360
        %v766 = vadd.s32 %v720, 368
        %v767 = vadd.s32 %v720, 376
        %v768 = vadd.s32 %v720, 384
        %v769 = vadd.s32 %v720, 392
        %v770 = vadd.s32 %v720, 400
        %v771 = vadd.s32 %v720, 408
        %v772 = vadd.s32 %v720, 416
        %v773 = vadd.s32 %v720, 424
        %v774 = vadd.s32 %v720, 432
        %v775 = vadd.s32 %v720, 440
        %v776 = vadd.s32 %v720, 448
        %v777 = vadd.s32 %v720, 456
        %v778 = vadd.s32 %v720, 464
        %v779 = vadd.s32 %v720, 472
        %v780 = vadd.s32 %v720, 480
        %v781 = vadd.s32 %v720, 488
        %v782 = vadd.s32 %v720, 496
        %v783 = vadd.s32 %v720, 504
        %v784 = vlaneseq
        %v785 = vand.u32 %v784, 127
        %v786 = vadd.s32 %v785, 128
        %v787 = vadd.s32 %v785, 256
        %v788 = vadd.s32 %v785, 384
        %790 = vset.pattern.permute.xlu0 0
        %791 = vperm.xlu0 %790, %v655
        %v792 = vpop.permute.xlu0 %791
        %795 = vset.pattern.permute.xlu0 0
        %796 = vperm.xlu0 %795, %v656
        %v797 = vpop.permute.xlu0 %796
        %800 = vset.pattern.permute.xlu0 0
        %801 = vperm.xlu0 %800, %v657
        %v802 = vpop.permute.xlu0 %801
        %805 = vset.pattern.permute.xlu0 0
        %806 = vperm.xlu0 %805, %v658
        %v807 = vpop.permute.xlu0 %806
        %810 = vset.pattern.permute.xlu0 0
        %811 = vperm.xlu0 %810, %v659
        %v812 = vpop.permute.xlu0 %811
        %815 = vset.pattern.permute.xlu0 0
        %816 = vperm.xlu0 %815, %v660
        %v817 = vpop.permute.xlu0 %816
        %820 = vset.pattern.permute.xlu0 0
        %821 = vperm.xlu0 %820, %v661
        %v822 = vpop.permute.xlu0 %821
        %825 = vset.pattern.permute.xlu0 0
        %826 = vperm.xlu0 %825, %v662
        %v827 = vpop.permute.xlu0 %826
        %830 = vset.pattern.permute.xlu0 0
        %831 = vperm.xlu0 %830, %v663
        %v832 = vpop.permute.xlu0 %831
        %835 = vset.pattern.permute.xlu0 0
        %836 = vperm.xlu0 %835, %v664
        %v837 = vpop.permute.xlu0 %836
        %840 = vset.pattern.permute.xlu0 0
        %841 = vperm.xlu0 %840, %v665
        %v842 = vpop.permute.xlu0 %841
        %845 = vset.pattern.permute.xlu0 0
        %846 = vperm.xlu0 %845, %v666
        %v847 = vpop.permute.xlu0 %846
        %850 = vset.pattern.permute.xlu0 0
        %851 = vperm.xlu0 %850, %v667
        %v852 = vpop.permute.xlu0 %851
        %855 = vset.pattern.permute.xlu0 0
        %856 = vperm.xlu0 %855, %v668
        %v857 = vpop.permute.xlu0 %856
        %860 = vset.pattern.permute.xlu0 0
        %861 = vperm.xlu0 %860, %v669
        %v862 = vpop.permute.xlu0 %861
        %865 = vset.pattern.permute.xlu0 0
        %866 = vperm.xlu0 %865, %v670
        %v867 = vpop.permute.xlu0 %866
        %870 = vset.pattern.permute.xlu0 0
        %871 = vperm.xlu0 %870, %v671
        %v872 = vpop.permute.xlu0 %871
        %875 = vset.pattern.permute.xlu0 0
        %876 = vperm.xlu0 %875, %v672
        %v877 = vpop.permute.xlu0 %876
        %880 = vset.pattern.permute.xlu0 0
        %881 = vperm.xlu0 %880, %v673
        %v882 = vpop.permute.xlu0 %881
        %885 = vset.pattern.permute.xlu0 0
        %886 = vperm.xlu0 %885, %v674
        %v887 = vpop.permute.xlu0 %886
        %890 = vset.pattern.permute.xlu0 0
        %891 = vperm.xlu0 %890, %v675
        %v892 = vpop.permute.xlu0 %891
        %895 = vset.pattern.permute.xlu0 0
        %896 = vperm.xlu0 %895, %v676
        %v897 = vpop.permute.xlu0 %896
        %900 = vset.pattern.permute.xlu0 0
        %901 = vperm.xlu0 %900, %v677
        %v902 = vpop.permute.xlu0 %901
        %905 = vset.pattern.permute.xlu0 0
        %906 = vperm.xlu0 %905, %v678
        %v907 = vpop.permute.xlu0 %906
        %910 = vset.pattern.permute.xlu0 0
        %911 = vperm.xlu0 %910, %v679
        %v912 = vpop.permute.xlu0 %911
        %915 = vset.pattern.permute.xlu0 0
        %916 = vperm.xlu0 %915, %v680
        %v917 = vpop.permute.xlu0 %916
        %920 = vset.pattern.permute.xlu0 0
        %921 = vperm.xlu0 %920, %v681
        %v922 = vpop.permute.xlu0 %921
        %925 = vset.pattern.permute.xlu0 0
        %926 = vperm.xlu0 %925, %v682
        %v927 = vpop.permute.xlu0 %926
        %930 = vset.pattern.permute.xlu0 0
        %931 = vperm.xlu0 %930, %v683
        %v932 = vpop.permute.xlu0 %931
        %935 = vset.pattern.permute.xlu0 0
        %936 = vperm.xlu0 %935, %v684
        %v937 = vpop.permute.xlu0 %936
        %940 = vset.pattern.permute.xlu0 0
        %941 = vperm.xlu0 %940, %v685
        %v942 = vpop.permute.xlu0 %941
        %945 = vset.pattern.permute.xlu0 0
        %946 = vperm.xlu0 %945, %v686
        %v947 = vpop.permute.xlu0 %946
        %950 = vset.pattern.permute.xlu0 0
        %951 = vperm.xlu0 %950, %v687
        %v952 = vpop.permute.xlu0 %951
        %955 = vset.pattern.permute.xlu0 0
        %956 = vperm.xlu0 %955, %v688
        %v957 = vpop.permute.xlu0 %956
        %960 = vset.pattern.permute.xlu0 0
        %961 = vperm.xlu0 %960, %v689
        %v962 = vpop.permute.xlu0 %961
        %965 = vset.pattern.permute.xlu0 0
        %966 = vperm.xlu0 %965, %v690
        %v967 = vpop.permute.xlu0 %966
        %970 = vset.pattern.permute.xlu0 0
        %971 = vperm.xlu0 %970, %v691
        %v972 = vpop.permute.xlu0 %971
        %975 = vset.pattern.permute.xlu0 0
        %976 = vperm.xlu0 %975, %v692
        %v977 = vpop.permute.xlu0 %976
        %980 = vset.pattern.permute.xlu0 0
        %981 = vperm.xlu0 %980, %v693
        %v982 = vpop.permute.xlu0 %981
        %985 = vset.pattern.permute.xlu0 0
        %986 = vperm.xlu0 %985, %v694
        %v987 = vpop.permute.xlu0 %986
        %990 = vset.pattern.permute.xlu0 0
        %991 = vperm.xlu0 %990, %v695
        %v992 = vpop.permute.xlu0 %991
        %995 = vset.pattern.permute.xlu0 0
        %996 = vperm.xlu0 %995, %v696
        %v997 = vpop.permute.xlu0 %996
        %1000 = vset.pattern.permute.xlu0 0
        %1001 = vperm.xlu0 %1000, %v697
        %v1002 = vpop.permute.xlu0 %1001
        %1005 = vset.pattern.permute.xlu0 0
        %1006 = vperm.xlu0 %1005, %v698
        %v1007 = vpop.permute.xlu0 %1006
        %1010 = vset.pattern.permute.xlu0 0
        %1011 = vperm.xlu0 %1010, %v699
        %v1012 = vpop.permute.xlu0 %1011
        %1015 = vset.pattern.permute.xlu0 0
        %1016 = vperm.xlu0 %1015, %v700
        %v1017 = vpop.permute.xlu0 %1016
        %1020 = vset.pattern.permute.xlu0 0
        %1021 = vperm.xlu0 %1020, %v701
        %v1022 = vpop.permute.xlu0 %1021
        %1025 = vset.pattern.permute.xlu0 0
        %1026 = vperm.xlu0 %1025, %v702
        %v1027 = vpop.permute.xlu0 %1026
        %1030 = vset.pattern.permute.xlu0 0
        %1031 = vperm.xlu0 %1030, %v703
        %v1032 = vpop.permute.xlu0 %1031
        %1035 = vset.pattern.permute.xlu0 0
        %1036 = vperm.xlu0 %1035, %v704
        %v1037 = vpop.permute.xlu0 %1036
        %1040 = vset.pattern.permute.xlu0 0
        %1041 = vperm.xlu0 %1040, %v705
        %v1042 = vpop.permute.xlu0 %1041
        %1045 = vset.pattern.permute.xlu0 0
        %1046 = vperm.xlu0 %1045, %v706
        %v1047 = vpop.permute.xlu0 %1046
        %1050 = vset.pattern.permute.xlu0 0
        %1051 = vperm.xlu0 %1050, %v707
        %v1052 = vpop.permute.xlu0 %1051
        %1055 = vset.pattern.permute.xlu0 0
        %1056 = vperm.xlu0 %1055, %v708
        %v1057 = vpop.permute.xlu0 %1056
        %1060 = vset.pattern.permute.xlu0 0
        %1061 = vperm.xlu0 %1060, %v709
        %v1062 = vpop.permute.xlu0 %1061
        %1065 = vset.pattern.permute.xlu0 0
        %1066 = vperm.xlu0 %1065, %v710
        %v1067 = vpop.permute.xlu0 %1066
        %1070 = vset.pattern.permute.xlu0 0
        %1071 = vperm.xlu0 %1070, %v711
        %v1072 = vpop.permute.xlu0 %1071
        %1075 = vset.pattern.permute.xlu0 0
        %1076 = vperm.xlu0 %1075, %v712
        %v1077 = vpop.permute.xlu0 %1076
        %1080 = vset.pattern.permute.xlu0 0
        %1081 = vperm.xlu0 %1080, %v713
        %v1082 = vpop.permute.xlu0 %1081
        %1085 = vset.pattern.permute.xlu0 0
        %1086 = vperm.xlu0 %1085, %v714
        %v1087 = vpop.permute.xlu0 %1086
        %1090 = vset.pattern.permute.xlu0 0
        %1091 = vperm.xlu0 %1090, %v715
        %v1092 = vpop.permute.xlu0 %1091
        %1095 = vset.pattern.permute.xlu0 0
        %1096 = vperm.xlu0 %1095, %v716
        %v1097 = vpop.permute.xlu0 %1096
        %1100 = vset.pattern.permute.xlu0 0
        %1101 = vperm.xlu0 %1100, %v717
        %v1102 = vpop.permute.xlu0 %1101
        %1105 = vset.pattern.permute.xlu0 0
        %1106 = vperm.xlu0 %1105, %v718
        %v1107 = vpop.permute.xlu0 %1106
        %v1110 = vlaneseq
        %v1111 = vshrl.u32 %v1110, 7
        %v1112 = vsub.s32 0, %v1111
        %v1113 = vrot.slane %v232, %v1112
        %v1114 = vlaneseq
        %v1115 = vshrl.u32 %v1114, 7
        %v1116 = vsub.s32 1, %v1115
        %v1117 = vrot.slane %v232, %v1116
        %v1118 = vlaneseq
        %v1119 = vshrl.u32 %v1118, 7
        %v1120 = vsub.s32 2, %v1119
        %v1121 = vrot.slane %v232, %v1120
        %v1122 = vlaneseq
        %v1123 = vshrl.u32 %v1122, 7
        %v1124 = vsub.s32 3, %v1123
        %v1125 = vrot.slane %v232, %v1124
        %vm1130 = vcmp.gt.f32.partialorder %v792, %v1113
        %vm1131 = vcmp.gt.f32.partialorder %v792, %v1117
        %vm1132 = vcmp.gt.f32.partialorder %v792, %v1121
        %vm1133 = vcmp.gt.f32.partialorder %v792, %v1125
        %vm1134 = vcmp.gt.f32.partialorder %v797, %v1113
        %vm1135 = vcmp.gt.f32.partialorder %v797, %v1117
        %vm1136 = vcmp.gt.f32.partialorder %v797, %v1121
        %vm1137 = vcmp.gt.f32.partialorder %v797, %v1125
        %vm1138 = vcmp.gt.f32.partialorder %v802, %v1113
        %vm1139 = vcmp.gt.f32.partialorder %v802, %v1117
        %vm1140 = vcmp.gt.f32.partialorder %v802, %v1121
        %vm1141 = vcmp.gt.f32.partialorder %v802, %v1125
        %vm1142 = vcmp.gt.f32.partialorder %v807, %v1113
        %vm1143 = vcmp.gt.f32.partialorder %v807, %v1117
        %vm1144 = vcmp.gt.f32.partialorder %v807, %v1121
        %vm1145 = vcmp.gt.f32.partialorder %v807, %v1125
        %vm1146 = vcmp.gt.f32.partialorder %v812, %v1113
        %vm1147 = vcmp.gt.f32.partialorder %v812, %v1117
        %vm1148 = vcmp.gt.f32.partialorder %v812, %v1121
        %vm1149 = vcmp.gt.f32.partialorder %v812, %v1125
        %vm1150 = vcmp.gt.f32.partialorder %v817, %v1113
        %vm1151 = vcmp.gt.f32.partialorder %v817, %v1117
        %vm1152 = vcmp.gt.f32.partialorder %v817, %v1121
        %vm1153 = vcmp.gt.f32.partialorder %v817, %v1125
        %vm1154 = vcmp.gt.f32.partialorder %v822, %v1113
        %vm1155 = vcmp.gt.f32.partialorder %v822, %v1117
        %vm1156 = vcmp.gt.f32.partialorder %v822, %v1121
        %vm1157 = vcmp.gt.f32.partialorder %v822, %v1125
        %vm1158 = vcmp.gt.f32.partialorder %v827, %v1113
        %vm1159 = vcmp.gt.f32.partialorder %v827, %v1117
        %vm1160 = vcmp.gt.f32.partialorder %v827, %v1121
        %vm1161 = vcmp.gt.f32.partialorder %v827, %v1125
        %vm1162 = vcmp.gt.f32.partialorder %v832, %v1113
        %vm1163 = vcmp.gt.f32.partialorder %v832, %v1117
        %vm1164 = vcmp.gt.f32.partialorder %v832, %v1121
        %vm1165 = vcmp.gt.f32.partialorder %v832, %v1125
        %vm1166 = vcmp.gt.f32.partialorder %v837, %v1113
        %vm1167 = vcmp.gt.f32.partialorder %v837, %v1117
        %vm1168 = vcmp.gt.f32.partialorder %v837, %v1121
        %vm1169 = vcmp.gt.f32.partialorder %v837, %v1125
        %vm1170 = vcmp.gt.f32.partialorder %v842, %v1113
        %vm1171 = vcmp.gt.f32.partialorder %v842, %v1117
        %vm1172 = vcmp.gt.f32.partialorder %v842, %v1121
        %vm1173 = vcmp.gt.f32.partialorder %v842, %v1125
        %vm1174 = vcmp.gt.f32.partialorder %v847, %v1113
        %vm1175 = vcmp.gt.f32.partialorder %v847, %v1117
        %vm1176 = vcmp.gt.f32.partialorder %v847, %v1121
        %vm1177 = vcmp.gt.f32.partialorder %v847, %v1125
        %vm1178 = vcmp.gt.f32.partialorder %v852, %v1113
        %vm1179 = vcmp.gt.f32.partialorder %v852, %v1117
        %vm1180 = vcmp.gt.f32.partialorder %v852, %v1121
        %vm1181 = vcmp.gt.f32.partialorder %v852, %v1125
        %vm1182 = vcmp.gt.f32.partialorder %v857, %v1113
        %vm1183 = vcmp.gt.f32.partialorder %v857, %v1117
        %vm1184 = vcmp.gt.f32.partialorder %v857, %v1121
        %vm1185 = vcmp.gt.f32.partialorder %v857, %v1125
        %vm1186 = vcmp.gt.f32.partialorder %v862, %v1113
        %vm1187 = vcmp.gt.f32.partialorder %v862, %v1117
        %vm1188 = vcmp.gt.f32.partialorder %v862, %v1121
        %vm1189 = vcmp.gt.f32.partialorder %v862, %v1125
        %vm1190 = vcmp.gt.f32.partialorder %v867, %v1113
        %vm1191 = vcmp.gt.f32.partialorder %v867, %v1117
        %vm1192 = vcmp.gt.f32.partialorder %v867, %v1121
        %vm1193 = vcmp.gt.f32.partialorder %v867, %v1125
        %vm1194 = vcmp.gt.f32.partialorder %v872, %v1113
        %vm1195 = vcmp.gt.f32.partialorder %v872, %v1117
        %vm1196 = vcmp.gt.f32.partialorder %v872, %v1121
        %vm1197 = vcmp.gt.f32.partialorder %v872, %v1125
        %vm1198 = vcmp.gt.f32.partialorder %v877, %v1113
        %vm1199 = vcmp.gt.f32.partialorder %v877, %v1117
        %vm1200 = vcmp.gt.f32.partialorder %v877, %v1121
        %vm1201 = vcmp.gt.f32.partialorder %v877, %v1125
        %vm1202 = vcmp.gt.f32.partialorder %v882, %v1113
        %vm1203 = vcmp.gt.f32.partialorder %v882, %v1117
        %vm1204 = vcmp.gt.f32.partialorder %v882, %v1121
        %vm1205 = vcmp.gt.f32.partialorder %v882, %v1125
        %vm1206 = vcmp.gt.f32.partialorder %v887, %v1113
        %vm1207 = vcmp.gt.f32.partialorder %v887, %v1117
        %vm1208 = vcmp.gt.f32.partialorder %v887, %v1121
        %vm1209 = vcmp.gt.f32.partialorder %v887, %v1125
        %vm1210 = vcmp.gt.f32.partialorder %v892, %v1113
        %vm1211 = vcmp.gt.f32.partialorder %v892, %v1117
        %vm1212 = vcmp.gt.f32.partialorder %v892, %v1121
        %vm1213 = vcmp.gt.f32.partialorder %v892, %v1125
        %vm1214 = vcmp.gt.f32.partialorder %v897, %v1113
        %vm1215 = vcmp.gt.f32.partialorder %v897, %v1117
        %vm1216 = vcmp.gt.f32.partialorder %v897, %v1121
        %vm1217 = vcmp.gt.f32.partialorder %v897, %v1125
        %vm1218 = vcmp.gt.f32.partialorder %v902, %v1113
        %vm1219 = vcmp.gt.f32.partialorder %v902, %v1117
        %vm1220 = vcmp.gt.f32.partialorder %v902, %v1121
        %vm1221 = vcmp.gt.f32.partialorder %v902, %v1125
        %vm1222 = vcmp.gt.f32.partialorder %v907, %v1113
        %vm1223 = vcmp.gt.f32.partialorder %v907, %v1117
        %vm1224 = vcmp.gt.f32.partialorder %v907, %v1121
        %vm1225 = vcmp.gt.f32.partialorder %v907, %v1125
        %vm1226 = vcmp.gt.f32.partialorder %v912, %v1113
        %vm1227 = vcmp.gt.f32.partialorder %v912, %v1117
        %vm1228 = vcmp.gt.f32.partialorder %v912, %v1121
        %vm1229 = vcmp.gt.f32.partialorder %v912, %v1125
        %vm1230 = vcmp.gt.f32.partialorder %v917, %v1113
        %vm1231 = vcmp.gt.f32.partialorder %v917, %v1117
        %vm1232 = vcmp.gt.f32.partialorder %v917, %v1121
        %vm1233 = vcmp.gt.f32.partialorder %v917, %v1125
        %vm1234 = vcmp.gt.f32.partialorder %v922, %v1113
        %vm1235 = vcmp.gt.f32.partialorder %v922, %v1117
        %vm1236 = vcmp.gt.f32.partialorder %v922, %v1121
        %vm1237 = vcmp.gt.f32.partialorder %v922, %v1125
        %vm1238 = vcmp.gt.f32.partialorder %v927, %v1113
        %vm1239 = vcmp.gt.f32.partialorder %v927, %v1117
        %vm1240 = vcmp.gt.f32.partialorder %v927, %v1121
        %vm1241 = vcmp.gt.f32.partialorder %v927, %v1125
        %vm1242 = vcmp.gt.f32.partialorder %v932, %v1113
        %vm1243 = vcmp.gt.f32.partialorder %v932, %v1117
        %vm1244 = vcmp.gt.f32.partialorder %v932, %v1121
        %vm1245 = vcmp.gt.f32.partialorder %v932, %v1125
        %vm1246 = vcmp.gt.f32.partialorder %v937, %v1113
        %vm1247 = vcmp.gt.f32.partialorder %v937, %v1117
        %vm1248 = vcmp.gt.f32.partialorder %v937, %v1121
        %vm1249 = vcmp.gt.f32.partialorder %v937, %v1125
        %vm1250 = vcmp.gt.f32.partialorder %v942, %v1113
        %vm1251 = vcmp.gt.f32.partialorder %v942, %v1117
        %vm1252 = vcmp.gt.f32.partialorder %v942, %v1121
        %vm1253 = vcmp.gt.f32.partialorder %v942, %v1125
        %vm1254 = vcmp.gt.f32.partialorder %v947, %v1113
        %vm1255 = vcmp.gt.f32.partialorder %v947, %v1117
        %vm1256 = vcmp.gt.f32.partialorder %v947, %v1121
        %vm1257 = vcmp.gt.f32.partialorder %v947, %v1125
        %vm1258 = vcmp.gt.f32.partialorder %v952, %v1113
        %vm1259 = vcmp.gt.f32.partialorder %v952, %v1117
        %vm1260 = vcmp.gt.f32.partialorder %v952, %v1121
        %vm1261 = vcmp.gt.f32.partialorder %v952, %v1125
        %vm1262 = vcmp.gt.f32.partialorder %v957, %v1113
        %vm1263 = vcmp.gt.f32.partialorder %v957, %v1117
        %vm1264 = vcmp.gt.f32.partialorder %v957, %v1121
        %vm1265 = vcmp.gt.f32.partialorder %v957, %v1125
        %vm1266 = vcmp.gt.f32.partialorder %v962, %v1113
        %vm1267 = vcmp.gt.f32.partialorder %v962, %v1117
        %vm1268 = vcmp.gt.f32.partialorder %v962, %v1121
        %vm1269 = vcmp.gt.f32.partialorder %v962, %v1125
        %vm1270 = vcmp.gt.f32.partialorder %v967, %v1113
        %vm1271 = vcmp.gt.f32.partialorder %v967, %v1117
        %vm1272 = vcmp.gt.f32.partialorder %v967, %v1121
        %vm1273 = vcmp.gt.f32.partialorder %v967, %v1125
        %vm1274 = vcmp.gt.f32.partialorder %v972, %v1113
        %vm1275 = vcmp.gt.f32.partialorder %v972, %v1117
        %vm1276 = vcmp.gt.f32.partialorder %v972, %v1121
        %vm1277 = vcmp.gt.f32.partialorder %v972, %v1125
        %vm1278 = vcmp.gt.f32.partialorder %v977, %v1113
        %vm1279 = vcmp.gt.f32.partialorder %v977, %v1117
        %vm1280 = vcmp.gt.f32.partialorder %v977, %v1121
        %vm1281 = vcmp.gt.f32.partialorder %v977, %v1125
        %vm1282 = vcmp.gt.f32.partialorder %v982, %v1113
        %vm1283 = vcmp.gt.f32.partialorder %v982, %v1117
        %vm1284 = vcmp.gt.f32.partialorder %v982, %v1121
        %vm1285 = vcmp.gt.f32.partialorder %v982, %v1125
        %vm1286 = vcmp.gt.f32.partialorder %v987, %v1113
        %vm1287 = vcmp.gt.f32.partialorder %v987, %v1117
        %vm1288 = vcmp.gt.f32.partialorder %v987, %v1121
        %vm1289 = vcmp.gt.f32.partialorder %v987, %v1125
        %vm1290 = vcmp.gt.f32.partialorder %v992, %v1113
        %vm1291 = vcmp.gt.f32.partialorder %v992, %v1117
        %vm1292 = vcmp.gt.f32.partialorder %v992, %v1121
        %vm1293 = vcmp.gt.f32.partialorder %v992, %v1125
        %vm1294 = vcmp.gt.f32.partialorder %v997, %v1113
        %vm1295 = vcmp.gt.f32.partialorder %v997, %v1117
        %vm1296 = vcmp.gt.f32.partialorder %v997, %v1121
        %vm1297 = vcmp.gt.f32.partialorder %v997, %v1125
        %vm1298 = vcmp.gt.f32.partialorder %v1002, %v1113
        %vm1299 = vcmp.gt.f32.partialorder %v1002, %v1117
        %vm1300 = vcmp.gt.f32.partialorder %v1002, %v1121
        %vm1301 = vcmp.gt.f32.partialorder %v1002, %v1125
        %vm1302 = vcmp.gt.f32.partialorder %v1007, %v1113
        %vm1303 = vcmp.gt.f32.partialorder %v1007, %v1117
        %vm1304 = vcmp.gt.f32.partialorder %v1007, %v1121
        %vm1305 = vcmp.gt.f32.partialorder %v1007, %v1125
        %vm1306 = vcmp.gt.f32.partialorder %v1012, %v1113
        %vm1307 = vcmp.gt.f32.partialorder %v1012, %v1117
        %vm1308 = vcmp.gt.f32.partialorder %v1012, %v1121
        %vm1309 = vcmp.gt.f32.partialorder %v1012, %v1125
        %vm1310 = vcmp.gt.f32.partialorder %v1017, %v1113
        %vm1311 = vcmp.gt.f32.partialorder %v1017, %v1117
        %vm1312 = vcmp.gt.f32.partialorder %v1017, %v1121
        %vm1313 = vcmp.gt.f32.partialorder %v1017, %v1125
        %vm1314 = vcmp.gt.f32.partialorder %v1022, %v1113
        %vm1315 = vcmp.gt.f32.partialorder %v1022, %v1117
        %vm1316 = vcmp.gt.f32.partialorder %v1022, %v1121
        %vm1317 = vcmp.gt.f32.partialorder %v1022, %v1125
        %vm1318 = vcmp.gt.f32.partialorder %v1027, %v1113
        %vm1319 = vcmp.gt.f32.partialorder %v1027, %v1117
        %vm1320 = vcmp.gt.f32.partialorder %v1027, %v1121
        %vm1321 = vcmp.gt.f32.partialorder %v1027, %v1125
        %vm1322 = vcmp.gt.f32.partialorder %v1032, %v1113
        %vm1323 = vcmp.gt.f32.partialorder %v1032, %v1117
        %vm1324 = vcmp.gt.f32.partialorder %v1032, %v1121
        %vm1325 = vcmp.gt.f32.partialorder %v1032, %v1125
        %vm1326 = vcmp.gt.f32.partialorder %v1037, %v1113
        %vm1327 = vcmp.gt.f32.partialorder %v1037, %v1117
        %vm1328 = vcmp.gt.f32.partialorder %v1037, %v1121
        %vm1329 = vcmp.gt.f32.partialorder %v1037, %v1125
        %vm1330 = vcmp.gt.f32.partialorder %v1042, %v1113
        %vm1331 = vcmp.gt.f32.partialorder %v1042, %v1117
        %vm1332 = vcmp.gt.f32.partialorder %v1042, %v1121
        %vm1333 = vcmp.gt.f32.partialorder %v1042, %v1125
        %vm1334 = vcmp.gt.f32.partialorder %v1047, %v1113
        %vm1335 = vcmp.gt.f32.partialorder %v1047, %v1117
        %vm1336 = vcmp.gt.f32.partialorder %v1047, %v1121
        %vm1337 = vcmp.gt.f32.partialorder %v1047, %v1125
        %vm1338 = vcmp.gt.f32.partialorder %v1052, %v1113
        %vm1339 = vcmp.gt.f32.partialorder %v1052, %v1117
        %vm1340 = vcmp.gt.f32.partialorder %v1052, %v1121
        %vm1341 = vcmp.gt.f32.partialorder %v1052, %v1125
        %vm1342 = vcmp.gt.f32.partialorder %v1057, %v1113
        %vm1343 = vcmp.gt.f32.partialorder %v1057, %v1117
        %vm1344 = vcmp.gt.f32.partialorder %v1057, %v1121
        %vm1345 = vcmp.gt.f32.partialorder %v1057, %v1125
        %vm1346 = vcmp.gt.f32.partialorder %v1062, %v1113
        %vm1347 = vcmp.gt.f32.partialorder %v1062, %v1117
        %vm1348 = vcmp.gt.f32.partialorder %v1062, %v1121
        %vm1349 = vcmp.gt.f32.partialorder %v1062, %v1125
        %vm1350 = vcmp.gt.f32.partialorder %v1067, %v1113
        %vm1351 = vcmp.gt.f32.partialorder %v1067, %v1117
        %vm1352 = vcmp.gt.f32.partialorder %v1067, %v1121
        %vm1353 = vcmp.gt.f32.partialorder %v1067, %v1125
        %vm1354 = vcmp.gt.f32.partialorder %v1072, %v1113
        %vm1355 = vcmp.gt.f32.partialorder %v1072, %v1117
        %vm1356 = vcmp.gt.f32.partialorder %v1072, %v1121
        %vm1357 = vcmp.gt.f32.partialorder %v1072, %v1125
        %vm1358 = vcmp.gt.f32.partialorder %v1077, %v1113
        %vm1359 = vcmp.gt.f32.partialorder %v1077, %v1117
        %vm1360 = vcmp.gt.f32.partialorder %v1077, %v1121
        %vm1361 = vcmp.gt.f32.partialorder %v1077, %v1125
        %vm1362 = vcmp.gt.f32.partialorder %v1082, %v1113
        %vm1363 = vcmp.gt.f32.partialorder %v1082, %v1117
        %vm1364 = vcmp.gt.f32.partialorder %v1082, %v1121
        %vm1365 = vcmp.gt.f32.partialorder %v1082, %v1125
        %vm1366 = vcmp.gt.f32.partialorder %v1087, %v1113
        %vm1367 = vcmp.gt.f32.partialorder %v1087, %v1117
        %vm1368 = vcmp.gt.f32.partialorder %v1087, %v1121
        %vm1369 = vcmp.gt.f32.partialorder %v1087, %v1125
        %vm1370 = vcmp.gt.f32.partialorder %v1092, %v1113
        %vm1371 = vcmp.gt.f32.partialorder %v1092, %v1117
        %vm1372 = vcmp.gt.f32.partialorder %v1092, %v1121
        %vm1373 = vcmp.gt.f32.partialorder %v1092, %v1125
        %vm1374 = vcmp.gt.f32.partialorder %v1097, %v1113
        %vm1375 = vcmp.gt.f32.partialorder %v1097, %v1117
        %vm1376 = vcmp.gt.f32.partialorder %v1097, %v1121
        %vm1377 = vcmp.gt.f32.partialorder %v1097, %v1125
        %vm1378 = vcmp.gt.f32.partialorder %v1102, %v1113
        %vm1379 = vcmp.gt.f32.partialorder %v1102, %v1117
        %vm1380 = vcmp.gt.f32.partialorder %v1102, %v1121
        %vm1381 = vcmp.gt.f32.partialorder %v1102, %v1125
        %vm1382 = vcmp.gt.f32.partialorder %v1107, %v1113
        %vm1383 = vcmp.gt.f32.partialorder %v1107, %v1117
        %vm1384 = vcmp.gt.f32.partialorder %v1107, %v1121
        %vm1385 = vcmp.gt.f32.partialorder %v1107, %v1125
        %vm1386 = vcmp.eq.f32.partialorder %v792, %v1113
        %vm1387 = vcmp.eq.f32.partialorder %v792, %v1117
        %vm1388 = vcmp.eq.f32.partialorder %v792, %v1121
        %vm1389 = vcmp.eq.f32.partialorder %v792, %v1125
        %vm1390 = vcmp.eq.f32.partialorder %v797, %v1113
        %vm1391 = vcmp.eq.f32.partialorder %v797, %v1117
        %vm1392 = vcmp.eq.f32.partialorder %v797, %v1121
        %vm1393 = vcmp.eq.f32.partialorder %v797, %v1125
        %vm1394 = vcmp.eq.f32.partialorder %v802, %v1113
        %vm1395 = vcmp.eq.f32.partialorder %v802, %v1117
        %vm1396 = vcmp.eq.f32.partialorder %v802, %v1121
        %vm1397 = vcmp.eq.f32.partialorder %v802, %v1125
        %vm1398 = vcmp.eq.f32.partialorder %v807, %v1113
        %vm1399 = vcmp.eq.f32.partialorder %v807, %v1117
        %vm1400 = vcmp.eq.f32.partialorder %v807, %v1121
        %vm1401 = vcmp.eq.f32.partialorder %v807, %v1125
        %vm1402 = vcmp.eq.f32.partialorder %v812, %v1113
        %vm1403 = vcmp.eq.f32.partialorder %v812, %v1117
        %vm1404 = vcmp.eq.f32.partialorder %v812, %v1121
        %vm1405 = vcmp.eq.f32.partialorder %v812, %v1125
        %vm1406 = vcmp.eq.f32.partialorder %v817, %v1113
        %vm1407 = vcmp.eq.f32.partialorder %v817, %v1117
        %vm1408 = vcmp.eq.f32.partialorder %v817, %v1121
        %vm1409 = vcmp.eq.f32.partialorder %v817, %v1125
        %vm1410 = vcmp.eq.f32.partialorder %v822, %v1113
        %vm1411 = vcmp.eq.f32.partialorder %v822, %v1117
        %vm1412 = vcmp.eq.f32.partialorder %v822, %v1121
        %vm1413 = vcmp.eq.f32.partialorder %v822, %v1125
        %vm1414 = vcmp.eq.f32.partialorder %v827, %v1113
        %vm1415 = vcmp.eq.f32.partialorder %v827, %v1117
        %vm1416 = vcmp.eq.f32.partialorder %v827, %v1121
        %vm1417 = vcmp.eq.f32.partialorder %v827, %v1125
        %vm1418 = vcmp.eq.f32.partialorder %v832, %v1113
        %vm1419 = vcmp.eq.f32.partialorder %v832, %v1117
        %vm1420 = vcmp.eq.f32.partialorder %v832, %v1121
        %vm1421 = vcmp.eq.f32.partialorder %v832, %v1125
        %vm1422 = vcmp.eq.f32.partialorder %v837, %v1113
        %vm1423 = vcmp.eq.f32.partialorder %v837, %v1117
        %vm1424 = vcmp.eq.f32.partialorder %v837, %v1121
        %vm1425 = vcmp.eq.f32.partialorder %v837, %v1125
        %vm1426 = vcmp.eq.f32.partialorder %v842, %v1113
        %vm1427 = vcmp.eq.f32.partialorder %v842, %v1117
        %vm1428 = vcmp.eq.f32.partialorder %v842, %v1121
        %vm1429 = vcmp.eq.f32.partialorder %v842, %v1125
        %vm1430 = vcmp.eq.f32.partialorder %v847, %v1113
        %vm1431 = vcmp.eq.f32.partialorder %v847, %v1117
        %vm1432 = vcmp.eq.f32.partialorder %v847, %v1121
        %vm1433 = vcmp.eq.f32.partialorder %v847, %v1125
        %vm1434 = vcmp.eq.f32.partialorder %v852, %v1113
        %vm1435 = vcmp.eq.f32.partialorder %v852, %v1117
        %vm1436 = vcmp.eq.f32.partialorder %v852, %v1121
        %vm1437 = vcmp.eq.f32.partialorder %v852, %v1125
        %vm1438 = vcmp.eq.f32.partialorder %v857, %v1113
        %vm1439 = vcmp.eq.f32.partialorder %v857, %v1117
        %vm1440 = vcmp.eq.f32.partialorder %v857, %v1121
        %vm1441 = vcmp.eq.f32.partialorder %v857, %v1125
        %vm1442 = vcmp.eq.f32.partialorder %v862, %v1113
        %vm1443 = vcmp.eq.f32.partialorder %v862, %v1117
        %vm1444 = vcmp.eq.f32.partialorder %v862, %v1121
        %vm1445 = vcmp.eq.f32.partialorder %v862, %v1125
        %vm1446 = vcmp.eq.f32.partialorder %v867, %v1113
        %vm1447 = vcmp.eq.f32.partialorder %v867, %v1117
        %vm1448 = vcmp.eq.f32.partialorder %v867, %v1121
        %vm1449 = vcmp.eq.f32.partialorder %v867, %v1125
        %vm1450 = vcmp.eq.f32.partialorder %v872, %v1113
        %vm1451 = vcmp.eq.f32.partialorder %v872, %v1117
        %vm1452 = vcmp.eq.f32.partialorder %v872, %v1121
        %vm1453 = vcmp.eq.f32.partialorder %v872, %v1125
        %vm1454 = vcmp.eq.f32.partialorder %v877, %v1113
        %vm1455 = vcmp.eq.f32.partialorder %v877, %v1117
        %vm1456 = vcmp.eq.f32.partialorder %v877, %v1121
        %vm1457 = vcmp.eq.f32.partialorder %v877, %v1125
        %vm1458 = vcmp.eq.f32.partialorder %v882, %v1113
        %vm1459 = vcmp.eq.f32.partialorder %v882, %v1117
        %vm1460 = vcmp.eq.f32.partialorder %v882, %v1121
        %vm1461 = vcmp.eq.f32.partialorder %v882, %v1125
        %vm1462 = vcmp.eq.f32.partialorder %v887, %v1113
        %vm1463 = vcmp.eq.f32.partialorder %v887, %v1117
        %vm1464 = vcmp.eq.f32.partialorder %v887, %v1121
        %vm1465 = vcmp.eq.f32.partialorder %v887, %v1125
        %vm1466 = vcmp.eq.f32.partialorder %v892, %v1113
        %vm1467 = vcmp.eq.f32.partialorder %v892, %v1117
        %vm1468 = vcmp.eq.f32.partialorder %v892, %v1121
        %vm1469 = vcmp.eq.f32.partialorder %v892, %v1125
        %vm1470 = vcmp.eq.f32.partialorder %v897, %v1113
        %vm1471 = vcmp.eq.f32.partialorder %v897, %v1117
        %vm1472 = vcmp.eq.f32.partialorder %v897, %v1121
        %vm1473 = vcmp.eq.f32.partialorder %v897, %v1125
        %vm1474 = vcmp.eq.f32.partialorder %v902, %v1113
        %vm1475 = vcmp.eq.f32.partialorder %v902, %v1117
        %vm1476 = vcmp.eq.f32.partialorder %v902, %v1121
        %vm1477 = vcmp.eq.f32.partialorder %v902, %v1125
        %vm1478 = vcmp.eq.f32.partialorder %v907, %v1113
        %vm1479 = vcmp.eq.f32.partialorder %v907, %v1117
        %vm1480 = vcmp.eq.f32.partialorder %v907, %v1121
        %vm1481 = vcmp.eq.f32.partialorder %v907, %v1125
        %vm1482 = vcmp.eq.f32.partialorder %v912, %v1113
        %vm1483 = vcmp.eq.f32.partialorder %v912, %v1117
        %vm1484 = vcmp.eq.f32.partialorder %v912, %v1121
        %vm1485 = vcmp.eq.f32.partialorder %v912, %v1125
        %vm1486 = vcmp.eq.f32.partialorder %v917, %v1113
        %vm1487 = vcmp.eq.f32.partialorder %v917, %v1117
        %vm1488 = vcmp.eq.f32.partialorder %v917, %v1121
        %vm1489 = vcmp.eq.f32.partialorder %v917, %v1125
        %vm1490 = vcmp.eq.f32.partialorder %v922, %v1113
        %vm1491 = vcmp.eq.f32.partialorder %v922, %v1117
        %vm1492 = vcmp.eq.f32.partialorder %v922, %v1121
        %vm1493 = vcmp.eq.f32.partialorder %v922, %v1125
        %vm1494 = vcmp.eq.f32.partialorder %v927, %v1113
        %vm1495 = vcmp.eq.f32.partialorder %v927, %v1117
        %vm1496 = vcmp.eq.f32.partialorder %v927, %v1121
        %vm1497 = vcmp.eq.f32.partialorder %v927, %v1125
        %vm1498 = vcmp.eq.f32.partialorder %v932, %v1113
        %vm1499 = vcmp.eq.f32.partialorder %v932, %v1117
        %vm1500 = vcmp.eq.f32.partialorder %v932, %v1121
        %vm1501 = vcmp.eq.f32.partialorder %v932, %v1125
        %vm1502 = vcmp.eq.f32.partialorder %v937, %v1113
        %vm1503 = vcmp.eq.f32.partialorder %v937, %v1117
        %vm1504 = vcmp.eq.f32.partialorder %v937, %v1121
        %vm1505 = vcmp.eq.f32.partialorder %v937, %v1125
        %vm1506 = vcmp.eq.f32.partialorder %v942, %v1113
        %vm1507 = vcmp.eq.f32.partialorder %v942, %v1117
        %vm1508 = vcmp.eq.f32.partialorder %v942, %v1121
        %vm1509 = vcmp.eq.f32.partialorder %v942, %v1125
        %vm1510 = vcmp.eq.f32.partialorder %v947, %v1113
        %vm1511 = vcmp.eq.f32.partialorder %v947, %v1117
        %vm1512 = vcmp.eq.f32.partialorder %v947, %v1121
        %vm1513 = vcmp.eq.f32.partialorder %v947, %v1125
        %vm1514 = vcmp.eq.f32.partialorder %v952, %v1113
        %vm1515 = vcmp.eq.f32.partialorder %v952, %v1117
        %vm1516 = vcmp.eq.f32.partialorder %v952, %v1121
        %vm1517 = vcmp.eq.f32.partialorder %v952, %v1125
        %vm1518 = vcmp.eq.f32.partialorder %v957, %v1113
        %vm1519 = vcmp.eq.f32.partialorder %v957, %v1117
        %vm1520 = vcmp.eq.f32.partialorder %v957, %v1121
        %vm1521 = vcmp.eq.f32.partialorder %v957, %v1125
        %vm1522 = vcmp.eq.f32.partialorder %v962, %v1113
        %vm1523 = vcmp.eq.f32.partialorder %v962, %v1117
        %vm1524 = vcmp.eq.f32.partialorder %v962, %v1121
        %vm1525 = vcmp.eq.f32.partialorder %v962, %v1125
        %vm1526 = vcmp.eq.f32.partialorder %v967, %v1113
        %vm1527 = vcmp.eq.f32.partialorder %v967, %v1117
        %vm1528 = vcmp.eq.f32.partialorder %v967, %v1121
        %vm1529 = vcmp.eq.f32.partialorder %v967, %v1125
        %vm1530 = vcmp.eq.f32.partialorder %v972, %v1113
        %vm1531 = vcmp.eq.f32.partialorder %v972, %v1117
        %vm1532 = vcmp.eq.f32.partialorder %v972, %v1121
        %vm1533 = vcmp.eq.f32.partialorder %v972, %v1125
        %vm1534 = vcmp.eq.f32.partialorder %v977, %v1113
        %vm1535 = vcmp.eq.f32.partialorder %v977, %v1117
        %vm1536 = vcmp.eq.f32.partialorder %v977, %v1121
        %vm1537 = vcmp.eq.f32.partialorder %v977, %v1125
        %vm1538 = vcmp.eq.f32.partialorder %v982, %v1113
        %vm1539 = vcmp.eq.f32.partialorder %v982, %v1117
        %vm1540 = vcmp.eq.f32.partialorder %v982, %v1121
        %vm1541 = vcmp.eq.f32.partialorder %v982, %v1125
        %vm1542 = vcmp.eq.f32.partialorder %v987, %v1113
        %vm1543 = vcmp.eq.f32.partialorder %v987, %v1117
        %vm1544 = vcmp.eq.f32.partialorder %v987, %v1121
        %vm1545 = vcmp.eq.f32.partialorder %v987, %v1125
        %vm1546 = vcmp.eq.f32.partialorder %v992, %v1113
        %vm1547 = vcmp.eq.f32.partialorder %v992, %v1117
        %vm1548 = vcmp.eq.f32.partialorder %v992, %v1121
        %vm1549 = vcmp.eq.f32.partialorder %v992, %v1125
        %vm1550 = vcmp.eq.f32.partialorder %v997, %v1113
        %vm1551 = vcmp.eq.f32.partialorder %v997, %v1117
        %vm1552 = vcmp.eq.f32.partialorder %v997, %v1121
        %vm1553 = vcmp.eq.f32.partialorder %v997, %v1125
        %vm1554 = vcmp.eq.f32.partialorder %v1002, %v1113
        %vm1555 = vcmp.eq.f32.partialorder %v1002, %v1117
        %vm1556 = vcmp.eq.f32.partialorder %v1002, %v1121
        %vm1557 = vcmp.eq.f32.partialorder %v1002, %v1125
        %vm1558 = vcmp.eq.f32.partialorder %v1007, %v1113
        %vm1559 = vcmp.eq.f32.partialorder %v1007, %v1117
        %vm1560 = vcmp.eq.f32.partialorder %v1007, %v1121
        %vm1561 = vcmp.eq.f32.partialorder %v1007, %v1125
        %vm1562 = vcmp.eq.f32.partialorder %v1012, %v1113
        %vm1563 = vcmp.eq.f32.partialorder %v1012, %v1117
        %vm1564 = vcmp.eq.f32.partialorder %v1012, %v1121
        %vm1565 = vcmp.eq.f32.partialorder %v1012, %v1125
        %vm1566 = vcmp.eq.f32.partialorder %v1017, %v1113
        %vm1567 = vcmp.eq.f32.partialorder %v1017, %v1117
        %vm1568 = vcmp.eq.f32.partialorder %v1017, %v1121
        %vm1569 = vcmp.eq.f32.partialorder %v1017, %v1125
        %vm1570 = vcmp.eq.f32.partialorder %v1022, %v1113
        %vm1571 = vcmp.eq.f32.partialorder %v1022, %v1117
        %vm1572 = vcmp.eq.f32.partialorder %v1022, %v1121
        %vm1573 = vcmp.eq.f32.partialorder %v1022, %v1125
        %vm1574 = vcmp.eq.f32.partialorder %v1027, %v1113
        %vm1575 = vcmp.eq.f32.partialorder %v1027, %v1117
        %vm1576 = vcmp.eq.f32.partialorder %v1027, %v1121
        %vm1577 = vcmp.eq.f32.partialorder %v1027, %v1125
        %vm1578 = vcmp.eq.f32.partialorder %v1032, %v1113
        %vm1579 = vcmp.eq.f32.partialorder %v1032, %v1117
        %vm1580 = vcmp.eq.f32.partialorder %v1032, %v1121
        %vm1581 = vcmp.eq.f32.partialorder %v1032, %v1125
        %vm1582 = vcmp.eq.f32.partialorder %v1037, %v1113
        %vm1583 = vcmp.eq.f32.partialorder %v1037, %v1117
        %vm1584 = vcmp.eq.f32.partialorder %v1037, %v1121
        %vm1585 = vcmp.eq.f32.partialorder %v1037, %v1125
        %vm1586 = vcmp.eq.f32.partialorder %v1042, %v1113
        %vm1587 = vcmp.eq.f32.partialorder %v1042, %v1117
        %vm1588 = vcmp.eq.f32.partialorder %v1042, %v1121
        %vm1589 = vcmp.eq.f32.partialorder %v1042, %v1125
        %vm1590 = vcmp.eq.f32.partialorder %v1047, %v1113
        %vm1591 = vcmp.eq.f32.partialorder %v1047, %v1117
        %vm1592 = vcmp.eq.f32.partialorder %v1047, %v1121
        %vm1593 = vcmp.eq.f32.partialorder %v1047, %v1125
        %vm1594 = vcmp.eq.f32.partialorder %v1052, %v1113
        %vm1595 = vcmp.eq.f32.partialorder %v1052, %v1117
        %vm1596 = vcmp.eq.f32.partialorder %v1052, %v1121
        %vm1597 = vcmp.eq.f32.partialorder %v1052, %v1125
        %vm1598 = vcmp.eq.f32.partialorder %v1057, %v1113
        %vm1599 = vcmp.eq.f32.partialorder %v1057, %v1117
        %vm1600 = vcmp.eq.f32.partialorder %v1057, %v1121
        %vm1601 = vcmp.eq.f32.partialorder %v1057, %v1125
        %vm1602 = vcmp.eq.f32.partialorder %v1062, %v1113
        %vm1603 = vcmp.eq.f32.partialorder %v1062, %v1117
        %vm1604 = vcmp.eq.f32.partialorder %v1062, %v1121
        %vm1605 = vcmp.eq.f32.partialorder %v1062, %v1125
        %vm1606 = vcmp.eq.f32.partialorder %v1067, %v1113
        %vm1607 = vcmp.eq.f32.partialorder %v1067, %v1117
        %vm1608 = vcmp.eq.f32.partialorder %v1067, %v1121
        %vm1609 = vcmp.eq.f32.partialorder %v1067, %v1125
        %vm1610 = vcmp.eq.f32.partialorder %v1072, %v1113
        %vm1611 = vcmp.eq.f32.partialorder %v1072, %v1117
        %vm1612 = vcmp.eq.f32.partialorder %v1072, %v1121
        %vm1613 = vcmp.eq.f32.partialorder %v1072, %v1125
        %vm1614 = vcmp.eq.f32.partialorder %v1077, %v1113
        %vm1615 = vcmp.eq.f32.partialorder %v1077, %v1117
        %vm1616 = vcmp.eq.f32.partialorder %v1077, %v1121
        %vm1617 = vcmp.eq.f32.partialorder %v1077, %v1125
        %vm1618 = vcmp.eq.f32.partialorder %v1082, %v1113
        %vm1619 = vcmp.eq.f32.partialorder %v1082, %v1117
        %vm1620 = vcmp.eq.f32.partialorder %v1082, %v1121
        %vm1621 = vcmp.eq.f32.partialorder %v1082, %v1125
        %vm1622 = vcmp.eq.f32.partialorder %v1087, %v1113
        %vm1623 = vcmp.eq.f32.partialorder %v1087, %v1117
        %vm1624 = vcmp.eq.f32.partialorder %v1087, %v1121
        %vm1625 = vcmp.eq.f32.partialorder %v1087, %v1125
        %vm1626 = vcmp.eq.f32.partialorder %v1092, %v1113
        %vm1627 = vcmp.eq.f32.partialorder %v1092, %v1117
        %vm1628 = vcmp.eq.f32.partialorder %v1092, %v1121
        %vm1629 = vcmp.eq.f32.partialorder %v1092, %v1125
        %vm1630 = vcmp.eq.f32.partialorder %v1097, %v1113
        %vm1631 = vcmp.eq.f32.partialorder %v1097, %v1117
        %vm1632 = vcmp.eq.f32.partialorder %v1097, %v1121
        %vm1633 = vcmp.eq.f32.partialorder %v1097, %v1125
        %vm1634 = vcmp.eq.f32.partialorder %v1102, %v1113
        %vm1635 = vcmp.eq.f32.partialorder %v1102, %v1117
        %vm1636 = vcmp.eq.f32.partialorder %v1102, %v1121
        %vm1637 = vcmp.eq.f32.partialorder %v1102, %v1125
        %vm1638 = vcmp.eq.f32.partialorder %v1107, %v1113
        %vm1639 = vcmp.eq.f32.partialorder %v1107, %v1117
        %vm1640 = vcmp.eq.f32.partialorder %v1107, %v1121
        %vm1641 = vcmp.eq.f32.partialorder %v1107, %v1125
        %vm1642 = vcmp.lt.s32.totalorder %v720, %v785
        %vm1643 = vcmp.lt.s32.totalorder %v720, %v786
        %vm1644 = vcmp.lt.s32.totalorder %v720, %v787
        %vm1645 = vcmp.lt.s32.totalorder %v720, %v788
        %vm1646 = vcmp.lt.s32.totalorder %v721, %v785
        %vm1647 = vcmp.lt.s32.totalorder %v721, %v786
        %vm1648 = vcmp.lt.s32.totalorder %v721, %v787
        %vm1649 = vcmp.lt.s32.totalorder %v721, %v788
        %vm1650 = vcmp.lt.s32.totalorder %v722, %v785
        %vm1651 = vcmp.lt.s32.totalorder %v722, %v786
        %vm1652 = vcmp.lt.s32.totalorder %v722, %v787
        %vm1653 = vcmp.lt.s32.totalorder %v722, %v788
        %vm1654 = vcmp.lt.s32.totalorder %v723, %v785
        %vm1655 = vcmp.lt.s32.totalorder %v723, %v786
        %vm1656 = vcmp.lt.s32.totalorder %v723, %v787
        %vm1657 = vcmp.lt.s32.totalorder %v723, %v788
        %vm1658 = vcmp.lt.s32.totalorder %v724, %v785
        %vm1659 = vcmp.lt.s32.totalorder %v724, %v786
        %vm1660 = vcmp.lt.s32.totalorder %v724, %v787
        %vm1661 = vcmp.lt.s32.totalorder %v724, %v788
        %vm1662 = vcmp.lt.s32.totalorder %v725, %v785
        %vm1663 = vcmp.lt.s32.totalorder %v725, %v786
        %vm1664 = vcmp.lt.s32.totalorder %v725, %v787
        %vm1665 = vcmp.lt.s32.totalorder %v725, %v788
        %vm1666 = vcmp.lt.s32.totalorder %v726, %v785
        %vm1667 = vcmp.lt.s32.totalorder %v726, %v786
        %vm1668 = vcmp.lt.s32.totalorder %v726, %v787
        %vm1669 = vcmp.lt.s32.totalorder %v726, %v788
        %vm1670 = vcmp.lt.s32.totalorder %v727, %v785
        %vm1671 = vcmp.lt.s32.totalorder %v727, %v786
        %vm1672 = vcmp.lt.s32.totalorder %v727, %v787
        %vm1673 = vcmp.lt.s32.totalorder %v727, %v788
        %vm1674 = vcmp.lt.s32.totalorder %v728, %v785
        %vm1675 = vcmp.lt.s32.totalorder %v728, %v786
        %vm1676 = vcmp.lt.s32.totalorder %v728, %v787
        %vm1677 = vcmp.lt.s32.totalorder %v728, %v788
        %vm1678 = vcmp.lt.s32.totalorder %v729, %v785
        %vm1679 = vcmp.lt.s32.totalorder %v729, %v786
        %vm1680 = vcmp.lt.s32.totalorder %v729, %v787
        %vm1681 = vcmp.lt.s32.totalorder %v729, %v788
        %vm1682 = vcmp.lt.s32.totalorder %v730, %v785
        %vm1683 = vcmp.lt.s32.totalorder %v730, %v786
        %vm1684 = vcmp.lt.s32.totalorder %v730, %v787
        %vm1685 = vcmp.lt.s32.totalorder %v730, %v788
        %vm1686 = vcmp.lt.s32.totalorder %v731, %v785
        %vm1687 = vcmp.lt.s32.totalorder %v731, %v786
        %vm1688 = vcmp.lt.s32.totalorder %v731, %v787
        %vm1689 = vcmp.lt.s32.totalorder %v731, %v788
        %vm1690 = vcmp.lt.s32.totalorder %v732, %v785
        %vm1691 = vcmp.lt.s32.totalorder %v732, %v786
        %vm1692 = vcmp.lt.s32.totalorder %v732, %v787
        %vm1693 = vcmp.lt.s32.totalorder %v732, %v788
        %vm1694 = vcmp.lt.s32.totalorder %v733, %v785
        %vm1695 = vcmp.lt.s32.totalorder %v733, %v786
        %vm1696 = vcmp.lt.s32.totalorder %v733, %v787
        %vm1697 = vcmp.lt.s32.totalorder %v733, %v788
        %vm1698 = vcmp.lt.s32.totalorder %v734, %v785
        %vm1699 = vcmp.lt.s32.totalorder %v734, %v786
        %vm1700 = vcmp.lt.s32.totalorder %v734, %v787
        %vm1701 = vcmp.lt.s32.totalorder %v734, %v788
        %vm1702 = vcmp.lt.s32.totalorder %v735, %v785
        %vm1703 = vcmp.lt.s32.totalorder %v735, %v786
        %vm1704 = vcmp.lt.s32.totalorder %v735, %v787
        %vm1705 = vcmp.lt.s32.totalorder %v735, %v788
        %vm1706 = vcmp.lt.s32.totalorder %v736, %v785
        %vm1707 = vcmp.lt.s32.totalorder %v736, %v786
        %vm1708 = vcmp.lt.s32.totalorder %v736, %v787
        %vm1709 = vcmp.lt.s32.totalorder %v736, %v788
        %vm1710 = vcmp.lt.s32.totalorder %v737, %v785
        %vm1711 = vcmp.lt.s32.totalorder %v737, %v786
        %vm1712 = vcmp.lt.s32.totalorder %v737, %v787
        %vm1713 = vcmp.lt.s32.totalorder %v737, %v788
        %vm1714 = vcmp.lt.s32.totalorder %v738, %v785
        %vm1715 = vcmp.lt.s32.totalorder %v738, %v786
        %vm1716 = vcmp.lt.s32.totalorder %v738, %v787
        %vm1717 = vcmp.lt.s32.totalorder %v738, %v788
        %vm1718 = vcmp.lt.s32.totalorder %v739, %v785
        %vm1719 = vcmp.lt.s32.totalorder %v739, %v786
        %vm1720 = vcmp.lt.s32.totalorder %v739, %v787
        %vm1721 = vcmp.lt.s32.totalorder %v739, %v788
        %vm1722 = vcmp.lt.s32.totalorder %v740, %v785
        %vm1723 = vcmp.lt.s32.totalorder %v740, %v786
        %vm1724 = vcmp.lt.s32.totalorder %v740, %v787
        %vm1725 = vcmp.lt.s32.totalorder %v740, %v788
        %vm1726 = vcmp.lt.s32.totalorder %v741, %v785
        %vm1727 = vcmp.lt.s32.totalorder %v741, %v786
        %vm1728 = vcmp.lt.s32.totalorder %v741, %v787
        %vm1729 = vcmp.lt.s32.totalorder %v741, %v788
        %vm1730 = vcmp.lt.s32.totalorder %v742, %v785
        %vm1731 = vcmp.lt.s32.totalorder %v742, %v786
        %vm1732 = vcmp.lt.s32.totalorder %v742, %v787
        %vm1733 = vcmp.lt.s32.totalorder %v742, %v788
        %vm1734 = vcmp.lt.s32.totalorder %v743, %v785
        %vm1735 = vcmp.lt.s32.totalorder %v743, %v786
        %vm1736 = vcmp.lt.s32.totalorder %v743, %v787
        %vm1737 = vcmp.lt.s32.totalorder %v743, %v788
        %vm1738 = vcmp.lt.s32.totalorder %v744, %v785
        %vm1739 = vcmp.lt.s32.totalorder %v744, %v786
        %vm1740 = vcmp.lt.s32.totalorder %v744, %v787
        %vm1741 = vcmp.lt.s32.totalorder %v744, %v788
        %vm1742 = vcmp.lt.s32.totalorder %v745, %v785
        %vm1743 = vcmp.lt.s32.totalorder %v745, %v786
        %vm1744 = vcmp.lt.s32.totalorder %v745, %v787
        %vm1745 = vcmp.lt.s32.totalorder %v745, %v788
        %vm1746 = vcmp.lt.s32.totalorder %v746, %v785
        %vm1747 = vcmp.lt.s32.totalorder %v746, %v786
        %vm1748 = vcmp.lt.s32.totalorder %v746, %v787
        %vm1749 = vcmp.lt.s32.totalorder %v746, %v788
        %vm1750 = vcmp.lt.s32.totalorder %v747, %v785
        %vm1751 = vcmp.lt.s32.totalorder %v747, %v786
        %vm1752 = vcmp.lt.s32.totalorder %v747, %v787
        %vm1753 = vcmp.lt.s32.totalorder %v747, %v788
        %vm1754 = vcmp.lt.s32.totalorder %v748, %v785
        %vm1755 = vcmp.lt.s32.totalorder %v748, %v786
        %vm1756 = vcmp.lt.s32.totalorder %v748, %v787
        %vm1757 = vcmp.lt.s32.totalorder %v748, %v788
        %vm1758 = vcmp.lt.s32.totalorder %v749, %v785
        %vm1759 = vcmp.lt.s32.totalorder %v749, %v786
        %vm1760 = vcmp.lt.s32.totalorder %v749, %v787
        %vm1761 = vcmp.lt.s32.totalorder %v749, %v788
        %vm1762 = vcmp.lt.s32.totalorder %v750, %v785
        %vm1763 = vcmp.lt.s32.totalorder %v750, %v786
        %vm1764 = vcmp.lt.s32.totalorder %v750, %v787
        %vm1765 = vcmp.lt.s32.totalorder %v750, %v788
        %vm1766 = vcmp.lt.s32.totalorder %v751, %v785
        %vm1767 = vcmp.lt.s32.totalorder %v751, %v786
        %vm1768 = vcmp.lt.s32.totalorder %v751, %v787
        %vm1769 = vcmp.lt.s32.totalorder %v751, %v788
        %vm1770 = vcmp.lt.s32.totalorder %v752, %v785
        %vm1771 = vcmp.lt.s32.totalorder %v752, %v786
        %vm1772 = vcmp.lt.s32.totalorder %v752, %v787
        %vm1773 = vcmp.lt.s32.totalorder %v752, %v788
        %vm1774 = vcmp.lt.s32.totalorder %v753, %v785
        %vm1775 = vcmp.lt.s32.totalorder %v753, %v786
        %vm1776 = vcmp.lt.s32.totalorder %v753, %v787
        %vm1777 = vcmp.lt.s32.totalorder %v753, %v788
        %vm1778 = vcmp.lt.s32.totalorder %v754, %v785
        %vm1779 = vcmp.lt.s32.totalorder %v754, %v786
        %vm1780 = vcmp.lt.s32.totalorder %v754, %v787
        %vm1781 = vcmp.lt.s32.totalorder %v754, %v788
        %vm1782 = vcmp.lt.s32.totalorder %v755, %v785
        %vm1783 = vcmp.lt.s32.totalorder %v755, %v786
        %vm1784 = vcmp.lt.s32.totalorder %v755, %v787
        %vm1785 = vcmp.lt.s32.totalorder %v755, %v788
        %vm1786 = vcmp.lt.s32.totalorder %v756, %v785
        %vm1787 = vcmp.lt.s32.totalorder %v756, %v786
        %vm1788 = vcmp.lt.s32.totalorder %v756, %v787
        %vm1789 = vcmp.lt.s32.totalorder %v756, %v788
        %vm1790 = vcmp.lt.s32.totalorder %v757, %v785
        %vm1791 = vcmp.lt.s32.totalorder %v757, %v786
        %vm1792 = vcmp.lt.s32.totalorder %v757, %v787
        %vm1793 = vcmp.lt.s32.totalorder %v757, %v788
        %vm1794 = vcmp.lt.s32.totalorder %v758, %v785
        %vm1795 = vcmp.lt.s32.totalorder %v758, %v786
        %vm1796 = vcmp.lt.s32.totalorder %v758, %v787
        %vm1797 = vcmp.lt.s32.totalorder %v758, %v788
        %vm1798 = vcmp.lt.s32.totalorder %v759, %v785
        %vm1799 = vcmp.lt.s32.totalorder %v759, %v786
        %vm1800 = vcmp.lt.s32.totalorder %v759, %v787
        %vm1801 = vcmp.lt.s32.totalorder %v759, %v788
        %vm1802 = vcmp.lt.s32.totalorder %v760, %v785
        %vm1803 = vcmp.lt.s32.totalorder %v760, %v786
        %vm1804 = vcmp.lt.s32.totalorder %v760, %v787
        %vm1805 = vcmp.lt.s32.totalorder %v760, %v788
        %vm1806 = vcmp.lt.s32.totalorder %v761, %v785
        %vm1807 = vcmp.lt.s32.totalorder %v761, %v786
        %vm1808 = vcmp.lt.s32.totalorder %v761, %v787
        %vm1809 = vcmp.lt.s32.totalorder %v761, %v788
        %vm1810 = vcmp.lt.s32.totalorder %v762, %v785
        %vm1811 = vcmp.lt.s32.totalorder %v762, %v786
        %vm1812 = vcmp.lt.s32.totalorder %v762, %v787
        %vm1813 = vcmp.lt.s32.totalorder %v762, %v788
        %vm1814 = vcmp.lt.s32.totalorder %v763, %v785
        %vm1815 = vcmp.lt.s32.totalorder %v763, %v786
        %vm1816 = vcmp.lt.s32.totalorder %v763, %v787
        %vm1817 = vcmp.lt.s32.totalorder %v763, %v788
        %vm1818 = vcmp.lt.s32.totalorder %v764, %v785
        %vm1819 = vcmp.lt.s32.totalorder %v764, %v786
        %vm1820 = vcmp.lt.s32.totalorder %v764, %v787
        %vm1821 = vcmp.lt.s32.totalorder %v764, %v788
        %vm1822 = vcmp.lt.s32.totalorder %v765, %v785
        %vm1823 = vcmp.lt.s32.totalorder %v765, %v786
        %vm1824 = vcmp.lt.s32.totalorder %v765, %v787
        %vm1825 = vcmp.lt.s32.totalorder %v765, %v788
        %vm1826 = vcmp.lt.s32.totalorder %v766, %v785
        %vm1827 = vcmp.lt.s32.totalorder %v766, %v786
        %vm1828 = vcmp.lt.s32.totalorder %v766, %v787
        %vm1829 = vcmp.lt.s32.totalorder %v766, %v788
        %vm1830 = vcmp.lt.s32.totalorder %v767, %v785
        %vm1831 = vcmp.lt.s32.totalorder %v767, %v786
        %vm1832 = vcmp.lt.s32.totalorder %v767, %v787
        %vm1833 = vcmp.lt.s32.totalorder %v767, %v788
        %vm1834 = vcmp.lt.s32.totalorder %v768, %v785
        %vm1835 = vcmp.lt.s32.totalorder %v768, %v786
        %vm1836 = vcmp.lt.s32.totalorder %v768, %v787
        %vm1837 = vcmp.lt.s32.totalorder %v768, %v788
        %vm1838 = vcmp.lt.s32.totalorder %v769, %v785
        %vm1839 = vcmp.lt.s32.totalorder %v769, %v786
        %vm1840 = vcmp.lt.s32.totalorder %v769, %v787
        %vm1841 = vcmp.lt.s32.totalorder %v769, %v788
        %vm1842 = vcmp.lt.s32.totalorder %v770, %v785
        %vm1843 = vcmp.lt.s32.totalorder %v770, %v786
        %vm1844 = vcmp.lt.s32.totalorder %v770, %v787
        %vm1845 = vcmp.lt.s32.totalorder %v770, %v788
        %vm1846 = vcmp.lt.s32.totalorder %v771, %v785
        %vm1847 = vcmp.lt.s32.totalorder %v771, %v786
        %vm1848 = vcmp.lt.s32.totalorder %v771, %v787
        %vm1849 = vcmp.lt.s32.totalorder %v771, %v788
        %vm1850 = vcmp.lt.s32.totalorder %v772, %v785
        %vm1851 = vcmp.lt.s32.totalorder %v772, %v786
        %vm1852 = vcmp.lt.s32.totalorder %v772, %v787
        %vm1853 = vcmp.lt.s32.totalorder %v772, %v788
        %vm1854 = vcmp.lt.s32.totalorder %v773, %v785
        %vm1855 = vcmp.lt.s32.totalorder %v773, %v786
        %vm1856 = vcmp.lt.s32.totalorder %v773, %v787
        %vm1857 = vcmp.lt.s32.totalorder %v773, %v788
        %vm1858 = vcmp.lt.s32.totalorder %v774, %v785
        %vm1859 = vcmp.lt.s32.totalorder %v774, %v786
        %vm1860 = vcmp.lt.s32.totalorder %v774, %v787
        %vm1861 = vcmp.lt.s32.totalorder %v774, %v788
        %vm1862 = vcmp.lt.s32.totalorder %v775, %v785
        %vm1863 = vcmp.lt.s32.totalorder %v775, %v786
        %vm1864 = vcmp.lt.s32.totalorder %v775, %v787
        %vm1865 = vcmp.lt.s32.totalorder %v775, %v788
        %vm1866 = vcmp.lt.s32.totalorder %v776, %v785
        %vm1867 = vcmp.lt.s32.totalorder %v776, %v786
        %vm1868 = vcmp.lt.s32.totalorder %v776, %v787
        %vm1869 = vcmp.lt.s32.totalorder %v776, %v788
        %vm1870 = vcmp.lt.s32.totalorder %v777, %v785
        %vm1871 = vcmp.lt.s32.totalorder %v777, %v786
        %vm1872 = vcmp.lt.s32.totalorder %v777, %v787
        %vm1873 = vcmp.lt.s32.totalorder %v777, %v788
        %vm1874 = vcmp.lt.s32.totalorder %v778, %v785
        %vm1875 = vcmp.lt.s32.totalorder %v778, %v786
        %vm1876 = vcmp.lt.s32.totalorder %v778, %v787
        %vm1877 = vcmp.lt.s32.totalorder %v778, %v788
        %vm1878 = vcmp.lt.s32.totalorder %v779, %v785
        %vm1879 = vcmp.lt.s32.totalorder %v779, %v786
        %vm1880 = vcmp.lt.s32.totalorder %v779, %v787
        %vm1881 = vcmp.lt.s32.totalorder %v779, %v788
        %vm1882 = vcmp.lt.s32.totalorder %v780, %v785
        %vm1883 = vcmp.lt.s32.totalorder %v780, %v786
        %vm1884 = vcmp.lt.s32.totalorder %v780, %v787
        %vm1885 = vcmp.lt.s32.totalorder %v780, %v788
        %vm1886 = vcmp.lt.s32.totalorder %v781, %v785
        %vm1887 = vcmp.lt.s32.totalorder %v781, %v786
        %vm1888 = vcmp.lt.s32.totalorder %v781, %v787
        %vm1889 = vcmp.lt.s32.totalorder %v781, %v788
        %vm1890 = vcmp.lt.s32.totalorder %v782, %v785
        %vm1891 = vcmp.lt.s32.totalorder %v782, %v786
        %vm1892 = vcmp.lt.s32.totalorder %v782, %v787
        %vm1893 = vcmp.lt.s32.totalorder %v782, %v788
        %vm1894 = vcmp.lt.s32.totalorder %v783, %v785
        %vm1895 = vcmp.lt.s32.totalorder %v783, %v786
        %vm1896 = vcmp.lt.s32.totalorder %v783, %v787
        %vm1897 = vcmp.lt.s32.totalorder %v783, %v788
        %vm1898 = vmand %vm1386, %vm1642
        %vm1899 = vmand %vm1387, %vm1643
        %vm1900 = vmand %vm1388, %vm1644
        %vm1901 = vmand %vm1389, %vm1645
        %vm1902 = vmand %vm1390, %vm1646
        %vm1903 = vmand %vm1391, %vm1647
        %vm1904 = vmand %vm1392, %vm1648
        %vm1905 = vmand %vm1393, %vm1649
        %vm1906 = vmand %vm1394, %vm1650
        %vm1907 = vmand %vm1395, %vm1651
        %vm1908 = vmand %vm1396, %vm1652
        %vm1909 = vmand %vm1397, %vm1653
        %vm1910 = vmand %vm1398, %vm1654
        %vm1911 = vmand %vm1399, %vm1655
        %vm1912 = vmand %vm1400, %vm1656
        %vm1913 = vmand %vm1401, %vm1657
        %vm1914 = vmand %vm1402, %vm1658
        %vm1915 = vmand %vm1403, %vm1659
        %vm1916 = vmand %vm1404, %vm1660
        %vm1917 = vmand %vm1405, %vm1661
        %vm1918 = vmand %vm1406, %vm1662
        %vm1919 = vmand %vm1407, %vm1663
        %vm1920 = vmand %vm1408, %vm1664
        %vm1921 = vmand %vm1409, %vm1665
        %vm1922 = vmand %vm1410, %vm1666
        %vm1923 = vmand %vm1411, %vm1667
        %vm1924 = vmand %vm1412, %vm1668
        %vm1925 = vmand %vm1413, %vm1669
        %vm1926 = vmand %vm1414, %vm1670
        %vm1927 = vmand %vm1415, %vm1671
        %vm1928 = vmand %vm1416, %vm1672
        %vm1929 = vmand %vm1417, %vm1673
        %vm1930 = vmand %vm1418, %vm1674
        %vm1931 = vmand %vm1419, %vm1675
        %vm1932 = vmand %vm1420, %vm1676
        %vm1933 = vmand %vm1421, %vm1677
        %vm1934 = vmand %vm1422, %vm1678
        %vm1935 = vmand %vm1423, %vm1679
        %vm1936 = vmand %vm1424, %vm1680
        %vm1937 = vmand %vm1425, %vm1681
        %vm1938 = vmand %vm1426, %vm1682
        %vm1939 = vmand %vm1427, %vm1683
        %vm1940 = vmand %vm1428, %vm1684
        %vm1941 = vmand %vm1429, %vm1685
        %vm1942 = vmand %vm1430, %vm1686
        %vm1943 = vmand %vm1431, %vm1687
        %vm1944 = vmand %vm1432, %vm1688
        %vm1945 = vmand %vm1433, %vm1689
        %vm1946 = vmand %vm1434, %vm1690
        %vm1947 = vmand %vm1435, %vm1691
        %vm1948 = vmand %vm1436, %vm1692
        %vm1949 = vmand %vm1437, %vm1693
        %vm1950 = vmand %vm1438, %vm1694
        %vm1951 = vmand %vm1439, %vm1695
        %vm1952 = vmand %vm1440, %vm1696
        %vm1953 = vmand %vm1441, %vm1697
        %vm1954 = vmand %vm1442, %vm1698
        %vm1955 = vmand %vm1443, %vm1699
        %vm1956 = vmand %vm1444, %vm1700
        %vm1957 = vmand %vm1445, %vm1701
        %vm1958 = vmand %vm1446, %vm1702
        %vm1959 = vmand %vm1447, %vm1703
        %vm1960 = vmand %vm1448, %vm1704
        %vm1961 = vmand %vm1449, %vm1705
        %vm1962 = vmand %vm1450, %vm1706
        %vm1963 = vmand %vm1451, %vm1707
        %vm1964 = vmand %vm1452, %vm1708
        %vm1965 = vmand %vm1453, %vm1709
        %vm1966 = vmand %vm1454, %vm1710
        %vm1967 = vmand %vm1455, %vm1711
        %vm1968 = vmand %vm1456, %vm1712
        %vm1969 = vmand %vm1457, %vm1713
        %vm1970 = vmand %vm1458, %vm1714
        %vm1971 = vmand %vm1459, %vm1715
        %vm1972 = vmand %vm1460, %vm1716
        %vm1973 = vmand %vm1461, %vm1717
        %vm1974 = vmand %vm1462, %vm1718
        %vm1975 = vmand %vm1463, %vm1719
        %vm1976 = vmand %vm1464, %vm1720
        %vm1977 = vmand %vm1465, %vm1721
        %vm1978 = vmand %vm1466, %vm1722
        %vm1979 = vmand %vm1467, %vm1723
        %vm1980 = vmand %vm1468, %vm1724
        %vm1981 = vmand %vm1469, %vm1725
        %vm1982 = vmand %vm1470, %vm1726
        %vm1983 = vmand %vm1471, %vm1727
        %vm1984 = vmand %vm1472, %vm1728
        %vm1985 = vmand %vm1473, %vm1729
        %vm1986 = vmand %vm1474, %vm1730
        %vm1987 = vmand %vm1475, %vm1731
        %vm1988 = vmand %vm1476, %vm1732
        %vm1989 = vmand %vm1477, %vm1733
        %vm1990 = vmand %vm1478, %vm1734
        %vm1991 = vmand %vm1479, %vm1735
        %vm1992 = vmand %vm1480, %vm1736
        %vm1993 = vmand %vm1481, %vm1737
        %vm1994 = vmand %vm1482, %vm1738
        %vm1995 = vmand %vm1483, %vm1739
        %vm1996 = vmand %vm1484, %vm1740
        %vm1997 = vmand %vm1485, %vm1741
        %vm1998 = vmand %vm1486, %vm1742
        %vm1999 = vmand %vm1487, %vm1743
        %vm2000 = vmand %vm1488, %vm1744
        %vm2001 = vmand %vm1489, %vm1745
        %vm2002 = vmand %vm1490, %vm1746
        %vm2003 = vmand %vm1491, %vm1747
        %vm2004 = vmand %vm1492, %vm1748
        %vm2005 = vmand %vm1493, %vm1749
        %vm2006 = vmand %vm1494, %vm1750
        %vm2007 = vmand %vm1495, %vm1751
        %vm2008 = vmand %vm1496, %vm1752
        %vm2009 = vmand %vm1497, %vm1753
        %vm2010 = vmand %vm1498, %vm1754
        %vm2011 = vmand %vm1499, %vm1755
        %vm2012 = vmand %vm1500, %vm1756
        %vm2013 = vmand %vm1501, %vm1757
        %vm2014 = vmand %vm1502, %vm1758
        %vm2015 = vmand %vm1503, %vm1759
        %vm2016 = vmand %vm1504, %vm1760
        %vm2017 = vmand %vm1505, %vm1761
        %vm2018 = vmand %vm1506, %vm1762
        %vm2019 = vmand %vm1507, %vm1763
        %vm2020 = vmand %vm1508, %vm1764
        %vm2021 = vmand %vm1509, %vm1765
        %vm2022 = vmand %vm1510, %vm1766
        %vm2023 = vmand %vm1511, %vm1767
        %vm2024 = vmand %vm1512, %vm1768
        %vm2025 = vmand %vm1513, %vm1769
        %vm2026 = vmand %vm1514, %vm1770
        %vm2027 = vmand %vm1515, %vm1771
        %vm2028 = vmand %vm1516, %vm1772
        %vm2029 = vmand %vm1517, %vm1773
        %vm2030 = vmand %vm1518, %vm1774
        %vm2031 = vmand %vm1519, %vm1775
        %vm2032 = vmand %vm1520, %vm1776
        %vm2033 = vmand %vm1521, %vm1777
        %vm2034 = vmand %vm1522, %vm1778
        %vm2035 = vmand %vm1523, %vm1779
        %vm2036 = vmand %vm1524, %vm1780
        %vm2037 = vmand %vm1525, %vm1781
        %vm2038 = vmand %vm1526, %vm1782
        %vm2039 = vmand %vm1527, %vm1783
        %vm2040 = vmand %vm1528, %vm1784
        %vm2041 = vmand %vm1529, %vm1785
        %vm2042 = vmand %vm1530, %vm1786
        %vm2043 = vmand %vm1531, %vm1787
        %vm2044 = vmand %vm1532, %vm1788
        %vm2045 = vmand %vm1533, %vm1789
        %vm2046 = vmand %vm1534, %vm1790
        %vm2047 = vmand %vm1535, %vm1791
        %vm2048 = vmand %vm1536, %vm1792
        %vm2049 = vmand %vm1537, %vm1793
        %vm2050 = vmand %vm1538, %vm1794
        %vm2051 = vmand %vm1539, %vm1795
        %vm2052 = vmand %vm1540, %vm1796
        %vm2053 = vmand %vm1541, %vm1797
        %vm2054 = vmand %vm1542, %vm1798
        %vm2055 = vmand %vm1543, %vm1799
        %vm2056 = vmand %vm1544, %vm1800
        %vm2057 = vmand %vm1545, %vm1801
        %vm2058 = vmand %vm1546, %vm1802
        %vm2059 = vmand %vm1547, %vm1803
        %vm2060 = vmand %vm1548, %vm1804
        %vm2061 = vmand %vm1549, %vm1805
        %vm2062 = vmand %vm1550, %vm1806
        %vm2063 = vmand %vm1551, %vm1807
        %vm2064 = vmand %vm1552, %vm1808
        %vm2065 = vmand %vm1553, %vm1809
        %vm2066 = vmand %vm1554, %vm1810
        %vm2067 = vmand %vm1555, %vm1811
        %vm2068 = vmand %vm1556, %vm1812
        %vm2069 = vmand %vm1557, %vm1813
        %vm2070 = vmand %vm1558, %vm1814
        %vm2071 = vmand %vm1559, %vm1815
        %vm2072 = vmand %vm1560, %vm1816
        %vm2073 = vmand %vm1561, %vm1817
        %vm2074 = vmand %vm1562, %vm1818
        %vm2075 = vmand %vm1563, %vm1819
        %vm2076 = vmand %vm1564, %vm1820
        %vm2077 = vmand %vm1565, %vm1821
        %vm2078 = vmand %vm1566, %vm1822
        %vm2079 = vmand %vm1567, %vm1823
        %vm2080 = vmand %vm1568, %vm1824
        %vm2081 = vmand %vm1569, %vm1825
        %vm2082 = vmand %vm1570, %vm1826
        %vm2083 = vmand %vm1571, %vm1827
        %vm2084 = vmand %vm1572, %vm1828
        %vm2085 = vmand %vm1573, %vm1829
        %vm2086 = vmand %vm1574, %vm1830
        %vm2087 = vmand %vm1575, %vm1831
        %vm2088 = vmand %vm1576, %vm1832
        %vm2089 = vmand %vm1577, %vm1833
        %vm2090 = vmand %vm1578, %vm1834
        %vm2091 = vmand %vm1579, %vm1835
        %vm2092 = vmand %vm1580, %vm1836
        %vm2093 = vmand %vm1581, %vm1837
        %vm2094 = vmand %vm1582, %vm1838
        %vm2095 = vmand %vm1583, %vm1839
        %vm2096 = vmand %vm1584, %vm1840
        %vm2097 = vmand %vm1585, %vm1841
        %vm2098 = vmand %vm1586, %vm1842
        %vm2099 = vmand %vm1587, %vm1843
        %vm2100 = vmand %vm1588, %vm1844
        %vm2101 = vmand %vm1589, %vm1845
        %vm2102 = vmand %vm1590, %vm1846
        %vm2103 = vmand %vm1591, %vm1847
        %vm2104 = vmand %vm1592, %vm1848
        %vm2105 = vmand %vm1593, %vm1849
        %vm2106 = vmand %vm1594, %vm1850
        %vm2107 = vmand %vm1595, %vm1851
        %vm2108 = vmand %vm1596, %vm1852
        %vm2109 = vmand %vm1597, %vm1853
        %vm2110 = vmand %vm1598, %vm1854
        %vm2111 = vmand %vm1599, %vm1855
        %vm2112 = vmand %vm1600, %vm1856
        %vm2113 = vmand %vm1601, %vm1857
        %vm2114 = vmand %vm1602, %vm1858
        %vm2115 = vmand %vm1603, %vm1859
        %vm2116 = vmand %vm1604, %vm1860
        %vm2117 = vmand %vm1605, %vm1861
        %vm2118 = vmand %vm1606, %vm1862
        %vm2119 = vmand %vm1607, %vm1863
        %vm2120 = vmand %vm1608, %vm1864
        %vm2121 = vmand %vm1609, %vm1865
        %vm2122 = vmand %vm1610, %vm1866
        %vm2123 = vmand %vm1611, %vm1867
        %vm2124 = vmand %vm1612, %vm1868
        %vm2125 = vmand %vm1613, %vm1869
        %vm2126 = vmand %vm1614, %vm1870
        %vm2127 = vmand %vm1615, %vm1871
        %vm2128 = vmand %vm1616, %vm1872
        %vm2129 = vmand %vm1617, %vm1873
        %vm2130 = vmand %vm1618, %vm1874
        %vm2131 = vmand %vm1619, %vm1875
        %vm2132 = vmand %vm1620, %vm1876
        %vm2133 = vmand %vm1621, %vm1877
        %vm2134 = vmand %vm1622, %vm1878
        %vm2135 = vmand %vm1623, %vm1879
        %vm2136 = vmand %vm1624, %vm1880
        %vm2137 = vmand %vm1625, %vm1881
        %vm2138 = vmand %vm1626, %vm1882
        %vm2139 = vmand %vm1627, %vm1883
        %vm2140 = vmand %vm1628, %vm1884
        %vm2141 = vmand %vm1629, %vm1885
        %vm2142 = vmand %vm1630, %vm1886
        %vm2143 = vmand %vm1631, %vm1887
        %vm2144 = vmand %vm1632, %vm1888
        %vm2145 = vmand %vm1633, %vm1889
        %vm2146 = vmand %vm1634, %vm1890
        %vm2147 = vmand %vm1635, %vm1891
        %vm2148 = vmand %vm1636, %vm1892
        %vm2149 = vmand %vm1637, %vm1893
        %vm2150 = vmand %vm1638, %vm1894
        %vm2151 = vmand %vm1639, %vm1895
        %vm2152 = vmand %vm1640, %vm1896
        %vm2153 = vmand %vm1641, %vm1897
        %vm2154 = vmor %vm1130, %vm1898
        %vm2155 = vmor %vm1131, %vm1899
        %vm2156 = vmor %vm1132, %vm1900
        %vm2157 = vmor %vm1133, %vm1901
        %vm2158 = vmor %vm1134, %vm1902
        %vm2159 = vmor %vm1135, %vm1903
        %vm2160 = vmor %vm1136, %vm1904
        %vm2161 = vmor %vm1137, %vm1905
        %vm2162 = vmor %vm1138, %vm1906
        %vm2163 = vmor %vm1139, %vm1907
        %vm2164 = vmor %vm1140, %vm1908
        %vm2165 = vmor %vm1141, %vm1909
        %vm2166 = vmor %vm1142, %vm1910
        %vm2167 = vmor %vm1143, %vm1911
        %vm2168 = vmor %vm1144, %vm1912
        %vm2169 = vmor %vm1145, %vm1913
        %vm2170 = vmor %vm1146, %vm1914
        %vm2171 = vmor %vm1147, %vm1915
        %vm2172 = vmor %vm1148, %vm1916
        %vm2173 = vmor %vm1149, %vm1917
        %vm2174 = vmor %vm1150, %vm1918
        %vm2175 = vmor %vm1151, %vm1919
        %vm2176 = vmor %vm1152, %vm1920
        %vm2177 = vmor %vm1153, %vm1921
        %vm2178 = vmor %vm1154, %vm1922
        %vm2179 = vmor %vm1155, %vm1923
        %vm2180 = vmor %vm1156, %vm1924
        %vm2181 = vmor %vm1157, %vm1925
        %vm2182 = vmor %vm1158, %vm1926
        %vm2183 = vmor %vm1159, %vm1927
        %vm2184 = vmor %vm1160, %vm1928
        %vm2185 = vmor %vm1161, %vm1929
        %vm2186 = vmor %vm1162, %vm1930
        %vm2187 = vmor %vm1163, %vm1931
        %vm2188 = vmor %vm1164, %vm1932
        %vm2189 = vmor %vm1165, %vm1933
        %vm2190 = vmor %vm1166, %vm1934
        %vm2191 = vmor %vm1167, %vm1935
        %vm2192 = vmor %vm1168, %vm1936
        %vm2193 = vmor %vm1169, %vm1937
        %vm2194 = vmor %vm1170, %vm1938
        %vm2195 = vmor %vm1171, %vm1939
        %vm2196 = vmor %vm1172, %vm1940
        %vm2197 = vmor %vm1173, %vm1941
        %vm2198 = vmor %vm1174, %vm1942
        %vm2199 = vmor %vm1175, %vm1943
        %vm2200 = vmor %vm1176, %vm1944
        %vm2201 = vmor %vm1177, %vm1945
        %vm2202 = vmor %vm1178, %vm1946
        %vm2203 = vmor %vm1179, %vm1947
        %vm2204 = vmor %vm1180, %vm1948
        %vm2205 = vmor %vm1181, %vm1949
        %vm2206 = vmor %vm1182, %vm1950
        %vm2207 = vmor %vm1183, %vm1951
        %vm2208 = vmor %vm1184, %vm1952
        %vm2209 = vmor %vm1185, %vm1953
        %vm2210 = vmor %vm1186, %vm1954
        %vm2211 = vmor %vm1187, %vm1955
        %vm2212 = vmor %vm1188, %vm1956
        %vm2213 = vmor %vm1189, %vm1957
        %vm2214 = vmor %vm1190, %vm1958
        %vm2215 = vmor %vm1191, %vm1959
        %vm2216 = vmor %vm1192, %vm1960
        %vm2217 = vmor %vm1193, %vm1961
        %vm2218 = vmor %vm1194, %vm1962
        %vm2219 = vmor %vm1195, %vm1963
        %vm2220 = vmor %vm1196, %vm1964
        %vm2221 = vmor %vm1197, %vm1965
        %vm2222 = vmor %vm1198, %vm1966
        %vm2223 = vmor %vm1199, %vm1967
        %vm2224 = vmor %vm1200, %vm1968
        %vm2225 = vmor %vm1201, %vm1969
        %vm2226 = vmor %vm1202, %vm1970
        %vm2227 = vmor %vm1203, %vm1971
        %vm2228 = vmor %vm1204, %vm1972
        %vm2229 = vmor %vm1205, %vm1973
        %vm2230 = vmor %vm1206, %vm1974
        %vm2231 = vmor %vm1207, %vm1975
        %vm2232 = vmor %vm1208, %vm1976
        %vm2233 = vmor %vm1209, %vm1977
        %vm2234 = vmor %vm1210, %vm1978
        %vm2235 = vmor %vm1211, %vm1979
        %vm2236 = vmor %vm1212, %vm1980
        %vm2237 = vmor %vm1213, %vm1981
        %vm2238 = vmor %vm1214, %vm1982
        %vm2239 = vmor %vm1215, %vm1983
        %vm2240 = vmor %vm1216, %vm1984
        %vm2241 = vmor %vm1217, %vm1985
        %vm2242 = vmor %vm1218, %vm1986
        %vm2243 = vmor %vm1219, %vm1987
        %vm2244 = vmor %vm1220, %vm1988
        %vm2245 = vmor %vm1221, %vm1989
        %vm2246 = vmor %vm1222, %vm1990
        %vm2247 = vmor %vm1223, %vm1991
        %vm2248 = vmor %vm1224, %vm1992
        %vm2249 = vmor %vm1225, %vm1993
        %vm2250 = vmor %vm1226, %vm1994
        %vm2251 = vmor %vm1227, %vm1995
        %vm2252 = vmor %vm1228, %vm1996
        %vm2253 = vmor %vm1229, %vm1997
        %vm2254 = vmor %vm1230, %vm1998
        %vm2255 = vmor %vm1231, %vm1999
        %vm2256 = vmor %vm1232, %vm2000
        %vm2257 = vmor %vm1233, %vm2001
        %vm2258 = vmor %vm1234, %vm2002
        %vm2259 = vmor %vm1235, %vm2003
        %vm2260 = vmor %vm1236, %vm2004
        %vm2261 = vmor %vm1237, %vm2005
        %vm2262 = vmor %vm1238, %vm2006
        %vm2263 = vmor %vm1239, %vm2007
        %vm2264 = vmor %vm1240, %vm2008
        %vm2265 = vmor %vm1241, %vm2009
        %vm2266 = vmor %vm1242, %vm2010
        %vm2267 = vmor %vm1243, %vm2011
        %vm2268 = vmor %vm1244, %vm2012
        %vm2269 = vmor %vm1245, %vm2013
        %vm2270 = vmor %vm1246, %vm2014
        %vm2271 = vmor %vm1247, %vm2015
        %vm2272 = vmor %vm1248, %vm2016
        %vm2273 = vmor %vm1249, %vm2017
        %vm2274 = vmor %vm1250, %vm2018
        %vm2275 = vmor %vm1251, %vm2019
        %vm2276 = vmor %vm1252, %vm2020
        %vm2277 = vmor %vm1253, %vm2021
        %vm2278 = vmor %vm1254, %vm2022
        %vm2279 = vmor %vm1255, %vm2023
        %vm2280 = vmor %vm1256, %vm2024
        %vm2281 = vmor %vm1257, %vm2025
        %vm2282 = vmor %vm1258, %vm2026
        %vm2283 = vmor %vm1259, %vm2027
        %vm2284 = vmor %vm1260, %vm2028
        %vm2285 = vmor %vm1261, %vm2029
        %vm2286 = vmor %vm1262, %vm2030
        %vm2287 = vmor %vm1263, %vm2031
        %vm2288 = vmor %vm1264, %vm2032
        %vm2289 = vmor %vm1265, %vm2033
        %vm2290 = vmor %vm1266, %vm2034
        %vm2291 = vmor %vm1267, %vm2035
        %vm2292 = vmor %vm1268, %vm2036
        %vm2293 = vmor %vm1269, %vm2037
        %vm2294 = vmor %vm1270, %vm2038
        %vm2295 = vmor %vm1271, %vm2039
        %vm2296 = vmor %vm1272, %vm2040
        %vm2297 = vmor %vm1273, %vm2041
        %vm2298 = vmor %vm1274, %vm2042
        %vm2299 = vmor %vm1275, %vm2043
        %vm2300 = vmor %vm1276, %vm2044
        %vm2301 = vmor %vm1277, %vm2045
        %vm2302 = vmor %vm1278, %vm2046
        %vm2303 = vmor %vm1279, %vm2047
        %vm2304 = vmor %vm1280, %vm2048
        %vm2305 = vmor %vm1281, %vm2049
        %vm2306 = vmor %vm1282, %vm2050
        %vm2307 = vmor %vm1283, %vm2051
        %vm2308 = vmor %vm1284, %vm2052
        %vm2309 = vmor %vm1285, %vm2053
        %vm2310 = vmor %vm1286, %vm2054
        %vm2311 = vmor %vm1287, %vm2055
        %vm2312 = vmor %vm1288, %vm2056
        %vm2313 = vmor %vm1289, %vm2057
        %vm2314 = vmor %vm1290, %vm2058
        %vm2315 = vmor %vm1291, %vm2059
        %vm2316 = vmor %vm1292, %vm2060
        %vm2317 = vmor %vm1293, %vm2061
        %vm2318 = vmor %vm1294, %vm2062
        %vm2319 = vmor %vm1295, %vm2063
        %vm2320 = vmor %vm1296, %vm2064
        %vm2321 = vmor %vm1297, %vm2065
        %vm2322 = vmor %vm1298, %vm2066
        %vm2323 = vmor %vm1299, %vm2067
        %vm2324 = vmor %vm1300, %vm2068
        %vm2325 = vmor %vm1301, %vm2069
        %vm2326 = vmor %vm1302, %vm2070
        %vm2327 = vmor %vm1303, %vm2071
        %vm2328 = vmor %vm1304, %vm2072
        %vm2329 = vmor %vm1305, %vm2073
        %vm2330 = vmor %vm1306, %vm2074
        %vm2331 = vmor %vm1307, %vm2075
        %vm2332 = vmor %vm1308, %vm2076
        %vm2333 = vmor %vm1309, %vm2077
        %vm2334 = vmor %vm1310, %vm2078
        %vm2335 = vmor %vm1311, %vm2079
        %vm2336 = vmor %vm1312, %vm2080
        %vm2337 = vmor %vm1313, %vm2081
        %vm2338 = vmor %vm1314, %vm2082
        %vm2339 = vmor %vm1315, %vm2083
        %vm2340 = vmor %vm1316, %vm2084
        %vm2341 = vmor %vm1317, %vm2085
        %vm2342 = vmor %vm1318, %vm2086
        %vm2343 = vmor %vm1319, %vm2087
        %vm2344 = vmor %vm1320, %vm2088
        %vm2345 = vmor %vm1321, %vm2089
        %vm2346 = vmor %vm1322, %vm2090
        %vm2347 = vmor %vm1323, %vm2091
        %vm2348 = vmor %vm1324, %vm2092
        %vm2349 = vmor %vm1325, %vm2093
        %vm2350 = vmor %vm1326, %vm2094
        %vm2351 = vmor %vm1327, %vm2095
        %vm2352 = vmor %vm1328, %vm2096
        %vm2353 = vmor %vm1329, %vm2097
        %vm2354 = vmor %vm1330, %vm2098
        %vm2355 = vmor %vm1331, %vm2099
        %vm2356 = vmor %vm1332, %vm2100
        %vm2357 = vmor %vm1333, %vm2101
        %vm2358 = vmor %vm1334, %vm2102
        %vm2359 = vmor %vm1335, %vm2103
        %vm2360 = vmor %vm1336, %vm2104
        %vm2361 = vmor %vm1337, %vm2105
        %vm2362 = vmor %vm1338, %vm2106
        %vm2363 = vmor %vm1339, %vm2107
        %vm2364 = vmor %vm1340, %vm2108
        %vm2365 = vmor %vm1341, %vm2109
        %vm2366 = vmor %vm1342, %vm2110
        %vm2367 = vmor %vm1343, %vm2111
        %vm2368 = vmor %vm1344, %vm2112
        %vm2369 = vmor %vm1345, %vm2113
        %vm2370 = vmor %vm1346, %vm2114
        %vm2371 = vmor %vm1347, %vm2115
        %vm2372 = vmor %vm1348, %vm2116
        %vm2373 = vmor %vm1349, %vm2117
        %vm2374 = vmor %vm1350, %vm2118
        %vm2375 = vmor %vm1351, %vm2119
        %vm2376 = vmor %vm1352, %vm2120
        %vm2377 = vmor %vm1353, %vm2121
        %vm2378 = vmor %vm1354, %vm2122
        %vm2379 = vmor %vm1355, %vm2123
        %vm2380 = vmor %vm1356, %vm2124
        %vm2381 = vmor %vm1357, %vm2125
        %vm2382 = vmor %vm1358, %vm2126
        %vm2383 = vmor %vm1359, %vm2127
        %vm2384 = vmor %vm1360, %vm2128
        %vm2385 = vmor %vm1361, %vm2129
        %vm2386 = vmor %vm1362, %vm2130
        %vm2387 = vmor %vm1363, %vm2131
        %vm2388 = vmor %vm1364, %vm2132
        %vm2389 = vmor %vm1365, %vm2133
        %vm2390 = vmor %vm1366, %vm2134
        %vm2391 = vmor %vm1367, %vm2135
        %vm2392 = vmor %vm1368, %vm2136
        %vm2393 = vmor %vm1369, %vm2137
        %vm2394 = vmor %vm1370, %vm2138
        %vm2395 = vmor %vm1371, %vm2139
        %vm2396 = vmor %vm1372, %vm2140
        %vm2397 = vmor %vm1373, %vm2141
        %vm2398 = vmor %vm1374, %vm2142
        %vm2399 = vmor %vm1375, %vm2143
        %vm2400 = vmor %vm1376, %vm2144
        %vm2401 = vmor %vm1377, %vm2145
        %vm2402 = vmor %vm1378, %vm2146
        %vm2403 = vmor %vm1379, %vm2147
        %vm2404 = vmor %vm1380, %vm2148
        %vm2405 = vmor %vm1381, %vm2149
        %vm2406 = vmor %vm1382, %vm2150
        %vm2407 = vmor %vm1383, %vm2151
        %vm2408 = vmor %vm1384, %vm2152
        %vm2409 = vmor %vm1385, %vm2153
        %v2410 = vsel %vm2154, 1, 0
        %v2411 = vsel %vm2155, 1, 0
        %v2412 = vsel %vm2156, 1, 0
        %v2413 = vsel %vm2157, 1, 0
        %v2414 = vsel %vm2158, 1, 0
        %v2415 = vsel %vm2159, 1, 0
        %v2416 = vsel %vm2160, 1, 0
        %v2417 = vsel %vm2161, 1, 0
        %v2418 = vsel %vm2162, 1, 0
        %v2419 = vsel %vm2163, 1, 0
        %v2420 = vsel %vm2164, 1, 0
        %v2421 = vsel %vm2165, 1, 0
        %v2422 = vsel %vm2166, 1, 0
        %v2423 = vsel %vm2167, 1, 0
        %v2424 = vsel %vm2168, 1, 0
        %v2425 = vsel %vm2169, 1, 0
        %v2426 = vsel %vm2170, 1, 0
        %v2427 = vsel %vm2171, 1, 0
        %v2428 = vsel %vm2172, 1, 0
        %v2429 = vsel %vm2173, 1, 0
        %v2430 = vsel %vm2174, 1, 0
        %v2431 = vsel %vm2175, 1, 0
        %v2432 = vsel %vm2176, 1, 0
        %v2433 = vsel %vm2177, 1, 0
        %v2434 = vsel %vm2178, 1, 0
        %v2435 = vsel %vm2179, 1, 0
        %v2436 = vsel %vm2180, 1, 0
        %v2437 = vsel %vm2181, 1, 0
        %v2438 = vsel %vm2182, 1, 0
        %v2439 = vsel %vm2183, 1, 0
        %v2440 = vsel %vm2184, 1, 0
        %v2441 = vsel %vm2185, 1, 0
        %v2442 = vsel %vm2186, 1, 0
        %v2443 = vsel %vm2187, 1, 0
        %v2444 = vsel %vm2188, 1, 0
        %v2445 = vsel %vm2189, 1, 0
        %v2446 = vsel %vm2190, 1, 0
        %v2447 = vsel %vm2191, 1, 0
        %v2448 = vsel %vm2192, 1, 0
        %v2449 = vsel %vm2193, 1, 0
        %v2450 = vsel %vm2194, 1, 0
        %v2451 = vsel %vm2195, 1, 0
        %v2452 = vsel %vm2196, 1, 0
        %v2453 = vsel %vm2197, 1, 0
        %v2454 = vsel %vm2198, 1, 0
        %v2455 = vsel %vm2199, 1, 0
        %v2456 = vsel %vm2200, 1, 0
        %v2457 = vsel %vm2201, 1, 0
        %v2458 = vsel %vm2202, 1, 0
        %v2459 = vsel %vm2203, 1, 0
        %v2460 = vsel %vm2204, 1, 0
        %v2461 = vsel %vm2205, 1, 0
        %v2462 = vsel %vm2206, 1, 0
        %v2463 = vsel %vm2207, 1, 0
        %v2464 = vsel %vm2208, 1, 0
        %v2465 = vsel %vm2209, 1, 0
        %v2466 = vsel %vm2210, 1, 0
        %v2467 = vsel %vm2211, 1, 0
        %v2468 = vsel %vm2212, 1, 0
        %v2469 = vsel %vm2213, 1, 0
        %v2470 = vsel %vm2214, 1, 0
        %v2471 = vsel %vm2215, 1, 0
        %v2472 = vsel %vm2216, 1, 0
        %v2473 = vsel %vm2217, 1, 0
        %v2474 = vsel %vm2218, 1, 0
        %v2475 = vsel %vm2219, 1, 0
        %v2476 = vsel %vm2220, 1, 0
        %v2477 = vsel %vm2221, 1, 0
        %v2478 = vsel %vm2222, 1, 0
        %v2479 = vsel %vm2223, 1, 0
        %v2480 = vsel %vm2224, 1, 0
        %v2481 = vsel %vm2225, 1, 0
        %v2482 = vsel %vm2226, 1, 0
        %v2483 = vsel %vm2227, 1, 0
        %v2484 = vsel %vm2228, 1, 0
        %v2485 = vsel %vm2229, 1, 0
        %v2486 = vsel %vm2230, 1, 0
        %v2487 = vsel %vm2231, 1, 0
        %v2488 = vsel %vm2232, 1, 0
        %v2489 = vsel %vm2233, 1, 0
        %v2490 = vsel %vm2234, 1, 0
        %v2491 = vsel %vm2235, 1, 0
        %v2492 = vsel %vm2236, 1, 0
        %v2493 = vsel %vm2237, 1, 0
        %v2494 = vsel %vm2238, 1, 0
        %v2495 = vsel %vm2239, 1, 0
        %v2496 = vsel %vm2240, 1, 0
        %v2497 = vsel %vm2241, 1, 0
        %v2498 = vsel %vm2242, 1, 0
        %v2499 = vsel %vm2243, 1, 0
        %v2500 = vsel %vm2244, 1, 0
        %v2501 = vsel %vm2245, 1, 0
        %v2502 = vsel %vm2246, 1, 0
        %v2503 = vsel %vm2247, 1, 0
        %v2504 = vsel %vm2248, 1, 0
        %v2505 = vsel %vm2249, 1, 0
        %v2506 = vsel %vm2250, 1, 0
        %v2507 = vsel %vm2251, 1, 0
        %v2508 = vsel %vm2252, 1, 0
        %v2509 = vsel %vm2253, 1, 0
        %v2510 = vsel %vm2254, 1, 0
        %v2511 = vsel %vm2255, 1, 0
        %v2512 = vsel %vm2256, 1, 0
        %v2513 = vsel %vm2257, 1, 0
        %v2514 = vsel %vm2258, 1, 0
        %v2515 = vsel %vm2259, 1, 0
        %v2516 = vsel %vm2260, 1, 0
        %v2517 = vsel %vm2261, 1, 0
        %v2518 = vsel %vm2262, 1, 0
        %v2519 = vsel %vm2263, 1, 0
        %v2520 = vsel %vm2264, 1, 0
        %v2521 = vsel %vm2265, 1, 0
        %v2522 = vsel %vm2266, 1, 0
        %v2523 = vsel %vm2267, 1, 0
        %v2524 = vsel %vm2268, 1, 0
        %v2525 = vsel %vm2269, 1, 0
        %v2526 = vsel %vm2270, 1, 0
        %v2527 = vsel %vm2271, 1, 0
        %v2528 = vsel %vm2272, 1, 0
        %v2529 = vsel %vm2273, 1, 0
        %v2530 = vsel %vm2274, 1, 0
        %v2531 = vsel %vm2275, 1, 0
        %v2532 = vsel %vm2276, 1, 0
        %v2533 = vsel %vm2277, 1, 0
        %v2534 = vsel %vm2278, 1, 0
        %v2535 = vsel %vm2279, 1, 0
        %v2536 = vsel %vm2280, 1, 0
        %v2537 = vsel %vm2281, 1, 0
        %v2538 = vsel %vm2282, 1, 0
        %v2539 = vsel %vm2283, 1, 0
        %v2540 = vsel %vm2284, 1, 0
        %v2541 = vsel %vm2285, 1, 0
        %v2542 = vsel %vm2286, 1, 0
        %v2543 = vsel %vm2287, 1, 0
        %v2544 = vsel %vm2288, 1, 0
        %v2545 = vsel %vm2289, 1, 0
        %v2546 = vsel %vm2290, 1, 0
        %v2547 = vsel %vm2291, 1, 0
        %v2548 = vsel %vm2292, 1, 0
        %v2549 = vsel %vm2293, 1, 0
        %v2550 = vsel %vm2294, 1, 0
        %v2551 = vsel %vm2295, 1, 0
        %v2552 = vsel %vm2296, 1, 0
        %v2553 = vsel %vm2297, 1, 0
        %v2554 = vsel %vm2298, 1, 0
        %v2555 = vsel %vm2299, 1, 0
        %v2556 = vsel %vm2300, 1, 0
        %v2557 = vsel %vm2301, 1, 0
        %v2558 = vsel %vm2302, 1, 0
        %v2559 = vsel %vm2303, 1, 0
        %v2560 = vsel %vm2304, 1, 0
        %v2561 = vsel %vm2305, 1, 0
        %v2562 = vsel %vm2306, 1, 0
        %v2563 = vsel %vm2307, 1, 0
        %v2564 = vsel %vm2308, 1, 0
        %v2565 = vsel %vm2309, 1, 0
        %v2566 = vsel %vm2310, 1, 0
        %v2567 = vsel %vm2311, 1, 0
        %v2568 = vsel %vm2312, 1, 0
        %v2569 = vsel %vm2313, 1, 0
        %v2570 = vsel %vm2314, 1, 0
        %v2571 = vsel %vm2315, 1, 0
        %v2572 = vsel %vm2316, 1, 0
        %v2573 = vsel %vm2317, 1, 0
        %v2574 = vsel %vm2318, 1, 0
        %v2575 = vsel %vm2319, 1, 0
        %v2576 = vsel %vm2320, 1, 0
        %v2577 = vsel %vm2321, 1, 0
        %v2578 = vsel %vm2322, 1, 0
        %v2579 = vsel %vm2323, 1, 0
        %v2580 = vsel %vm2324, 1, 0
        %v2581 = vsel %vm2325, 1, 0
        %v2582 = vsel %vm2326, 1, 0
        %v2583 = vsel %vm2327, 1, 0
        %v2584 = vsel %vm2328, 1, 0
        %v2585 = vsel %vm2329, 1, 0
        %v2586 = vsel %vm2330, 1, 0
        %v2587 = vsel %vm2331, 1, 0
        %v2588 = vsel %vm2332, 1, 0
        %v2589 = vsel %vm2333, 1, 0
        %v2590 = vsel %vm2334, 1, 0
        %v2591 = vsel %vm2335, 1, 0
        %v2592 = vsel %vm2336, 1, 0
        %v2593 = vsel %vm2337, 1, 0
        %v2594 = vsel %vm2338, 1, 0
        %v2595 = vsel %vm2339, 1, 0
        %v2596 = vsel %vm2340, 1, 0
        %v2597 = vsel %vm2341, 1, 0
        %v2598 = vsel %vm2342, 1, 0
        %v2599 = vsel %vm2343, 1, 0
        %v2600 = vsel %vm2344, 1, 0
        %v2601 = vsel %vm2345, 1, 0
        %v2602 = vsel %vm2346, 1, 0
        %v2603 = vsel %vm2347, 1, 0
        %v2604 = vsel %vm2348, 1, 0
        %v2605 = vsel %vm2349, 1, 0
        %v2606 = vsel %vm2350, 1, 0
        %v2607 = vsel %vm2351, 1, 0
        %v2608 = vsel %vm2352, 1, 0
        %v2609 = vsel %vm2353, 1, 0
        %v2610 = vsel %vm2354, 1, 0
        %v2611 = vsel %vm2355, 1, 0
        %v2612 = vsel %vm2356, 1, 0
        %v2613 = vsel %vm2357, 1, 0
        %v2614 = vsel %vm2358, 1, 0
        %v2615 = vsel %vm2359, 1, 0
        %v2616 = vsel %vm2360, 1, 0
        %v2617 = vsel %vm2361, 1, 0
        %v2618 = vsel %vm2362, 1, 0
        %v2619 = vsel %vm2363, 1, 0
        %v2620 = vsel %vm2364, 1, 0
        %v2621 = vsel %vm2365, 1, 0
        %v2622 = vsel %vm2366, 1, 0
        %v2623 = vsel %vm2367, 1, 0
        %v2624 = vsel %vm2368, 1, 0
        %v2625 = vsel %vm2369, 1, 0
        %v2626 = vsel %vm2370, 1, 0
        %v2627 = vsel %vm2371, 1, 0
        %v2628 = vsel %vm2372, 1, 0
        %v2629 = vsel %vm2373, 1, 0
        %v2630 = vsel %vm2374, 1, 0
        %v2631 = vsel %vm2375, 1, 0
        %v2632 = vsel %vm2376, 1, 0
        %v2633 = vsel %vm2377, 1, 0
        %v2634 = vsel %vm2378, 1, 0
        %v2635 = vsel %vm2379, 1, 0
        %v2636 = vsel %vm2380, 1, 0
        %v2637 = vsel %vm2381, 1, 0
        %v2638 = vsel %vm2382, 1, 0
        %v2639 = vsel %vm2383, 1, 0
        %v2640 = vsel %vm2384, 1, 0
        %v2641 = vsel %vm2385, 1, 0
        %v2642 = vsel %vm2386, 1, 0
        %v2643 = vsel %vm2387, 1, 0
        %v2644 = vsel %vm2388, 1, 0
        %v2645 = vsel %vm2389, 1, 0
        %v2646 = vsel %vm2390, 1, 0
        %v2647 = vsel %vm2391, 1, 0
        %v2648 = vsel %vm2392, 1, 0
        %v2649 = vsel %vm2393, 1, 0
        %v2650 = vsel %vm2394, 1, 0
        %v2651 = vsel %vm2395, 1, 0
        %v2652 = vsel %vm2396, 1, 0
        %v2653 = vsel %vm2397, 1, 0
        %v2654 = vsel %vm2398, 1, 0
        %v2655 = vsel %vm2399, 1, 0
        %v2656 = vsel %vm2400, 1, 0
        %v2657 = vsel %vm2401, 1, 0
        %v2658 = vsel %vm2402, 1, 0
        %v2659 = vsel %vm2403, 1, 0
        %v2660 = vsel %vm2404, 1, 0
        %v2661 = vsel %vm2405, 1, 0
        %v2662 = vsel %vm2406, 1, 0
        %v2663 = vsel %vm2407, 1, 0
        %v2664 = vsel %vm2408, 1, 0
        %v2665 = vsel %vm2409, 1, 0
        %v2666 = vcvt.s32.f32 %v2410
        %v2667 = vcvt.s32.f32 %v2411
        %v2668 = vcvt.s32.f32 %v2412
        %v2669 = vcvt.s32.f32 %v2413
        %v2670 = vcvt.s32.f32 %v2414
        %v2671 = vcvt.s32.f32 %v2415
        %v2672 = vcvt.s32.f32 %v2416
        %v2673 = vcvt.s32.f32 %v2417
        %v2674 = vcvt.s32.f32 %v2418
        %v2675 = vcvt.s32.f32 %v2419
        %v2676 = vcvt.s32.f32 %v2420
        %v2677 = vcvt.s32.f32 %v2421
        %v2678 = vcvt.s32.f32 %v2422
        %v2679 = vcvt.s32.f32 %v2423
        %v2680 = vcvt.s32.f32 %v2424
        %v2681 = vcvt.s32.f32 %v2425
        %v2682 = vcvt.s32.f32 %v2426
        %v2683 = vcvt.s32.f32 %v2427
        %v2684 = vcvt.s32.f32 %v2428
        %v2685 = vcvt.s32.f32 %v2429
        %v2686 = vcvt.s32.f32 %v2430
        %v2687 = vcvt.s32.f32 %v2431
        %v2688 = vcvt.s32.f32 %v2432
        %v2689 = vcvt.s32.f32 %v2433
        %v2690 = vcvt.s32.f32 %v2434
        %v2691 = vcvt.s32.f32 %v2435
        %v2692 = vcvt.s32.f32 %v2436
        %v2693 = vcvt.s32.f32 %v2437
        %v2694 = vcvt.s32.f32 %v2438
        %v2695 = vcvt.s32.f32 %v2439
        %v2696 = vcvt.s32.f32 %v2440
        %v2697 = vcvt.s32.f32 %v2441
        %v2698 = vcvt.s32.f32 %v2442
        %v2699 = vcvt.s32.f32 %v2443
        %v2700 = vcvt.s32.f32 %v2444
        %v2701 = vcvt.s32.f32 %v2445
        %v2702 = vcvt.s32.f32 %v2446
        %v2703 = vcvt.s32.f32 %v2447
        %v2704 = vcvt.s32.f32 %v2448
        %v2705 = vcvt.s32.f32 %v2449
        %v2706 = vcvt.s32.f32 %v2450
        %v2707 = vcvt.s32.f32 %v2451
        %v2708 = vcvt.s32.f32 %v2452
        %v2709 = vcvt.s32.f32 %v2453
        %v2710 = vcvt.s32.f32 %v2454
        %v2711 = vcvt.s32.f32 %v2455
        %v2712 = vcvt.s32.f32 %v2456
        %v2713 = vcvt.s32.f32 %v2457
        %v2714 = vcvt.s32.f32 %v2458
        %v2715 = vcvt.s32.f32 %v2459
        %v2716 = vcvt.s32.f32 %v2460
        %v2717 = vcvt.s32.f32 %v2461
        %v2718 = vcvt.s32.f32 %v2462
        %v2719 = vcvt.s32.f32 %v2463
        %v2720 = vcvt.s32.f32 %v2464
        %v2721 = vcvt.s32.f32 %v2465
        %v2722 = vcvt.s32.f32 %v2466
        %v2723 = vcvt.s32.f32 %v2467
        %v2724 = vcvt.s32.f32 %v2468
        %v2725 = vcvt.s32.f32 %v2469
        %v2726 = vcvt.s32.f32 %v2470
        %v2727 = vcvt.s32.f32 %v2471
        %v2728 = vcvt.s32.f32 %v2472
        %v2729 = vcvt.s32.f32 %v2473
        %v2730 = vcvt.s32.f32 %v2474
        %v2731 = vcvt.s32.f32 %v2475
        %v2732 = vcvt.s32.f32 %v2476
        %v2733 = vcvt.s32.f32 %v2477
        %v2734 = vcvt.s32.f32 %v2478
        %v2735 = vcvt.s32.f32 %v2479
        %v2736 = vcvt.s32.f32 %v2480
        %v2737 = vcvt.s32.f32 %v2481
        %v2738 = vcvt.s32.f32 %v2482
        %v2739 = vcvt.s32.f32 %v2483
        %v2740 = vcvt.s32.f32 %v2484
        %v2741 = vcvt.s32.f32 %v2485
        %v2742 = vcvt.s32.f32 %v2486
        %v2743 = vcvt.s32.f32 %v2487
        %v2744 = vcvt.s32.f32 %v2488
        %v2745 = vcvt.s32.f32 %v2489
        %v2746 = vcvt.s32.f32 %v2490
        %v2747 = vcvt.s32.f32 %v2491
        %v2748 = vcvt.s32.f32 %v2492
        %v2749 = vcvt.s32.f32 %v2493
        %v2750 = vcvt.s32.f32 %v2494
        %v2751 = vcvt.s32.f32 %v2495
        %v2752 = vcvt.s32.f32 %v2496
        %v2753 = vcvt.s32.f32 %v2497
        %v2754 = vcvt.s32.f32 %v2498
        %v2755 = vcvt.s32.f32 %v2499
        %v2756 = vcvt.s32.f32 %v2500
        %v2757 = vcvt.s32.f32 %v2501
        %v2758 = vcvt.s32.f32 %v2502
        %v2759 = vcvt.s32.f32 %v2503
        %v2760 = vcvt.s32.f32 %v2504
        %v2761 = vcvt.s32.f32 %v2505
        %v2762 = vcvt.s32.f32 %v2506
        %v2763 = vcvt.s32.f32 %v2507
        %v2764 = vcvt.s32.f32 %v2508
        %v2765 = vcvt.s32.f32 %v2509
        %v2766 = vcvt.s32.f32 %v2510
        %v2767 = vcvt.s32.f32 %v2511
        %v2768 = vcvt.s32.f32 %v2512
        %v2769 = vcvt.s32.f32 %v2513
        %v2770 = vcvt.s32.f32 %v2514
        %v2771 = vcvt.s32.f32 %v2515
        %v2772 = vcvt.s32.f32 %v2516
        %v2773 = vcvt.s32.f32 %v2517
        %v2774 = vcvt.s32.f32 %v2518
        %v2775 = vcvt.s32.f32 %v2519
        %v2776 = vcvt.s32.f32 %v2520
        %v2777 = vcvt.s32.f32 %v2521
        %v2778 = vcvt.s32.f32 %v2522
        %v2779 = vcvt.s32.f32 %v2523
        %v2780 = vcvt.s32.f32 %v2524
        %v2781 = vcvt.s32.f32 %v2525
        %v2782 = vcvt.s32.f32 %v2526
        %v2783 = vcvt.s32.f32 %v2527
        %v2784 = vcvt.s32.f32 %v2528
        %v2785 = vcvt.s32.f32 %v2529
        %v2786 = vcvt.s32.f32 %v2530
        %v2787 = vcvt.s32.f32 %v2531
        %v2788 = vcvt.s32.f32 %v2532
        %v2789 = vcvt.s32.f32 %v2533
        %v2790 = vcvt.s32.f32 %v2534
        %v2791 = vcvt.s32.f32 %v2535
        %v2792 = vcvt.s32.f32 %v2536
        %v2793 = vcvt.s32.f32 %v2537
        %v2794 = vcvt.s32.f32 %v2538
        %v2795 = vcvt.s32.f32 %v2539
        %v2796 = vcvt.s32.f32 %v2540
        %v2797 = vcvt.s32.f32 %v2541
        %v2798 = vcvt.s32.f32 %v2542
        %v2799 = vcvt.s32.f32 %v2543
        %v2800 = vcvt.s32.f32 %v2544
        %v2801 = vcvt.s32.f32 %v2545
        %v2802 = vcvt.s32.f32 %v2546
        %v2803 = vcvt.s32.f32 %v2547
        %v2804 = vcvt.s32.f32 %v2548
        %v2805 = vcvt.s32.f32 %v2549
        %v2806 = vcvt.s32.f32 %v2550
        %v2807 = vcvt.s32.f32 %v2551
        %v2808 = vcvt.s32.f32 %v2552
        %v2809 = vcvt.s32.f32 %v2553
        %v2810 = vcvt.s32.f32 %v2554
        %v2811 = vcvt.s32.f32 %v2555
        %v2812 = vcvt.s32.f32 %v2556
        %v2813 = vcvt.s32.f32 %v2557
        %v2814 = vcvt.s32.f32 %v2558
        %v2815 = vcvt.s32.f32 %v2559
        %v2816 = vcvt.s32.f32 %v2560
        %v2817 = vcvt.s32.f32 %v2561
        %v2818 = vcvt.s32.f32 %v2562
        %v2819 = vcvt.s32.f32 %v2563
        %v2820 = vcvt.s32.f32 %v2564
        %v2821 = vcvt.s32.f32 %v2565
        %v2822 = vcvt.s32.f32 %v2566
        %v2823 = vcvt.s32.f32 %v2567
        %v2824 = vcvt.s32.f32 %v2568
        %v2825 = vcvt.s32.f32 %v2569
        %v2826 = vcvt.s32.f32 %v2570
        %v2827 = vcvt.s32.f32 %v2571
        %v2828 = vcvt.s32.f32 %v2572
        %v2829 = vcvt.s32.f32 %v2573
        %v2830 = vcvt.s32.f32 %v2574
        %v2831 = vcvt.s32.f32 %v2575
        %v2832 = vcvt.s32.f32 %v2576
        %v2833 = vcvt.s32.f32 %v2577
        %v2834 = vcvt.s32.f32 %v2578
        %v2835 = vcvt.s32.f32 %v2579
        %v2836 = vcvt.s32.f32 %v2580
        %v2837 = vcvt.s32.f32 %v2581
        %v2838 = vcvt.s32.f32 %v2582
        %v2839 = vcvt.s32.f32 %v2583
        %v2840 = vcvt.s32.f32 %v2584
        %v2841 = vcvt.s32.f32 %v2585
        %v2842 = vcvt.s32.f32 %v2586
        %v2843 = vcvt.s32.f32 %v2587
        %v2844 = vcvt.s32.f32 %v2588
        %v2845 = vcvt.s32.f32 %v2589
        %v2846 = vcvt.s32.f32 %v2590
        %v2847 = vcvt.s32.f32 %v2591
        %v2848 = vcvt.s32.f32 %v2592
        %v2849 = vcvt.s32.f32 %v2593
        %v2850 = vcvt.s32.f32 %v2594
        %v2851 = vcvt.s32.f32 %v2595
        %v2852 = vcvt.s32.f32 %v2596
        %v2853 = vcvt.s32.f32 %v2597
        %v2854 = vcvt.s32.f32 %v2598
        %v2855 = vcvt.s32.f32 %v2599
        %v2856 = vcvt.s32.f32 %v2600
        %v2857 = vcvt.s32.f32 %v2601
        %v2858 = vcvt.s32.f32 %v2602
        %v2859 = vcvt.s32.f32 %v2603
        %v2860 = vcvt.s32.f32 %v2604
        %v2861 = vcvt.s32.f32 %v2605
        %v2862 = vcvt.s32.f32 %v2606
        %v2863 = vcvt.s32.f32 %v2607
        %v2864 = vcvt.s32.f32 %v2608
        %v2865 = vcvt.s32.f32 %v2609
        %v2866 = vcvt.s32.f32 %v2610
        %v2867 = vcvt.s32.f32 %v2611
        %v2868 = vcvt.s32.f32 %v2612
        %v2869 = vcvt.s32.f32 %v2613
        %v2870 = vcvt.s32.f32 %v2614
        %v2871 = vcvt.s32.f32 %v2615
        %v2872 = vcvt.s32.f32 %v2616
        %v2873 = vcvt.s32.f32 %v2617
        %v2874 = vcvt.s32.f32 %v2618
        %v2875 = vcvt.s32.f32 %v2619
        %v2876 = vcvt.s32.f32 %v2620
        %v2877 = vcvt.s32.f32 %v2621
        %v2878 = vcvt.s32.f32 %v2622
        %v2879 = vcvt.s32.f32 %v2623
        %v2880 = vcvt.s32.f32 %v2624
        %v2881 = vcvt.s32.f32 %v2625
        %v2882 = vcvt.s32.f32 %v2626
        %v2883 = vcvt.s32.f32 %v2627
        %v2884 = vcvt.s32.f32 %v2628
        %v2885 = vcvt.s32.f32 %v2629
        %v2886 = vcvt.s32.f32 %v2630
        %v2887 = vcvt.s32.f32 %v2631
        %v2888 = vcvt.s32.f32 %v2632
        %v2889 = vcvt.s32.f32 %v2633
        %v2890 = vcvt.s32.f32 %v2634
        %v2891 = vcvt.s32.f32 %v2635
        %v2892 = vcvt.s32.f32 %v2636
        %v2893 = vcvt.s32.f32 %v2637
        %v2894 = vcvt.s32.f32 %v2638
        %v2895 = vcvt.s32.f32 %v2639
        %v2896 = vcvt.s32.f32 %v2640
        %v2897 = vcvt.s32.f32 %v2641
        %v2898 = vcvt.s32.f32 %v2642
        %v2899 = vcvt.s32.f32 %v2643
        %v2900 = vcvt.s32.f32 %v2644
        %v2901 = vcvt.s32.f32 %v2645
        %v2902 = vcvt.s32.f32 %v2646
        %v2903 = vcvt.s32.f32 %v2647
        %v2904 = vcvt.s32.f32 %v2648
        %v2905 = vcvt.s32.f32 %v2649
        %v2906 = vcvt.s32.f32 %v2650
        %v2907 = vcvt.s32.f32 %v2651
        %v2908 = vcvt.s32.f32 %v2652
        %v2909 = vcvt.s32.f32 %v2653
        %v2910 = vcvt.s32.f32 %v2654
        %v2911 = vcvt.s32.f32 %v2655
        %v2912 = vcvt.s32.f32 %v2656
        %v2913 = vcvt.s32.f32 %v2657
        %v2914 = vcvt.s32.f32 %v2658
        %v2915 = vcvt.s32.f32 %v2659
        %v2916 = vcvt.s32.f32 %v2660
        %v2917 = vcvt.s32.f32 %v2661
        %v2918 = vcvt.s32.f32 %v2662
        %v2919 = vcvt.s32.f32 %v2663
        %v2920 = vcvt.s32.f32 %v2664
        %v2921 = vcvt.s32.f32 %v2665
        %v2922 = vpack.c.bf16 %v2670, %v2666
        %v2923 = vpack.c.bf16 %v2671, %v2667
        %v2924 = vpack.c.bf16 %v2672, %v2668
        %v2925 = vpack.c.bf16 %v2673, %v2669
        %v2926 = vpack.c.bf16 %v2678, %v2674
        %v2927 = vpack.c.bf16 %v2679, %v2675
        %v2928 = vpack.c.bf16 %v2680, %v2676
        %v2929 = vpack.c.bf16 %v2681, %v2677
        %v2930 = vpack.c.bf16 %v2686, %v2682
        %v2931 = vpack.c.bf16 %v2687, %v2683
        %v2932 = vpack.c.bf16 %v2688, %v2684
        %v2933 = vpack.c.bf16 %v2689, %v2685
        %v2934 = vpack.c.bf16 %v2694, %v2690
        %v2935 = vpack.c.bf16 %v2695, %v2691
        %v2936 = vpack.c.bf16 %v2696, %v2692
        %v2937 = vpack.c.bf16 %v2697, %v2693
        %v2938 = vpack.c.bf16 %v2702, %v2698
        %v2939 = vpack.c.bf16 %v2703, %v2699
        %v2940 = vpack.c.bf16 %v2704, %v2700
        %v2941 = vpack.c.bf16 %v2705, %v2701
        %v2942 = vpack.c.bf16 %v2710, %v2706
        %v2943 = vpack.c.bf16 %v2711, %v2707
        %v2944 = vpack.c.bf16 %v2712, %v2708
        %v2945 = vpack.c.bf16 %v2713, %v2709
        %v2946 = vpack.c.bf16 %v2718, %v2714
        %v2947 = vpack.c.bf16 %v2719, %v2715
        %v2948 = vpack.c.bf16 %v2720, %v2716
        %v2949 = vpack.c.bf16 %v2721, %v2717
        %v2950 = vpack.c.bf16 %v2726, %v2722
        %v2951 = vpack.c.bf16 %v2727, %v2723
        %v2952 = vpack.c.bf16 %v2728, %v2724
        %v2953 = vpack.c.bf16 %v2729, %v2725
        %v2954 = vpack.c.bf16 %v2734, %v2730
        %v2955 = vpack.c.bf16 %v2735, %v2731
        %v2956 = vpack.c.bf16 %v2736, %v2732
        %v2957 = vpack.c.bf16 %v2737, %v2733
        %v2958 = vpack.c.bf16 %v2742, %v2738
        %v2959 = vpack.c.bf16 %v2743, %v2739
        %v2960 = vpack.c.bf16 %v2744, %v2740
        %v2961 = vpack.c.bf16 %v2745, %v2741
        %v2962 = vpack.c.bf16 %v2750, %v2746
        %v2963 = vpack.c.bf16 %v2751, %v2747
        %v2964 = vpack.c.bf16 %v2752, %v2748
        %v2965 = vpack.c.bf16 %v2753, %v2749
        %v2966 = vpack.c.bf16 %v2758, %v2754
        %v2967 = vpack.c.bf16 %v2759, %v2755
        %v2968 = vpack.c.bf16 %v2760, %v2756
        %v2969 = vpack.c.bf16 %v2761, %v2757
        %v2970 = vpack.c.bf16 %v2766, %v2762
        %v2971 = vpack.c.bf16 %v2767, %v2763
        %v2972 = vpack.c.bf16 %v2768, %v2764
        %v2973 = vpack.c.bf16 %v2769, %v2765
        %v2974 = vpack.c.bf16 %v2774, %v2770
        %v2975 = vpack.c.bf16 %v2775, %v2771
        %v2976 = vpack.c.bf16 %v2776, %v2772
        %v2977 = vpack.c.bf16 %v2777, %v2773
        %v2978 = vpack.c.bf16 %v2782, %v2778
        %v2979 = vpack.c.bf16 %v2783, %v2779
        %v2980 = vpack.c.bf16 %v2784, %v2780
        %v2981 = vpack.c.bf16 %v2785, %v2781
        %v2982 = vpack.c.bf16 %v2790, %v2786
        %v2983 = vpack.c.bf16 %v2791, %v2787
        %v2984 = vpack.c.bf16 %v2792, %v2788
        %v2985 = vpack.c.bf16 %v2793, %v2789
        %v2986 = vpack.c.bf16 %v2798, %v2794
        %v2987 = vpack.c.bf16 %v2799, %v2795
        %v2988 = vpack.c.bf16 %v2800, %v2796
        %v2989 = vpack.c.bf16 %v2801, %v2797
        %v2990 = vpack.c.bf16 %v2806, %v2802
        %v2991 = vpack.c.bf16 %v2807, %v2803
        %v2992 = vpack.c.bf16 %v2808, %v2804
        %v2993 = vpack.c.bf16 %v2809, %v2805
        %v2994 = vpack.c.bf16 %v2814, %v2810
        %v2995 = vpack.c.bf16 %v2815, %v2811
        %v2996 = vpack.c.bf16 %v2816, %v2812
        %v2997 = vpack.c.bf16 %v2817, %v2813
        %v2998 = vpack.c.bf16 %v2822, %v2818
        %v2999 = vpack.c.bf16 %v2823, %v2819
        %v3000 = vpack.c.bf16 %v2824, %v2820
        %v3001 = vpack.c.bf16 %v2825, %v2821
        %v3002 = vpack.c.bf16 %v2830, %v2826
        %v3003 = vpack.c.bf16 %v2831, %v2827
        %v3004 = vpack.c.bf16 %v2832, %v2828
        %v3005 = vpack.c.bf16 %v2833, %v2829
        %v3006 = vpack.c.bf16 %v2838, %v2834
        %v3007 = vpack.c.bf16 %v2839, %v2835
        %v3008 = vpack.c.bf16 %v2840, %v2836
        %v3009 = vpack.c.bf16 %v2841, %v2837
        %v3010 = vpack.c.bf16 %v2846, %v2842
        %v3011 = vpack.c.bf16 %v2847, %v2843
        %v3012 = vpack.c.bf16 %v2848, %v2844
        %v3013 = vpack.c.bf16 %v2849, %v2845
        %v3014 = vpack.c.bf16 %v2854, %v2850
        %v3015 = vpack.c.bf16 %v2855, %v2851
        %v3016 = vpack.c.bf16 %v2856, %v2852
        %v3017 = vpack.c.bf16 %v2857, %v2853
        %v3018 = vpack.c.bf16 %v2862, %v2858
        %v3019 = vpack.c.bf16 %v2863, %v2859
        %v3020 = vpack.c.bf16 %v2864, %v2860
        %v3021 = vpack.c.bf16 %v2865, %v2861
        %v3022 = vpack.c.bf16 %v2870, %v2866
        %v3023 = vpack.c.bf16 %v2871, %v2867
        %v3024 = vpack.c.bf16 %v2872, %v2868
        %v3025 = vpack.c.bf16 %v2873, %v2869
        %v3026 = vpack.c.bf16 %v2878, %v2874
        %v3027 = vpack.c.bf16 %v2879, %v2875
        %v3028 = vpack.c.bf16 %v2880, %v2876
        %v3029 = vpack.c.bf16 %v2881, %v2877
        %v3030 = vpack.c.bf16 %v2886, %v2882
        %v3031 = vpack.c.bf16 %v2887, %v2883
        %v3032 = vpack.c.bf16 %v2888, %v2884
        %v3033 = vpack.c.bf16 %v2889, %v2885
        %v3034 = vpack.c.bf16 %v2894, %v2890
        %v3035 = vpack.c.bf16 %v2895, %v2891
        %v3036 = vpack.c.bf16 %v2896, %v2892
        %v3037 = vpack.c.bf16 %v2897, %v2893
        %v3038 = vpack.c.bf16 %v2902, %v2898
        %v3039 = vpack.c.bf16 %v2903, %v2899
        %v3040 = vpack.c.bf16 %v2904, %v2900
        %v3041 = vpack.c.bf16 %v2905, %v2901
        %v3042 = vpack.c.bf16 %v2910, %v2906
        %v3043 = vpack.c.bf16 %v2911, %v2907
        %v3044 = vpack.c.bf16 %v2912, %v2908
        %v3045 = vpack.c.bf16 %v2913, %v2909
        %v3046 = vpack.c.bf16 %v2918, %v2914
        %v3047 = vpack.c.bf16 %v2919, %v2915
        %v3048 = vpack.c.bf16 %v2920, %v2916
        %v3049 = vpack.c.bf16 %v2921, %v2917
        %vm3050 = vcmp.eq.s32.totalorder %v720, 0
        %vm3051 = vcmp.eq.s32.totalorder %v720, 1
        %v3052 = vsel %vm3051, %v237, 0.0
        %v3053 = vsel %vm3051, %v241, 0.0
        %v3054 = vsel %vm3051, %v245, 0.0
        %v3055 = vsel %vm3051, %v249, 0.0
        %v3056 = vsel %vm3050, 1.0, %v3052
        %v3057 = vsel %vm3050, 1.0, %v3053
        %v3058 = vsel %vm3050, 1.0, %v3054
        %v3059 = vsel %vm3050, 1.0, %v3055
        %v3060 = vpack.c.bf16 %v3056, %v3056
        %v3061 = vpack.c.bf16 %v3057, %v3057
        %v3062 = vpack.c.bf16 %v3058, %v3058
        %v3063 = vpack.c.bf16 %v3059, %v3059
        %3064 = vmatprep.subr.bf16.mxu0 %v2923
        %3065 = vmatpush1.bf16.msra.mxu0 %v2922
        %3066 = vmatprep.subr.bf16.mxu0 %v2927
        %3067 = vmatpush1.bf16.msra.mxu0 %v2926
        %3068 = vmatprep.subr.bf16.mxu0 %v2931
        %3069 = vmatpush1.bf16.msra.mxu0 %v2930
        %3070 = vmatprep.subr.bf16.mxu0 %v2935
        %3071 = vmatpush1.bf16.msra.mxu0 %v2934
        %3072 = vmatprep.subr.bf16.mxu0 %v2939
        %3073 = vmatpush1.bf16.msra.mxu0 %v2938
        %3074 = vmatprep.subr.bf16.mxu0 %v2943
        %3075 = vmatpush1.bf16.msra.mxu0 %v2942
        %3076 = vmatprep.subr.bf16.mxu0 %v2947
        %3077 = vmatpush1.bf16.msra.mxu0 %v2946
        %3078 = vmatprep.subr.bf16.mxu0 %v2951
        %3079 = vmatpush1.bf16.msra.mxu0 %v2950
        %3080 = vmatprep.subr.bf16.mxu0 %v2955
        %3081 = vmatpush1.bf16.msra.mxu0 %v2954
        %3082 = vmatprep.subr.bf16.mxu0 %v2959
        %3083 = vmatpush1.bf16.msra.mxu0 %v2958
        %3084 = vmatprep.subr.bf16.mxu0 %v2963
        %3085 = vmatpush1.bf16.msra.mxu0 %v2962
        %3086 = vmatprep.subr.bf16.mxu0 %v2967
        %3087 = vmatpush1.bf16.msra.mxu0 %v2966
        %3088 = vmatprep.subr.bf16.mxu0 %v2971
        %3089 = vmatpush1.bf16.msra.mxu0 %v2970
        %3090 = vmatprep.subr.bf16.mxu0 %v2975
        %3091 = vmatpush1.bf16.msra.mxu0 %v2974
        %3092 = vmatprep.subr.bf16.mxu0 %v2979
        %3093 = vmatpush1.bf16.msra.mxu0 %v2978
        %3094 = vmatprep.subr.bf16.mxu0 %v2983
        %3095 = vmatpush1.bf16.msra.mxu0 %v2982
        %3096 = vmatprep.mubr.bf16.mxu0 %v3061
        %3097 = vmatmul.mubr.bf16.gmra.mrb[0].mxu0 %v3060
        %v3098 = vpop.f32.mrb[0].mxu0
        %v3099 = vadd.f32 0.0, %v3098
        %v3100 = vpop.f32.mrb[0].mxu0
        %v3101 = vadd.f32 0.0, %v3100
        %v3102 = vpop.f32.mrb[0].mxu0
        %v3103 = vpop.f32.mrb[0].mxu0
        %3104 = vdwg.mxu0
        %3105 = vmatprep.subr.bf16.mxu0 %v2987
        %3106 = vmatpush1.bf16.msra.mxu0 %v2986
        %3107 = vmatprep.subr.bf16.mxu0 %v2991
        %3108 = vmatpush1.bf16.msra.mxu0 %v2990
        %3109 = vmatprep.subr.bf16.mxu0 %v2995
        %3110 = vmatpush1.bf16.msra.mxu0 %v2994
        %3111 = vmatprep.subr.bf16.mxu0 %v2999
        %3112 = vmatpush1.bf16.msra.mxu0 %v2998
        %3113 = vmatprep.subr.bf16.mxu0 %v3003
        %3114 = vmatpush1.bf16.msra.mxu0 %v3002
        %3115 = vmatprep.subr.bf16.mxu0 %v3007
        %3116 = vmatpush1.bf16.msra.mxu0 %v3006
        %3117 = vmatprep.subr.bf16.mxu0 %v3011
        %3118 = vmatpush1.bf16.msra.mxu0 %v3010
        %3119 = vmatprep.subr.bf16.mxu0 %v3015
        %3120 = vmatpush1.bf16.msra.mxu0 %v3014
        %3121 = vmatprep.subr.bf16.mxu0 %v3019
        %3122 = vmatpush1.bf16.msra.mxu0 %v3018
        %3123 = vmatprep.subr.bf16.mxu0 %v3023
        %3124 = vmatpush1.bf16.msra.mxu0 %v3022
        %3125 = vmatprep.subr.bf16.mxu0 %v3027
        %3126 = vmatpush1.bf16.msra.mxu0 %v3026
        %3127 = vmatprep.subr.bf16.mxu0 %v3031
        %3128 = vmatpush1.bf16.msra.mxu0 %v3030
        %3129 = vmatprep.subr.bf16.mxu0 %v3035
        %3130 = vmatpush1.bf16.msra.mxu0 %v3034
        %3131 = vmatprep.subr.bf16.mxu0 %v3039
        %3132 = vmatpush1.bf16.msra.mxu0 %v3038
        %3133 = vmatprep.subr.bf16.mxu0 %v3043
        %3134 = vmatpush1.bf16.msra.mxu0 %v3042
        %3135 = vmatprep.subr.bf16.mxu0 %v3047
        %3136 = vmatpush1.bf16.msra.mxu0 %v3046
        %3137 = vmatprep.mubr.bf16.mxu0 %v3063
        %3138 = vmatmul.mubr.bf16.gmra.mrb[0].mxu0 %v3062
        %v3139 = vpop.f32.mrb[0].mxu0
        %v3140 = vadd.f32 %v3099, %v3139
        %v3141 = vpop.f32.mrb[0].mxu0
        %v3142 = vadd.f32 %v3101, %v3141
        %v3143 = vpop.f32.mrb[0].mxu0
        %v3144 = vpop.f32.mrb[0].mxu0
        %3145 = vdwg.mxu0
        %3146 = vmatprep.subr.bf16.mxu0 %v2925
        %3147 = vmatpush1.bf16.msra.mxu0 %v2924
        %3148 = vmatprep.subr.bf16.mxu0 %v2929
        %3149 = vmatpush1.bf16.msra.mxu0 %v2928
        %3150 = vmatprep.subr.bf16.mxu0 %v2933
        %3151 = vmatpush1.bf16.msra.mxu0 %v2932
        %3152 = vmatprep.subr.bf16.mxu0 %v2937
        %3153 = vmatpush1.bf16.msra.mxu0 %v2936
        %3154 = vmatprep.subr.bf16.mxu0 %v2941
        %3155 = vmatpush1.bf16.msra.mxu0 %v2940
        %3156 = vmatprep.subr.bf16.mxu0 %v2945
        %3157 = vmatpush1.bf16.msra.mxu0 %v2944
        %3158 = vmatprep.subr.bf16.mxu0 %v2949
        %3159 = vmatpush1.bf16.msra.mxu0 %v2948
        %3160 = vmatprep.subr.bf16.mxu0 %v2953
        %3161 = vmatpush1.bf16.msra.mxu0 %v2952
        %3162 = vmatprep.subr.bf16.mxu0 %v2957
        %3163 = vmatpush1.bf16.msra.mxu0 %v2956
        %3164 = vmatprep.subr.bf16.mxu0 %v2961
        %3165 = vmatpush1.bf16.msra.mxu0 %v2960
        %3166 = vmatprep.subr.bf16.mxu0 %v2965
        %3167 = vmatpush1.bf16.msra.mxu0 %v2964
        %3168 = vmatprep.subr.bf16.mxu0 %v2969
        %3169 = vmatpush1.bf16.msra.mxu0 %v2968
        %3170 = vmatprep.subr.bf16.mxu0 %v2973
        %3171 = vmatpush1.bf16.msra.mxu0 %v2972
        %3172 = vmatprep.subr.bf16.mxu0 %v2977
        %3173 = vmatpush1.bf16.msra.mxu0 %v2976
        %3174 = vmatprep.subr.bf16.mxu0 %v2981
        %3175 = vmatpush1.bf16.msra.mxu0 %v2980
        %3176 = vmatprep.subr.bf16.mxu0 %v2985
        %3177 = vmatpush1.bf16.msra.mxu0 %v2984
        %3178 = vmatprep.mubr.bf16.mxu0 %v3061
        %3179 = vmatmul.mubr.bf16.gmra.mrb[0].mxu0 %v3060
        %v3180 = vpop.f32.mrb[0].mxu0
        %v3181 = vadd.f32 0.0, %v3180
        %v3182 = vpop.f32.mrb[0].mxu0
        %v3183 = vadd.f32 0.0, %v3182
        %v3184 = vpop.f32.mrb[0].mxu0
        %v3185 = vpop.f32.mrb[0].mxu0
        %3186 = vdwg.mxu0
        %3187 = vmatprep.subr.bf16.mxu0 %v2989
        %3188 = vmatpush1.bf16.msra.mxu0 %v2988
        %3189 = vmatprep.subr.bf16.mxu0 %v2993
        %3190 = vmatpush1.bf16.msra.mxu0 %v2992
        %3191 = vmatprep.subr.bf16.mxu0 %v2997
        %3192 = vmatpush1.bf16.msra.mxu0 %v2996
        %3193 = vmatprep.subr.bf16.mxu0 %v3001
        %3194 = vmatpush1.bf16.msra.mxu0 %v3000
        %3195 = vmatprep.subr.bf16.mxu0 %v3005
        %3196 = vmatpush1.bf16.msra.mxu0 %v3004
        %3197 = vmatprep.subr.bf16.mxu0 %v3009
        %3198 = vmatpush1.bf16.msra.mxu0 %v3008
        %3199 = vmatprep.subr.bf16.mxu0 %v3013
        %3200 = vmatpush1.bf16.msra.mxu0 %v3012
        %3201 = vmatprep.subr.bf16.mxu0 %v3017
        %3202 = vmatpush1.bf16.msra.mxu0 %v3016
        %3203 = vmatprep.subr.bf16.mxu0 %v3021
        %3204 = vmatpush1.bf16.msra.mxu0 %v3020
        %3205 = vmatprep.subr.bf16.mxu0 %v3025
        %3206 = vmatpush1.bf16.msra.mxu0 %v3024
        %3207 = vmatprep.subr.bf16.mxu0 %v3029
        %3208 = vmatpush1.bf16.msra.mxu0 %v3028
        %3209 = vmatprep.subr.bf16.mxu0 %v3033
        %3210 = vmatpush1.bf16.msra.mxu0 %v3032
        %3211 = vmatprep.subr.bf16.mxu0 %v3037
        %3212 = vmatpush1.bf16.msra.mxu0 %v3036
        %3213 = vmatprep.subr.bf16.mxu0 %v3041
        %3214 = vmatpush1.bf16.msra.mxu0 %v3040
        %3215 = vmatprep.subr.bf16.mxu0 %v3045
        %3216 = vmatpush1.bf16.msra.mxu0 %v3044
        %3217 = vmatprep.subr.bf16.mxu0 %v3049
        %3218 = vmatpush1.bf16.msra.mxu0 %v3048
        %3219 = vmatprep.mubr.bf16.mxu0 %v3063
        %3220 = vmatmul.mubr.bf16.gmra.mrb[0].mxu0 %v3062
        %v3221 = vpop.f32.mrb[0].mxu0
        %v3222 = vadd.f32 %v3181, %v3221
        %v3223 = vpop.f32.mrb[0].mxu0
        %v3224 = vadd.f32 %v3183, %v3223
        %v3225 = vpop.f32.mrb[0].mxu0
        %v3226 = vpop.f32.mrb[0].mxu0
        %3227 = vdwg.mxu0
        %v3228 = vsel %vm3050, %v3140, 0.0
        %v3229 = vsel %vm3050, %v3142, 0.0
        %v3230 = vsel %vm3050, %v3222, 0.0
        %v3231 = vsel %vm3050, %v3224, 0.0
        %v3232 = vrot.slane %v3228, 4
        %v3233 = vadd.f32 %v3228, %v3232
        %v3234 = vrot.slane %v3233, 2
        %v3235 = vadd.f32 %v3233, %v3234
        %v3236 = vrot.slane %v3235, 1
        %v3237 = vadd.f32 %v3235, %v3236
        %v3238 = vrot.slane %v3229, 4
        %v3239 = vadd.f32 %v3229, %v3238
        %v3240 = vrot.slane %v3239, 2
        %v3241 = vadd.f32 %v3239, %v3240
        %v3242 = vrot.slane %v3241, 1
        %v3243 = vadd.f32 %v3241, %v3242
        %v3244 = vrot.slane %v3230, 4
        %v3245 = vadd.f32 %v3230, %v3244
        %v3246 = vrot.slane %v3245, 2
        %v3247 = vadd.f32 %v3245, %v3246
        %v3248 = vrot.slane %v3247, 1
        %v3249 = vadd.f32 %v3247, %v3248
        %v3250 = vrot.slane %v3231, 4
        %v3251 = vadd.f32 %v3231, %v3250
        %v3252 = vrot.slane %v3251, 2
        %v3253 = vadd.f32 %v3251, %v3252
        %v3254 = vrot.slane %v3253, 1
        %v3255 = vadd.f32 %v3253, %v3254
        %v3256 = vsel %vm3051, %v3140, 0.0
        %v3257 = vsel %vm3051, %v3142, 0.0
        %v3258 = vsel %vm3051, %v3222, 0.0
        %v3259 = vsel %vm3051, %v3224, 0.0
        %v3260 = vrot.slane %v3256, 4
        %v3261 = vadd.f32 %v3256, %v3260
        %v3262 = vrot.slane %v3261, 2
        %v3263 = vadd.f32 %v3261, %v3262
        %v3264 = vrot.slane %v3263, 1
        %v3265 = vadd.f32 %v3263, %v3264
        %v3266 = vrot.slane %v3257, 4
        %v3267 = vadd.f32 %v3257, %v3266
        %v3268 = vrot.slane %v3267, 2
        %v3269 = vadd.f32 %v3267, %v3268
        %v3270 = vrot.slane %v3269, 1
        %v3271 = vadd.f32 %v3269, %v3270
        %v3272 = vrot.slane %v3258, 4
        %v3273 = vadd.f32 %v3258, %v3272
        %v3274 = vrot.slane %v3273, 2
        %v3275 = vadd.f32 %v3273, %v3274
        %v3276 = vrot.slane %v3275, 1
        %v3277 = vadd.f32 %v3275, %v3276
        %v3278 = vrot.slane %v3259, 4
        %v3279 = vadd.f32 %v3259, %v3278
        %v3280 = vrot.slane %v3279, 2
        %v3281 = vadd.f32 %v3279, %v3280
        %v3282 = vrot.slane %v3281, 1
        %v3283 = vadd.f32 %v3281, %v3282
        %v3284 = vadd.f32 %v3265, %v237
        %v3285 = vadd.f32 %v3271, %v241
        %v3286 = vadd.f32 %v3277, %v245
        %v3287 = vadd.f32 %v3283, %v249
        %v3288 = vstv %s270
        %v3289 = vsub.f32 %v3288, %v3284
        %v3290 = vsub.f32 %v3288, %v3285
        %v3291 = vsub.f32 %v3288, %v3286
        %v3292 = vsub.f32 %v3288, %v3287
        %v3293 = vadd.f32 %v3237, 1.0
        %v3294 = vadd.f32 %v3243, 1.0
        %v3295 = vadd.f32 %v3249, 1.0
        %v3296 = vadd.f32 %v3255, 1.0
        %v3297 = vadd.f32 %v3288, %v3293
        %v3298 = vadd.f32 %v3288, %v3294
        %v3299 = vadd.f32 %v3288, %v3295
        %v3300 = vadd.f32 %v3288, %v3296
        %v3301 = vsub.f32 %v3297, %v3284
        %v3302 = vsub.f32 %v3298, %v3285
        %v3303 = vsub.f32 %v3299, %v3286
        %v3304 = vsub.f32 %v3300, %v3287
        %v3305 = vrcp.pop %v3301
        %v3306 = vmul.f32 %v3289, %v3305
        %v3307 = vrcp.pop %v3302
        %v3308 = vmul.f32 %v3290, %v3307
        %v3309 = vrcp.pop %v3303
        %v3310 = vmul.f32 %v3291, %v3309
        %v3311 = vrcp.pop %v3304
        %v3312 = vmul.f32 %v3292, %v3311
        %v3313 = vsub.f32 1.0, %v3306
        %v3314 = vsub.f32 1.0, %v3308
        %v3315 = vsub.f32 1.0, %v3310
        %v3316 = vsub.f32 1.0, %v3312
        %v3317 = vsub.f32 %v3288, %v3265
        %v3318 = vsub.f32 %v3288, %v3271
        %v3319 = vsub.f32 %v3288, %v3277
        %v3320 = vsub.f32 %v3288, %v3283
        %v3321 = vadd.f32 %v3288, %v3237
        %v3322 = vadd.f32 %v3288, %v3243
        %v3323 = vadd.f32 %v3288, %v3249
        %v3324 = vadd.f32 %v3288, %v3255
        %v3325 = vsub.f32 %v3321, %v3265
        %v3326 = vsub.f32 %v3322, %v3271
        %v3327 = vsub.f32 %v3323, %v3277
        %v3328 = vsub.f32 %v3324, %v3283
        %v3329 = vrcp.pop %v3325
        %v3330 = vmul.f32 %v3317, %v3329
        %v3331 = vrcp.pop %v3326
        %v3332 = vmul.f32 %v3318, %v3331
        %v3333 = vrcp.pop %v3327
        %v3334 = vmul.f32 %v3319, %v3333
        %v3335 = vrcp.pop %v3328
        %v3336 = vmul.f32 %v3320, %v3335
        %v3337 = vsub.f32 1.0, %v3330
        %v3338 = vsub.f32 1.0, %v3332
        %v3339 = vsub.f32 1.0, %v3334
        %v3340 = vsub.f32 1.0, %v3336
        %v3341 = vsub.f32 %v3313, %v3337
        %v3342 = vsub.f32 %v3314, %v3338
        %v3343 = vsub.f32 %v3315, %v3339
        %v3344 = vsub.f32 %v3316, %v3340
        %v3345 = vld [vmem:[%s217] sm:$0x1]
        %v3350 = vcombine.low %v3341, %v3342
        %v3351 = vcombine.low %v3343, %v3344
        %v3353 = vunpack.c.l.s4 1966171168
        %v3354 = vunpack.c.0.s8 %v3353
        %v3355 = vlaneseq
        %v3356 = vshrl.u32 %v3355, 7
        %v3357 = vsub.s32 %v3354, %v3356
        %v3358 = vrot.slane %v3350, %v3357
        %v3360 = vunpack.c.l.s4 1966171168
        %v3361 = vunpack.c.0.s8 %v3360
        %v3362 = vlaneseq
        %v3363 = vshrl.u32 %v3362, 7
        %v3364 = vsub.s32 %v3361, %v3363
        %v3365 = vrot.slane %v3351, %v3364
        %v3366 = vcombine.low %v3358, %v3365
        %v3368 = vunpack.c.l.s4 1966171168
        %v3369 = vunpack.c.0.s8 %v3368
        %v3370 = vlaneseq
        %v3371 = vshrl.u32 %v3370, 7
        %v3372 = vsub.s32 %v3369, %v3371
        %v3373 = vrot.slane %v3366, %v3372
        %v3375 = vmul.f32 %v232, %v3373
        %v3377 = vlaneseq
        %v3378 = vshrl.u32 %v3377, 7
        %v3379 = vsub.s32 0, %v3378
        %v3380 = vrot.slane %v3375, %v3379
        %v3381 = vlaneseq
        %v3382 = vshrl.u32 %v3381, 7
        %v3383 = vsub.s32 1, %v3382
        %v3384 = vrot.slane %v3375, %v3383
        %v3385 = vlaneseq
        %v3386 = vshrl.u32 %v3385, 7
        %v3387 = vsub.s32 2, %v3386
        %v3388 = vrot.slane %v3375, %v3387
        %v3389 = vlaneseq
        %v3390 = vshrl.u32 %v3389, 7
        %v3391 = vsub.s32 3, %v3390
        %v3392 = vrot.slane %v3375, %v3391
        %v3397 = vsel %vm254, %v3380, 0.0
        %v3398 = vsel %vm254, %v3384, 0.0
        %v3399 = vadd.f32 %v3397, %v3398
        %v3400 = vsel %vm254, %v3388, 0.0
        %v3401 = vadd.f32 %v3399, %v3400
        %v3402 = vsel %vm254, %v3392, 0.0
        %v3403 = vadd.f32 %v3401, %v3402
        %3404 = vadd.xlane.f32.xlu0 %v3403
        %v3405 = vpop.xlane.xlu0 %3404
        %v3406 = vrot.slane %v3405, 4
        %v3407 = vadd.f32 %v3405, %v3406
        %v3408 = vrot.slane %v3407, 2
        %v3409 = vadd.f32 %v3407, %v3408
        %v3410 = vrot.slane %v3409, 1
        %v3411 = vadd.f32 %v3409, %v3410
        %s3412 = vtos %v3411
        %v3413 = vstv %s3412
        %v3414 = vadd.f32 %v3345, %v3413
        %3415 = vst.msk [vmem:[%s217] sm:$0x1] %vm218, %v3414
      $region40: #{lovasz_softmax_pallas.1} parent=35 // pred_fallthru
        _
      %p3416 = scmp.lt.s32.totalorder %s22, 3
      %s3417 = scalar_select %p3416, %s22, 3
      %s3418 = scalar_lea.vmem %s5, %s3417
      // Predicated region
      $region41: #{lovasz_softmax_pallas.1} parent=35 // pred_check
        %p3419 = pneg %p134
      $region42: #{lovasz_softmax_pallas.1} parent=35 // pred_check_branch
        %3421 = sbr.rel (%p3419) target = $region44
      $region43: #{lovasz_softmax_pallas.1} parent=35 // pred_region
        _
      $region44: #{lovasz_softmax_pallas.1} parent=35 // pred_fallthru
        _
    $region36: #{lovasz_softmax_pallas.1} parent=5 // pred_fallthru
      _
    %p3422 = scmp.le.s32.totalorder 2, %s17
    // Predicated region
    $region45: #{lovasz_softmax_pallas.1} parent=5 // pred_check
      %p3423 = pneg %p3422
    $region46: #{lovasz_softmax_pallas.1} parent=5 // pred_check_branch
      %3425 = sbr.rel (%p3423) target = $region48
    $region47: #{lovasz_softmax_pallas.1} parent=5 // pred_region
      %s3426 = ssub.s32 %s17, 2
      // Predicated region
      $region49: #{lovasz_softmax_pallas.1} parent=47 // pred_check
        %p3427 = pneg %p140
      $region50: #{lovasz_softmax_pallas.1} parent=47 // pred_check_branch
        %3429 = sbr.rel (%p3427) target = $region52
      $region51: #{lovasz_softmax_pallas.1} parent=47 // pred_region
        %p3430 = scmp.lt.s32.totalorder %s23, 3
        %s3431 = scalar_select %p3430, %s23, 3
        %s3432 = scalar_lea.vmem %s5, %s3431
      $region52: #{lovasz_softmax_pallas.1} parent=47 // pred_fallthru
        _
    $region48: #{lovasz_softmax_pallas.1} parent=5 // pred_fallthru
      _
  $region6: #{lovasz_softmax_pallas.1} parent=0 // loop_footer
    %s21 = sadd.s32 1, %s17
  $region7: #{lovasz_softmax_pallas.1} parent=0 // loop_footer_branch
    %16 = sbr.rel target = $region3
  $region8: #{lovasz_softmax_pallas.1} parent=0 // loop_exit
    _

</llo_original>
